<compile_context>
chip_gen: v6e
topology: v6e:2x2x1
jax: 0.10.0
libtpu: 0.0.40
codegen_flags: <defaults>
</compile_context>

<pallas_src>
import functools

import jax
import jax.numpy as jnp
from jax import lax
from jax.experimental import pallas as pl
from jax.experimental.pallas import tpu as pltpu


# 3x3 tap offsets; order matches OIHW weights transposed to (kh, kw, Cin, Cout)
# and reshaped to (9*Cin, Cout):  k = (di + 1) * 3 + (dj + 1).
_TAPS = tuple((di, dj) for di in (-1, 0, 1) for dj in (-1, 0, 1))


def _block_kernel(*refs, Wo, Cin, Cout, rows, rows_pad, pad, strided,
                  matmul_dtype):
    """Fused conv_a(+folded bn_b) -> relu -> conv_b -> residual add.

    One image per program; flattened-row, channels-on-lanes layout (rows, C).
    """
    if strided:
        (patches_ref, sc_ref, wa_ref, wb_ref, bias_ref, out_ref, ypad_ref) = refs
    else:
        (xa_ref, wa_ref, wb_ref, bias_ref, out_ref, ypad_ref) = refs

    # Column-validity masks for the +/-1 column taps (no HBM stream):
    # mask_l[r] true iff column j-1 exists, mask_r[r] true iff column j+1 exists.
    col = lax.broadcasted_iota(jnp.int32, (rows_pad, 1), 0) % Wo
    mask_l = col > 0
    mask_r = col < (Wo - 1)

    def im2col(src_ref):
        # `src_ref` is a flattened (L, C) image with a `pad`-row zero halo on
        # each side; tap (di, dj) is a shifted window of it.  dj = +/-1 taps
        # mask the rows that would wrap across an image row.  The 9 taps are
        # fused along the contraction dim -> one K = 9*C matmul per conv.
        taps = []
        for di, dj in _TAPS:
            t = src_ref[pl.ds(pad + di * Wo + dj, rows_pad), :]
            if dj == 1:
                t = jnp.where(mask_r, t, 0.0)
            elif dj == -1:
                t = jnp.where(mask_l, t, 0.0)
            taps.append(t)
        return jnp.concatenate(taps, axis=-1).astype(matmul_dtype)

    # ---- conv_a with bn_b folded in:  y = relu(conv_a(x) * s + b) -----------
    if strided:
        acc = jnp.dot(patches_ref[...], wa_ref[...],
                      preferred_element_type=jnp.float32)
    else:
        acc = jnp.dot(im2col(xa_ref), wa_ref[...],
                      preferred_element_type=jnp.float32)
    y = jnp.maximum(acc + bias_ref[...], 0.0)

    if rows_pad != rows:
        # Rows appended for 8-row alignment do not exist spatially: zero them
        # so they act as conv_b zero padding.
        row = lax.broadcasted_iota(jnp.int32, (rows_pad, 1), 0)
        y = jnp.where(row < rows, y, 0.0)

    # ---- conv_b input scratch: zero only the halo, one interior store -------
    halo = jnp.zeros((pad, Cout), jnp.float32)
    ypad_ref[pl.ds(0, pad), :] = halo
    ypad_ref[pl.ds(pad + rows_pad, pad), :] = halo
    ypad_ref[pl.ds(pad, rows_pad), :] = y
    # TODO(synk): keep this scratch in matmul_dtype (bf16) to halve its size.

    # ---- residual shortcut (exact f32) + conv_b, single value store ---------
    if strided:
        sc = jnp.concatenate(
            [sc_ref[...], jnp.zeros((rows_pad, Cout - Cin), jnp.float32)],
            axis=-1)
    else:
        sc = xa_ref[pl.ds(pad, rows_pad), :]

    out_ref[...] = sc + jnp.dot(im2col(ypad_ref), wb_ref[...],
                                preferred_element_type=jnp.float32)


def _vmem_limit_bytes():
    cap = 128 * 1024 * 1024
    try:
        cap = int(getattr(pltpu.get_tpu_info(), "vmem_capacity_bytes", cap))
    except Exception:
        pass
    # Leave ~25% headroom; never below the 32 MiB scoped default, never above
    # 64 MiB (v7x physical VMEM).
    return max(32 * 1024 * 1024, min(cap * 3 // 4, 64 * 1024 * 1024))


def preact_residual_block(x_nchw, params, *, increase_dim=False, eps=1e-5,
                          matmul_dtype=jnp.bfloat16):
    """NCHW in / NCHW out, matching PreActResidualBlock.forward (eval-mode BN)."""
    N, Cin, H, W = x_nchw.shape
    stride = 2 if increase_dim else 1
    Cout = Cin * 2 if increase_dim else Cin
    assert H % stride == 0 and W % stride == 0
    Ho, Wo = H // stride, W // stride
    rows = Ho * Wo
    rows_pad = ((rows + 7) // 8) * 8       # 8-aligned flattened spatial size
    pad = ((Wo + 1 + 7) // 8) * 8          # zero-halo rows (>= Wo+1, 8-aligned)
    L = rows_pad + 2 * pad

    # TODO(synk): keep activations NHWC between residual blocks so these two
    # transposes (extra HBM passes) disappear in a full network.
    x = jnp.transpose(x_nchw, (0, 2, 3, 1)).astype(jnp.float32)     # NHWC

    # ---- fold inference-mode bn_b into conv_a weights + one bias vector -----
    s = params["bn_b_gamma"] * lax.rsqrt(params["bn_b_var"] + eps)
    bias = (params["bn_b_beta"] - params["bn_b_mean"] * s)
    bias = bias.reshape(1, Cout).astype(jnp.float32)
    wa = (jnp.transpose(params["conv_a"], (2, 3, 1, 0)) * s)        # (3,3,Cin,Cout)
    wa = wa.reshape(9 * Cin, Cout).astype(matmul_dtype)
    wb = jnp.transpose(params["conv_b"], (2, 3, 1, 0)).reshape(9 * Cout, Cout)
    wb = wb.astype(matmul_dtype)

    kernel = functools.partial(
        _block_kernel, Wo=Wo, Cin=Cin, Cout=Cout, rows=rows, rows_pad=rows_pad,
        pad=pad, strided=increase_dim, matmul_dtype=matmul_dtype)

    if increase_dim:
        # conv_a has stride 2: wrapper-side im2col (shipped in matmul_dtype);
        # shortcut ships only the Cin real channels, in exact f32.
        # TODO(synk): build the stride-2 taps in-kernel from the raw image.
        xpad4 = jnp.pad(x, ((0, 0), (1, 1), (1, 1), (0, 0)))
        taps = [xpad4[:, di:di + 2 * Ho:2, dj:dj + 2 * Wo:2, :]
                for di in range(3) for dj in range(3)]
        patches = jnp.concatenate(taps, axis=-1).reshape(N, rows, 9 * Cin)
        patches = jnp.pad(patches, ((0, 0), (0, rows_pad - rows), (0, 0)))
        patches = patches.reshape(N * rows_pad, 9 * Cin).astype(matmul_dtype)
        shortcut = x[:, ::2, ::2, :].reshape(N, rows, Cin)
        shortcut = jnp.pad(shortcut, ((0, 0), (0, rows_pad - rows), (0, 0)))
        shortcut = shortcut.reshape(N * rows_pad, Cin)               # f32, exact
        args = (patches, shortcut, wa, wb, bias)
        in_specs = [
            pl.BlockSpec((rows_pad, 9 * Cin), lambda n: (n, 0)),   # im2col
            pl.BlockSpec((rows_pad, Cin), lambda n: (n, 0)),       # shortcut
            pl.BlockSpec((9 * Cin, Cout), lambda n: (0, 0)),       # conv_a*bn W
            pl.BlockSpec((9 * Cout, Cout), lambda n: (0, 0)),      # conv_b W
            pl.BlockSpec((1, Cout), lambda n: (0, 0)),             # fused bias
        ]
    else:
        # stride-1 path: no im2col traffic.  Ship the raw image once, flattened
        # with a `pad`-row zero halo; the same block provides the conv_a taps
        # and the exact f32 shortcut.
        xf = x.reshape(N, rows, Cin)
        xa = jnp.pad(xf, ((0, 0), (pad, L - pad - rows), (0, 0)))
        xa = xa.reshape(N * L, Cin)
        args = (xa, wa, wb, bias)
        in_specs = [
            pl.BlockSpec((L, Cin), lambda n: (n, 0)),              # padded image
            pl.BlockSpec((9 * Cin, Cout), lambda n: (0, 0)),       # conv_a*bn W
            pl.BlockSpec((9 * Cout, Cout), lambda n: (0, 0)),      # conv_b W
            pl.BlockSpec((1, Cout), lambda n: (0, 0)),             # fused bias
        ]

    out = pl.pallas_call(
        kernel,
        out_shape=jax.ShapeDtypeStruct((N * rows_pad, Cout), jnp.float32),
        grid_spec=pltpu.PrefetchScalarGridSpec(
            num_scalar_prefetch=0,
            grid=(N,),                                    # one image per program
            in_specs=in_specs,
            out_specs=pl.BlockSpec((rows_pad, Cout), lambda n: (n, 0)),
            scratch_shapes=[pltpu.VMEM((L, Cout), jnp.float32)],   # conv_b input
        ),
        compiler_params=pltpu.CompilerParams(
            dimension_semantics=("parallel",),
            vmem_limit_bytes=_vmem_limit_bytes()),
    )(*args)

    y = out.reshape(N, rows_pad, Cout)[:, :rows, :].reshape(N, Ho, Wo, Cout)
    return jnp.transpose(y, (0, 3, 1, 2))                 # back to NCHW


def init_params(key, inplanes, increase_dim):
    """Deterministic synthetic parameters matching the module's shapes.
    (bn_a parameters exist in the module but its output is dead in forward().)"""
    planes = inplanes * 2 if increase_dim else inplanes
    k = jax.random.split(key, 6)
    return dict(
        conv_a=0.1 * jax.random.normal(k[0], (planes, inplanes, 3, 3), jnp.float32),
        conv_b=0.1 * jax.random.normal(k[1], (planes, planes, 3, 3), jnp.float32),
        bn_b_gamma=1.0 + 0.1 * jax.random.normal(k[2], (planes,), jnp.float32),
        bn_b_beta=0.1 * jax.random.normal(k[3], (planes,), jnp.float32),
        bn_b_mean=0.1 * jax.random.normal(k[4], (planes,), jnp.float32),
        bn_b_var=jax.random.uniform(k[5], (planes,), jnp.float32, 0.5, 1.5),
    )


def reference(x_nchw, params, *, increase_dim=False, eps=1e-5):
    """Pure-JAX reference mirroring the PyTorch forward (eval-mode BN)."""
    stride = 2 if increase_dim else 1
    x = x_nchw.astype(jnp.float32)
    y = lax.conv_general_dilated(
        x, params["conv_a"], (stride, stride), ((1, 1), (1, 1)),
        dimension_numbers=("NCHW", "OIHW", "NCHW"),
        precision=lax.Precision.HIGHEST)
    inv = lax.rsqrt(params["bn_b_var"] + eps)
    scale = (params["bn_b_gamma"] * inv)[None, :, None, None]
    y = (y - params["bn_b_mean"][None, :, None, None]) * scale \
        + params["bn_b_beta"][None, :, None, None]
    y = jnp.maximum(y, 0.0)
    y = lax.conv_general_dilated(
        y, params["conv_b"], (1, 1), ((1, 1), (1, 1)),
        dimension_numbers=("NCHW", "OIHW", "NCHW"),
        precision=lax.Precision.HIGHEST)
    if increase_dim:
        sc = x[..., ::2, ::2]
        sc = jnp.concatenate([sc, jnp.zeros_like(sc)], axis=1)
    else:
        sc = x
    return sc + y


if __name__ == "__main__":
    key = jax.random.PRNGKey(0)
    kx, kx2, kp1, kp2, kp3 = jax.random.split(key, 5)

    # Cases 1 & 2: 16x16, both residual-block variants, default bf16 MXU path.
    x = jax.random.normal(kx, (2, 4, 16, 16), jnp.float32)   # NCHW, inplanes=4
    for increase_dim, kp in ((False, kp1), (True, kp2)):
        params = init_params(kp, 4, increase_dim)
        ref = reference(x, params, increase_dim=increase_dim)
        out = jax.block_until_ready(
            preact_residual_block(x, params, increase_dim=increase_dim))
        assert out.shape == ref.shape, (out.shape, ref.shape)
        err = float(jnp.max(jnp.abs(out - ref)))
        assert jnp.allclose(out, ref, atol=5e-2, rtol=5e-2), err

    # Case 3: ragged spatial size (rows = 60, not a multiple of 8) + f32 path.
    x2 = jax.random.normal(kx2, (1, 4, 6, 10), jnp.float32)
    params3 = init_params(kp3, 4, False)
    ref3 = reference(x2, params3, increase_dim=False)
    out3 = jax.block_until_ready(
        preact_residual_block(x2, params3, increase_dim=False,
                              matmul_dtype=jnp.float32))
    assert out3.shape == ref3.shape, (out3.shape, ref3.shape)
    err3 = float(jnp.max(jnp.abs(out3 - ref3)))
    assert jnp.allclose(out3, ref3, atol=5e-2, rtol=5e-2), err3

    print("KERNEL_OK")
</pallas_src>

<mosaic_0001>
module attributes {stable_mosaic.version = 11 : i64} {
  func.func @_block_kernel(%arg0: i32, %arg1: memref<304x4xf32, #tpu.memory_space<vmem>>, %arg2: memref<36x4xbf16, #tpu.memory_space<vmem>>, %arg3: memref<36x4xbf16, #tpu.memory_space<vmem>>, %arg4: memref<1x4xf32, #tpu.memory_space<vmem>>, %arg5: memref<256x4xf32, #tpu.memory_space<vmem>>, %arg6: memref<304x4xf32, #tpu.memory_space<vmem>>) attributes {dimension_semantics = [#tpu.dimension_semantics<parallel>], iteration_bounds = array<i64: 2>, scalar_prefetch = 0 : i64, scratch_operands = 1 : i64, tpu.core_type = #tpu.core_type<tc>, window_params = [{transform_indices = @transform_0, window_bounds = array<i64: 304, 4>}, {pipeline_mode = #tpu.pipeline_mode<synchronous>, transform_indices = @transform_1, window_bounds = array<i64: 36, 4>}, {pipeline_mode = #tpu.pipeline_mode<synchronous>, transform_indices = @transform_2, window_bounds = array<i64: 36, 4>}, {pipeline_mode = #tpu.pipeline_mode<synchronous>, transform_indices = @transform_3, window_bounds = array<i64: 1, 4>}, {transform_indices = @transform_4, window_bounds = array<i64: 256, 4>}]} {
    %0 = tpu.iota {dimensions = array<i32: 0>} : vector<256x1xi32>
    %c16_i32 = arith.constant 16 : i32
    %c0_i32 = arith.constant 0 : i32
    %1 = arith.cmpi eq, %c16_i32, %c0_i32 : i32
    %c1_i32 = arith.constant 1 : i32
    %2 = arith.select %1, %c1_i32, %c16_i32 : i32
    %3 = vector.broadcast %2 : i32 to vector<256x1xi32>
    %4 = arith.remsi %0, %3 : vector<256x1xi32>
    %c0_i32_0 = arith.constant 0 : i32
    %5 = vector.broadcast %c0_i32_0 : i32 to vector<256x1xi32>
    %6 = arith.cmpi ne, %4, %5 : vector<256x1xi32>
    %c0_i32_1 = arith.constant 0 : i32
    %7 = vector.broadcast %c0_i32_1 : i32 to vector<256x1xi32>
    %8 = arith.cmpi slt, %4, %7 : vector<256x1xi32>
    %c0_i32_2 = arith.constant 0 : i32
    %9 = arith.cmpi slt, %2, %c0_i32_2 : i32
    %10 = vector.broadcast %9 : i1 to vector<256x1xi1>
    %11 = vector.broadcast %10 : vector<256x1xi1> to vector<256x1xi1>
    %12 = arith.xori %8, %11 : vector<256x1xi1>
    %13 = arith.andi %12, %6 : vector<256x1xi1>
    %14 = vector.broadcast %2 : i32 to vector<256x1xi32>
    %15 = arith.addi %4, %14 : vector<256x1xi32>
    %16 = arith.select %13, %15, %4 : vector<256x1xi1>, vector<256x1xi32>
    %c0_i32_3 = arith.constant 0 : i32
    %17 = vector.broadcast %c0_i32_3 : i32 to vector<256x1xi32>
    %18 = arith.cmpi sgt, %16, %17 : vector<256x1xi32>
    %c15_i32 = arith.constant 15 : i32
    %19 = vector.broadcast %c15_i32 : i32 to vector<256x1xi32>
    %20 = arith.cmpi slt, %16, %19 : vector<256x1xi32>
    %c7 = arith.constant 7 : index
    %c0 = arith.constant 0 : index
    %21 = vector.load %arg1[%c7, %c0] : memref<304x4xf32, #tpu.memory_space<vmem>>, vector<256x4xf32>
    %cst = arith.constant 0.000000e+00 : f32
    %22 = vector.shape_cast %18 : vector<256x1xi1> to vector<256x1xi1>
    %23 = vector.broadcast %22 : vector<256x1xi1> to vector<256x4xi1>
    %24 = vector.broadcast %cst : f32 to vector<256x4xf32>
    %25 = arith.select %23, %21, %24 : vector<256x4xi1>, vector<256x4xf32>
    %c8 = arith.constant 8 : index
    %c0_4 = arith.constant 0 : index
    %26 = vector.load %arg1[%c8, %c0_4] : memref<304x4xf32, #tpu.memory_space<vmem>>, vector<256x4xf32>
    %c9 = arith.constant 9 : index
    %c0_5 = arith.constant 0 : index
    %27 = vector.load %arg1[%c9, %c0_5] : memref<304x4xf32, #tpu.memory_space<vmem>>, vector<256x4xf32>
    %cst_6 = arith.constant 0.000000e+00 : f32
    %28 = vector.shape_cast %20 : vector<256x1xi1> to vector<256x1xi1>
    %29 = vector.broadcast %28 : vector<256x1xi1> to vector<256x4xi1>
    %30 = vector.broadcast %cst_6 : f32 to vector<256x4xf32>
    %31 = arith.select %29, %27, %30 : vector<256x4xi1>, vector<256x4xf32>
    %c23 = arith.constant 23 : index
    %c0_7 = arith.constant 0 : index
    %32 = vector.load %arg1[%c23, %c0_7] : memref<304x4xf32, #tpu.memory_space<vmem>>, vector<256x4xf32>
    %cst_8 = arith.constant 0.000000e+00 : f32
    %33 = vector.shape_cast %18 : vector<256x1xi1> to vector<256x1xi1>
    %34 = vector.broadcast %33 : vector<256x1xi1> to vector<256x4xi1>
    %35 = vector.broadcast %cst_8 : f32 to vector<256x4xf32>
    %36 = arith.select %34, %32, %35 : vector<256x4xi1>, vector<256x4xf32>
    %c24 = arith.constant 24 : index
    %c0_9 = arith.constant 0 : index
    %37 = vector.load %arg1[%c24, %c0_9] : memref<304x4xf32, #tpu.memory_space<vmem>>, vector<256x4xf32>
    %c25 = arith.constant 25 : index
    %c0_10 = arith.constant 0 : index
    %38 = vector.load %arg1[%c25, %c0_10] : memref<304x4xf32, #tpu.memory_space<vmem>>, vector<256x4xf32>
    %cst_11 = arith.constant 0.000000e+00 : f32
    %39 = vector.shape_cast %20 : vector<256x1xi1> to vector<256x1xi1>
    %40 = vector.broadcast %39 : vector<256x1xi1> to vector<256x4xi1>
    %41 = vector.broadcast %cst_11 : f32 to vector<256x4xf32>
    %42 = arith.select %40, %38, %41 : vector<256x4xi1>, vector<256x4xf32>
    %c39 = arith.constant 39 : index
    %c0_12 = arith.constant 0 : index
    %43 = vector.load %arg1[%c39, %c0_12] : memref<304x4xf32, #tpu.memory_space<vmem>>, vector<256x4xf32>
    %cst_13 = arith.constant 0.000000e+00 : f32
    %44 = vector.shape_cast %18 : vector<256x1xi1> to vector<256x1xi1>
    %45 = vector.broadcast %44 : vector<256x1xi1> to vector<256x4xi1>
    %46 = vector.broadcast %cst_13 : f32 to vector<256x4xf32>
    %47 = arith.select %45, %43, %46 : vector<256x4xi1>, vector<256x4xf32>
    %c40 = arith.constant 40 : index
    %c0_14 = arith.constant 0 : index
    %48 = vector.load %arg1[%c40, %c0_14] : memref<304x4xf32, #tpu.memory_space<vmem>>, vector<256x4xf32>
    %c41 = arith.constant 41 : index
    %c0_15 = arith.constant 0 : index
    %49 = vector.load %arg1[%c41, %c0_15] : memref<304x4xf32, #tpu.memory_space<vmem>>, vector<256x4xf32>
    %cst_16 = arith.constant 0.000000e+00 : f32
    %50 = vector.shape_cast %20 : vector<256x1xi1> to vector<256x1xi1>
    %51 = vector.broadcast %50 : vector<256x1xi1> to vector<256x4xi1>
    %52 = vector.broadcast %cst_16 : f32 to vector<256x4xf32>
    %53 = arith.select %51, %49, %52 : vector<256x4xi1>, vector<256x4xf32>
    %54 = tpu.concatenate %25, %26, %31, %36, %37, %42, %47, %48, %53 in 1 : vector<256x4xf32>, vector<256x4xf32>, vector<256x4xf32>, vector<256x4xf32>, vector<256x4xf32>, vector<256x4xf32>, vector<256x4xf32>, vector<256x4xf32>, vector<256x4xf32> -> vector<256x36xf32>
    %55 = arith.truncf %54 : vector<256x36xf32> to vector<256x36xbf16>
    %c0_17 = arith.constant 0 : index
    %c0_18 = arith.constant 0 : index
    %56 = vector.load %arg2[%c0_17, %c0_18] : memref<36x4xbf16, #tpu.memory_space<vmem>>, vector<36x4xbf16>
    %cst_19 = arith.constant dense<0.000000e+00> : vector<256x4xf32>
    %57 = tpu.matmul %55, %56, %cst_19 {dimension_numbers = #tpu.dot_dimension_numbers<[1], [0], [0], [1], [0, 0, 1, 1], [], []>} : vector<256x36xbf16>, vector<36x4xbf16>, vector<256x4xf32> -> vector<256x4xf32>
    %c0_20 = arith.constant 0 : index
    %c0_21 = arith.constant 0 : index
    %58 = vector.load %arg4[%c0_20, %c0_21] : memref<1x4xf32, #tpu.memory_space<vmem>>, vector<1x4xf32>
    %59 = vector.broadcast %58 : vector<1x4xf32> to vector<256x4xf32>
    %60 = arith.addf %57, %59 : vector<256x4xf32>
    %cst_22 = arith.constant 0.000000e+00 : f32
    %61 = vector.broadcast %cst_22 : f32 to vector<256x4xf32>
    %62 = arith.maximumf %60, %61 : vector<256x4xf32>
    %cst_23 = arith.constant 0.000000e+00 : f32
    %63 = vector.broadcast %cst_23 : f32 to vector<24x4xf32>
    %c0_24 = arith.constant 0 : index
    %c0_25 = arith.constant 0 : index
    %64 = vector.load %arg6[%c0_24, %c0_25] : memref<304x4xf32, #tpu.memory_space<vmem>>, vector<24x4xf32>
    tpu.vector_store %arg6[%c0_24, %c0_25], %63 {strides = array<i32>} : memref<304x4xf32, #tpu.memory_space<vmem>>, vector<24x4xf32>,
    %c280 = arith.constant 280 : index
    %c0_26 = arith.constant 0 : index
    %65 = vector.load %arg6[%c280, %c0_26] : memref<304x4xf32, #tpu.memory_space<vmem>>, vector<24x4xf32>
    tpu.vector_store %arg6[%c280, %c0_26], %63 {strides = array<i32>} : memref<304x4xf32, #tpu.memory_space<vmem>>, vector<24x4xf32>,
    %c24_27 = arith.constant 24 : index
    %c0_28 = arith.constant 0 : index
    %66 = vector.load %arg6[%c24_27, %c0_28] : memref<304x4xf32, #tpu.memory_space<vmem>>, vector<256x4xf32>
    tpu.vector_store %arg6[%c24_27, %c0_28], %62 {strides = array<i32>} : memref<304x4xf32, #tpu.memory_space<vmem>>, vector<256x4xf32>,
    %c24_29 = arith.constant 24 : index
    %c0_30 = arith.constant 0 : index
    %67 = vector.load %arg1[%c24_29, %c0_30] : memref<304x4xf32, #tpu.memory_space<vmem>>, vector<256x4xf32>
    %c7_31 = arith.constant 7 : index
    %c0_32 = arith.constant 0 : index
    %68 = vector.load %arg6[%c7_31, %c0_32] : memref<304x4xf32, #tpu.memory_space<vmem>>, vector<256x4xf32>
    %cst_33 = arith.constant 0.000000e+00 : f32
    %69 = vector.shape_cast %18 : vector<256x1xi1> to vector<256x1xi1>
    %70 = vector.broadcast %69 : vector<256x1xi1> to vector<256x4xi1>
    %71 = vector.broadcast %cst_33 : f32 to vector<256x4xf32>
    %72 = arith.select %70, %68, %71 : vector<256x4xi1>, vector<256x4xf32>
    %c8_34 = arith.constant 8 : index
    %c0_35 = arith.constant 0 : index
    %73 = vector.load %arg6[%c8_34, %c0_35] : memref<304x4xf32, #tpu.memory_space<vmem>>, vector<256x4xf32>
    %c9_36 = arith.constant 9 : index
    %c0_37 = arith.constant 0 : index
    %74 = vector.load %arg6[%c9_36, %c0_37] : memref<304x4xf32, #tpu.memory_space<vmem>>, vector<256x4xf32>
    %cst_38 = arith.constant 0.000000e+00 : f32
    %75 = vector.shape_cast %20 : vector<256x1xi1> to vector<256x1xi1>
    %76 = vector.broadcast %75 : vector<256x1xi1> to vector<256x4xi1>
    %77 = vector.broadcast %cst_38 : f32 to vector<256x4xf32>
    %78 = arith.select %76, %74, %77 : vector<256x4xi1>, vector<256x4xf32>
    %c23_39 = arith.constant 23 : index
    %c0_40 = arith.constant 0 : index
    %79 = vector.load %arg6[%c23_39, %c0_40] : memref<304x4xf32, #tpu.memory_space<vmem>>, vector<256x4xf32>
    %cst_41 = arith.constant 0.000000e+00 : f32
    %80 = vector.shape_cast %18 : vector<256x1xi1> to vector<256x1xi1>
    %81 = vector.broadcast %80 : vector<256x1xi1> to vector<256x4xi1>
    %82 = vector.broadcast %cst_41 : f32 to vector<256x4xf32>
    %83 = arith.select %81, %79, %82 : vector<256x4xi1>, vector<256x4xf32>
    %c24_42 = arith.constant 24 : index
    %c0_43 = arith.constant 0 : index
    %84 = vector.load %arg6[%c24_42, %c0_43] : memref<304x4xf32, #tpu.memory_space<vmem>>, vector<256x4xf32>
    %c25_44 = arith.constant 25 : index
    %c0_45 = arith.constant 0 : index
    %85 = vector.load %arg6[%c25_44, %c0_45] : memref<304x4xf32, #tpu.memory_space<vmem>>, vector<256x4xf32>
    %cst_46 = arith.constant 0.000000e+00 : f32
    %86 = vector.shape_cast %20 : vector<256x1xi1> to vector<256x1xi1>
    %87 = vector.broadcast %86 : vector<256x1xi1> to vector<256x4xi1>
    %88 = vector.broadcast %cst_46 : f32 to vector<256x4xf32>
    %89 = arith.select %87, %85, %88 : vector<256x4xi1>, vector<256x4xf32>
    %c39_47 = arith.constant 39 : index
    %c0_48 = arith.constant 0 : index
    %90 = vector.load %arg6[%c39_47, %c0_48] : memref<304x4xf32, #tpu.memory_space<vmem>>, vector<256x4xf32>
    %cst_49 = arith.constant 0.000000e+00 : f32
    %91 = vector.shape_cast %18 : vector<256x1xi1> to vector<256x1xi1>
    %92 = vector.broadcast %91 : vector<256x1xi1> to vector<256x4xi1>
    %93 = vector.broadcast %cst_49 : f32 to vector<256x4xf32>
    %94 = arith.select %92, %90, %93 : vector<256x4xi1>, vector<256x4xf32>
    %c40_50 = arith.constant 40 : index
    %c0_51 = arith.constant 0 : index
    %95 = vector.load %arg6[%c40_50, %c0_51] : memref<304x4xf32, #tpu.memory_space<vmem>>, vector<256x4xf32>
    %c41_52 = arith.constant 41 : index
    %c0_53 = arith.constant 0 : index
    %96 = vector.load %arg6[%c41_52, %c0_53] : memref<304x4xf32, #tpu.memory_space<vmem>>, vector<256x4xf32>
    %cst_54 = arith.constant 0.000000e+00 : f32
    %97 = vector.shape_cast %20 : vector<256x1xi1> to vector<256x1xi1>
    %98 = vector.broadcast %97 : vector<256x1xi1> to vector<256x4xi1>
    %99 = vector.broadcast %cst_54 : f32 to vector<256x4xf32>
    %100 = arith.select %98, %96, %99 : vector<256x4xi1>, vector<256x4xf32>
    %101 = tpu.concatenate %72, %73, %78, %83, %84, %89, %94, %95, %100 in 1 : vector<256x4xf32>, vector<256x4xf32>, vector<256x4xf32>, vector<256x4xf32>, vector<256x4xf32>, vector<256x4xf32>, vector<256x4xf32>, vector<256x4xf32>, vector<256x4xf32> -> vector<256x36xf32>
    %102 = arith.truncf %101 : vector<256x36xf32> to vector<256x36xbf16>
    %c0_55 = arith.constant 0 : index
    %c0_56 = arith.constant 0 : index
    %103 = vector.load %arg3[%c0_55, %c0_56] : memref<36x4xbf16, #tpu.memory_space<vmem>>, vector<36x4xbf16>
    %cst_57 = arith.constant dense<0.000000e+00> : vector<256x4xf32>
    %104 = tpu.matmul %102, %103, %cst_57 {dimension_numbers = #tpu.dot_dimension_numbers<[1], [0], [0], [1], [0, 0, 1, 1], [], []>} : vector<256x36xbf16>, vector<36x4xbf16>, vector<256x4xf32> -> vector<256x4xf32>
    %105 = arith.addf %67, %104 : vector<256x4xf32>
    %c0_58 = arith.constant 0 : index
    %c0_59 = arith.constant 0 : index
    %106 = vector.load %arg5[%c0_58, %c0_59] : memref<256x4xf32, #tpu.memory_space<vmem>>, vector<256x4xf32>
    tpu.vector_store %arg5[%c0_58, %c0_59], %105 {strides = array<i32>} : memref<256x4xf32, #tpu.memory_space<vmem>>, vector<256x4xf32>,
    return
  }
  func.func @transform_0(%arg0: i32) -> (i32, i32) {
    %c0_i32 = arith.constant 0 : i32
    %c0_i32_0 = arith.constant 0 : i32
    return %arg0, %c0_i32 : i32, i32
  }
  func.func @transform_1(%arg0: i32) -> (i32, i32) {
    %c0_i32 = arith.constant 0 : i32
    %c0_i32_0 = arith.constant 0 : i32
    %c0_i32_1 = arith.constant 0 : i32
    return %c0_i32, %c0_i32_0 : i32, i32
  }
  func.func @transform_2(%arg0: i32) -> (i32, i32) {
    %c0_i32 = arith.constant 0 : i32
    %c0_i32_0 = arith.constant 0 : i32
    %c0_i32_1 = arith.constant 0 : i32
    return %c0_i32, %c0_i32_0 : i32, i32
  }
  func.func @transform_3(%arg0: i32) -> (i32, i32) {
    %c0_i32 = arith.constant 0 : i32
    %c0_i32_0 = arith.constant 0 : i32
    %c0_i32_1 = arith.constant 0 : i32
    return %c0_i32, %c0_i32_0 : i32, i32
  }
  func.func @transform_4(%arg0: i32) -> (i32, i32) {
    %c0_i32 = arith.constant 0 : i32
    %c0_i32_0 = arith.constant 0 : i32
    return %arg0, %c0_i32 : i32, i32
  }
}

</mosaic_0001>

<llo_original>
// kernel: tpu_custom_call.1
$region0: #{tpu_custom_call.1}
  #allocation0 [shape = 'u32[]', space=smem, size = 0x4, offset = 0x4, fixed_abs, tag = 'smem constant byte address 0x4 - core index']
  #allocation1 [shape = 'u32[144,128]{1,0:T(1,128)}', space=vmem, size = 0x12000, scoped, tag = 'internal scratch']
  #allocation2 [shape = 'f32[304,4]{1,0:T(8,128)}', space=vmem, size = 0x26000, scoped, tag = 'scratch operand']
  %s0 = inlined_call_operand.vmem [shape: f32[608,4], index: 0, kind: input, shape index: {}]
  %s1 = inlined_call_operand.vmem [shape: bf16[36,4], index: 1, kind: input, shape index: {}]
  %s2 = inlined_call_operand.vmem [shape: bf16[36,4], index: 2, kind: input, shape index: {}]
  %s3 = inlined_call_operand.vmem [shape: f32[1,4], index: 3, kind: input, shape index: {}]
  %s4 = inlined_call_operand.vmem [shape: f32[512,4], index: 4, kind: output, shape index: {}]
  %s5 = sld [smem:[#allocation0]]
  $region49: #{tpu_custom_call.1} parent=0
    _
  %s7 = ssub.s32 1, %s5
  %s8 = scalar_select 0, %s7, %s5
  loop: start=0, step=1, limit=4
  $region2: #{tpu_custom_call.1} parent=0 // loop_pre_header
    _
  $region3: #{tpu_custom_call.1} parent=0 // loop_header
    %s10 = sphi 0, %s14
    %p11 = scmp.ge.s32.totalorder %s10, 4
    %s20 = sphi 0, %s22
    %s23 = sphi 0, %s20
    %s24 = sphi 0, %s23
    %s40 = sphi 0, %s24
    %s44 = sphi 0, %s44
    %s46 = sphi 0, %s44
    %s47 = sphi 0, %s46
    %s61 = sphi 0, %s47
    %s65 = sphi 0, %s65
    %s67 = sphi 0, %s65
    %s68 = sphi 0, %s67
    %s82 = sphi 0, %s68
    %s86 = sphi 0, %s86
    %s88 = sphi 0, %s86
    %s89 = sphi 0, %s88
    %s103 = sphi 0, %s89
    %s109 = sphi 0, %s111
    %s112 = sphi 0, %s109
    %s113 = sphi 0, %s112
    %s129 = sphi 0, %s113
  $region4: #{tpu_custom_call.1} parent=0 // loop_header_branch
    %13 = sbr.rel (%p11) target = $region8
  $region5: #{tpu_custom_call.1} parent=0 // loop_body
    %s15 = ssub.s32 %s10, 1
    %s16 = ssub.s32 %s10, 2
    %s17 = sadd.s32 %s10, 1
    %s18 = ssub.s32 %s10, %s17
    %p19 = scmp.eq.s32.totalorder %s18, 0
    %s21 = sadd.s32 %s20, 1
    %s22 = scalar_select %p19, %s20, %s21
    %p25 = pneg %p19
    %p26 = scmp.eq.s32.totalorder %s10, 1
    %p27 = por %p25, %p26
    %p28 = scmp.ne.s32.totalorder %s20, %s23
    %p29 = scmp.eq.s32.totalorder %s10, 0
    %p30 = por %p28, %p29
    %p31 = scmp.ne.s32.totalorder %s20, %s23
    %p32 = scmp.eq.s32.totalorder %s15, 1
    %p33 = por %p31, %p32
    %p34 = scmp.ne.s32.totalorder %s23, %s24
    %p35 = scmp.eq.s32.totalorder %s15, 0
    %p36 = por %p34, %p35
    %p37 = scmp.ne.s32.totalorder %s23, %s24
    %p38 = scmp.eq.s32.totalorder %s16, 1
    %p39 = por %p37, %p38
    %p41 = scmp.ne.s32.totalorder %s24, %s40
    %p42 = scmp.eq.s32.totalorder %s16, 0
    %p43 = por %p41, %p42
    %s45 = sadd.s32 %s44, 1
    %p48 = scmp.eq.s32.totalorder %s10, 1
    %p49 = scmp.ne.s32.totalorder %s44, %s46
    %p50 = scmp.eq.s32.totalorder %s10, 0
    %p51 = por %p49, %p50
    %p52 = scmp.ne.s32.totalorder %s44, %s46
    %p53 = scmp.eq.s32.totalorder %s15, 1
    %p54 = por %p52, %p53
    %p55 = scmp.ne.s32.totalorder %s46, %s47
    %p56 = scmp.eq.s32.totalorder %s15, 0
    %p57 = por %p55, %p56
    %p58 = scmp.ne.s32.totalorder %s46, %s47
    %p59 = scmp.eq.s32.totalorder %s16, 1
    %p60 = por %p58, %p59
    %p62 = scmp.ne.s32.totalorder %s47, %s61
    %p63 = scmp.eq.s32.totalorder %s16, 0
    %p64 = por %p62, %p63
    %s66 = sadd.s32 %s65, 1
    %p69 = scmp.eq.s32.totalorder %s10, 1
    %p70 = scmp.ne.s32.totalorder %s65, %s67
    %p71 = scmp.eq.s32.totalorder %s10, 0
    %p72 = por %p70, %p71
    %p73 = scmp.ne.s32.totalorder %s65, %s67
    %p74 = scmp.eq.s32.totalorder %s15, 1
    %p75 = por %p73, %p74
    %p76 = scmp.ne.s32.totalorder %s67, %s68
    %p77 = scmp.eq.s32.totalorder %s15, 0
    %p78 = por %p76, %p77
    %p79 = scmp.ne.s32.totalorder %s67, %s68
    %p80 = scmp.eq.s32.totalorder %s16, 1
    %p81 = por %p79, %p80
    %p83 = scmp.ne.s32.totalorder %s68, %s82
    %p84 = scmp.eq.s32.totalorder %s16, 0
    %p85 = por %p83, %p84
    %s87 = sadd.s32 %s86, 1
    %p90 = scmp.eq.s32.totalorder %s10, 1
    %p91 = scmp.ne.s32.totalorder %s86, %s88
    %p92 = scmp.eq.s32.totalorder %s10, 0
    %p93 = por %p91, %p92
    %p94 = scmp.ne.s32.totalorder %s86, %s88
    %p95 = scmp.eq.s32.totalorder %s15, 1
    %p96 = por %p94, %p95
    %p97 = scmp.ne.s32.totalorder %s88, %s89
    %p98 = scmp.eq.s32.totalorder %s15, 0
    %p99 = por %p97, %p98
    %p100 = scmp.ne.s32.totalorder %s88, %s89
    %p101 = scmp.eq.s32.totalorder %s16, 1
    %p102 = por %p100, %p101
    %p104 = scmp.ne.s32.totalorder %s89, %s103
    %p105 = scmp.eq.s32.totalorder %s16, 0
    %p106 = por %p104, %p105
    %s107 = ssub.s32 %s10, %s17
    %p108 = scmp.eq.s32.totalorder %s107, 0
    %s110 = sadd.s32 %s109, 1
    %s111 = scalar_select %p108, %s109, %s110
    %p114 = pneg %p108
    %p115 = scmp.eq.s32.totalorder %s10, 1
    %p116 = por %p114, %p115
    %p117 = scmp.ne.s32.totalorder %s109, %s112
    %p118 = scmp.eq.s32.totalorder %s10, 0
    %p119 = por %p117, %p118
    %p120 = scmp.ne.s32.totalorder %s109, %s112
    %p121 = scmp.eq.s32.totalorder %s15, 1
    %p122 = por %p120, %p121
    %p123 = scmp.ne.s32.totalorder %s112, %s113
    %p124 = scmp.eq.s32.totalorder %s15, 0
    %p125 = por %p123, %p124
    %p126 = scmp.ne.s32.totalorder %s112, %s113
    %p127 = scmp.eq.s32.totalorder %s16, 1
    %p128 = por %p126, %p127
    %p130 = scmp.ne.s32.totalorder %s113, %s129
    %p131 = scmp.eq.s32.totalorder %s16, 0
    %p132 = por %p130, %p131
    %p133 = scmp.le.s32.totalorder 1, %s10
    %p134 = scmp.lt.s32.totalorder %s10, 3
    %p135 = pnand %p133, %p134
    %p136 = pneg %p135
    // Predicated region
    $region9: #{tpu_custom_call.1} parent=5 // pred_check
      _
    $region10: #{tpu_custom_call.1} parent=5 // pred_check_branch
      %138 = sbr.rel (%p135) target = $region12
    $region11: #{tpu_custom_call.1} parent=5 // pred_region
      %s139 = ssub.s32 %s10, 1
      // Predicated region
      $region13: #{tpu_custom_call.1} parent=11 // pred_check
        %p140 = pneg %p57
      $region14: #{tpu_custom_call.1} parent=11 // pred_check_branch
        %142 = sbr.rel (%p140) target = $region16
      $region15: #{tpu_custom_call.1} parent=11 // pred_region
        _
      $region16: #{tpu_custom_call.1} parent=11 // pred_fallthru
        _
      // Predicated region
      $region17: #{tpu_custom_call.1} parent=11 // pred_check
        %p143 = pneg %p78
      $region18: #{tpu_custom_call.1} parent=11 // pred_check_branch
        %145 = sbr.rel (%p143) target = $region20
      $region19: #{tpu_custom_call.1} parent=11 // pred_region
        _
      $region20: #{tpu_custom_call.1} parent=11 // pred_fallthru
        _
      // Predicated region
      $region21: #{tpu_custom_call.1} parent=11 // pred_check
        %p146 = pneg %p99
      $region22: #{tpu_custom_call.1} parent=11 // pred_check_branch
        %148 = sbr.rel (%p146) target = $region24
      $region23: #{tpu_custom_call.1} parent=11 // pred_region
        _
      $region24: #{tpu_custom_call.1} parent=11 // pred_fallthru
        _
    $region12: #{tpu_custom_call.1} parent=5 // pred_fallthru
      _
    %p149 = scmp.lt.s32.totalorder %s10, 2
    // Predicated region
    $region25: #{tpu_custom_call.1} parent=5 // pred_check
      %p150 = pneg %p149
    $region26: #{tpu_custom_call.1} parent=5 // pred_check_branch
      %152 = sbr.rel (%p150) target = $region28
    $region27: #{tpu_custom_call.1} parent=5 // pred_region
      // Predicated region
      $region29: #{tpu_custom_call.1} parent=27 // pred_check
        %p153 = pneg %p30
      $region30: #{tpu_custom_call.1} parent=27 // pred_check_branch
        %155 = sbr.rel (%p153) target = $region32
      $region31: #{tpu_custom_call.1} parent=27 // pred_region
        %s156 = smul.u32 38, %s10
        %p157 = scmp.lt.s32.totalorder %s156, 75
        %s158 = scalar_select %p157, %s156, 75
        %s159 = smul.addr %s158, 8
        %s160 = scalar_lea.vmem %s0, %s159
        %s161 = smul.u32 38, %s10
      $region32: #{tpu_custom_call.1} parent=27 // pred_fallthru
        _
    $region28: #{tpu_custom_call.1} parent=5 // pred_fallthru
      _
    %p162 = scmp.le.s32.totalorder 1, %s10
    %p163 = scmp.lt.s32.totalorder %s10, 3
    %p164 = pnand %p162, %p163
    %p165 = pneg %p164
    // Predicated region
    $region33: #{tpu_custom_call.1} parent=5 // pred_check
      _
    $region34: #{tpu_custom_call.1} parent=5 // pred_check_branch
      %167 = sbr.rel (%p164) target = $region36
    $region35: #{tpu_custom_call.1} parent=5 // pred_region
      %s168 = ssub.s32 %s10, 1
      %s169 = smul.u32 38, %s15
      %p170 = scmp.lt.s32.totalorder %s169, 75
      %s171 = scalar_select %p170, %s169, 75
      %s172 = smul.addr %s171, 8
      %s173 = scalar_lea.vmem %s0, %s172
      %p174 = pneg %p36
      %p175 = pneg %p33
      %p176 = pneg %p57
      %p177 = pneg %p54
      %p178 = pneg %p78
      %p179 = pneg %p75
      %p180 = pneg %p99
      %p181 = pneg %p96
      %p182 = pneg %p125
      %p183 = pneg %p122
      %s184 = smul.u32 32, %s15
      %p185 = scmp.lt.s32.totalorder %s184, 63
      %s186 = scalar_select %p185, %s184, 63
      %s187 = smul.addr %s186, 8
      %s188 = scalar_lea.vmem %s4, %s187
      %s189 = smul.u32 38, %s15
      %p190 = scmp.lt.s32.totalorder %s189, 75
      %s191 = scalar_select %p190, %s189, 75
      %s192 = smul.addr %s191, 8
      %s193 = scalar_lea.vmem %s0, %s192
      %s194 = smul.u32 38, %s15
      %s195 = smul.u32 32, %s15
      %p196 = scmp.lt.s32.totalorder %s195, 63
      %s197 = scalar_select %p196, %s195, 63
      %s198 = smul.addr %s197, 8
      %s199 = scalar_lea.vmem %s4, %s198
      %s200 = smul.u32 32, %s15
      %v202 = vlaneseq
      %v203 = vshrl.u32 %v202, 7
      %v204 = vadd.s32 %v203, 8
      %v205 = vadd.s32 %v203, 16
      %v206 = vadd.s32 %v203, 24
      %v207 = vadd.s32 %v203, 32
      %v208 = vadd.s32 %v203, 40
      %v209 = vadd.s32 %v203, 48
      %v210 = vadd.s32 %v203, 56
      %v211 = vadd.s32 %v203, 64
      %v212 = vadd.s32 %v203, 72
      %v213 = vadd.s32 %v203, 80
      %v214 = vadd.s32 %v203, 88
      %v215 = vadd.s32 %v203, 96
      %v216 = vadd.s32 %v203, 104
      %v217 = vadd.s32 %v203, 112
      %v218 = vadd.s32 %v203, 120
      %v219 = vadd.s32 %v203, 128
      %v220 = vadd.s32 %v203, 136
      %v221 = vadd.s32 %v203, 144
      %v222 = vadd.s32 %v203, 152
      %v223 = vadd.s32 %v203, 160
      %v224 = vadd.s32 %v203, 168
      %v225 = vadd.s32 %v203, 176
      %v226 = vadd.s32 %v203, 184
      %v227 = vadd.s32 %v203, 192
      %v228 = vadd.s32 %v203, 200
      %v229 = vadd.s32 %v203, 208
      %v230 = vadd.s32 %v203, 216
      %v231 = vadd.s32 %v203, 224
      %v232 = vadd.s32 %v203, 232
      %v233 = vadd.s32 %v203, 240
      %v234 = vadd.s32 %v203, 248
      %vm235 = vcmp.lt.s32.totalorder %v203, 0
      %v236 = vsub.s32 0, %v203
      %v237 = vsel %vm235, %v236, %v203
      %v238 = vshrl.u32 %v237, 4
      %v239 = vand.u32 %v237, 15
      %v240 = vsub.s32 0, %v239
      %v241 = vsel %vm235, %v240, %v239
      %vm242 = vcmp.lt.s32.totalorder %v204, 0
      %v243 = vsub.s32 0, %v204
      %v244 = vsel %vm242, %v243, %v204
      %v245 = vshrl.u32 %v244, 4
      %v246 = vand.u32 %v244, 15
      %v247 = vsub.s32 0, %v246
      %v248 = vsel %vm242, %v247, %v246
      %vm249 = vcmp.lt.s32.totalorder %v205, 0
      %v250 = vsub.s32 0, %v205
      %v251 = vsel %vm249, %v250, %v205
      %v252 = vshrl.u32 %v251, 4
      %v253 = vand.u32 %v251, 15
      %v254 = vsub.s32 0, %v253
      %v255 = vsel %vm249, %v254, %v253
      %vm256 = vcmp.lt.s32.totalorder %v206, 0
      %v257 = vsub.s32 0, %v206
      %v258 = vsel %vm256, %v257, %v206
      %v259 = vshrl.u32 %v258, 4
      %v260 = vand.u32 %v258, 15
      %v261 = vsub.s32 0, %v260
      %v262 = vsel %vm256, %v261, %v260
      %vm263 = vcmp.lt.s32.totalorder %v207, 0
      %v264 = vsub.s32 0, %v207
      %v265 = vsel %vm263, %v264, %v207
      %v266 = vshrl.u32 %v265, 4
      %v267 = vand.u32 %v265, 15
      %v268 = vsub.s32 0, %v267
      %v269 = vsel %vm263, %v268, %v267
      %vm270 = vcmp.lt.s32.totalorder %v208, 0
      %v271 = vsub.s32 0, %v208
      %v272 = vsel %vm270, %v271, %v208
      %v273 = vshrl.u32 %v272, 4
      %v274 = vand.u32 %v272, 15
      %v275 = vsub.s32 0, %v274
      %v276 = vsel %vm270, %v275, %v274
      %vm277 = vcmp.lt.s32.totalorder %v209, 0
      %v278 = vsub.s32 0, %v209
      %v279 = vsel %vm277, %v278, %v209
      %v280 = vshrl.u32 %v279, 4
      %v281 = vand.u32 %v279, 15
      %v282 = vsub.s32 0, %v281
      %v283 = vsel %vm277, %v282, %v281
      %vm284 = vcmp.lt.s32.totalorder %v210, 0
      %v285 = vsub.s32 0, %v210
      %v286 = vsel %vm284, %v285, %v210
      %v287 = vshrl.u32 %v286, 4
      %v288 = vand.u32 %v286, 15
      %v289 = vsub.s32 0, %v288
      %v290 = vsel %vm284, %v289, %v288
      %vm291 = vcmp.lt.s32.totalorder %v211, 0
      %v292 = vsub.s32 0, %v211
      %v293 = vsel %vm291, %v292, %v211
      %v294 = vshrl.u32 %v293, 4
      %v295 = vand.u32 %v293, 15
      %v296 = vsub.s32 0, %v295
      %v297 = vsel %vm291, %v296, %v295
      %vm298 = vcmp.lt.s32.totalorder %v212, 0
      %v299 = vsub.s32 0, %v212
      %v300 = vsel %vm298, %v299, %v212
      %v301 = vshrl.u32 %v300, 4
      %v302 = vand.u32 %v300, 15
      %v303 = vsub.s32 0, %v302
      %v304 = vsel %vm298, %v303, %v302
      %vm305 = vcmp.lt.s32.totalorder %v213, 0
      %v306 = vsub.s32 0, %v213
      %v307 = vsel %vm305, %v306, %v213
      %v308 = vshrl.u32 %v307, 4
      %v309 = vand.u32 %v307, 15
      %v310 = vsub.s32 0, %v309
      %v311 = vsel %vm305, %v310, %v309
      %vm312 = vcmp.lt.s32.totalorder %v214, 0
      %v313 = vsub.s32 0, %v214
      %v314 = vsel %vm312, %v313, %v214
      %v315 = vshrl.u32 %v314, 4
      %v316 = vand.u32 %v314, 15
      %v317 = vsub.s32 0, %v316
      %v318 = vsel %vm312, %v317, %v316
      %vm319 = vcmp.lt.s32.totalorder %v215, 0
      %v320 = vsub.s32 0, %v215
      %v321 = vsel %vm319, %v320, %v215
      %v322 = vshrl.u32 %v321, 4
      %v323 = vand.u32 %v321, 15
      %v324 = vsub.s32 0, %v323
      %v325 = vsel %vm319, %v324, %v323
      %vm326 = vcmp.lt.s32.totalorder %v216, 0
      %v327 = vsub.s32 0, %v216
      %v328 = vsel %vm326, %v327, %v216
      %v329 = vshrl.u32 %v328, 4
      %v330 = vand.u32 %v328, 15
      %v331 = vsub.s32 0, %v330
      %v332 = vsel %vm326, %v331, %v330
      %vm333 = vcmp.lt.s32.totalorder %v217, 0
      %v334 = vsub.s32 0, %v217
      %v335 = vsel %vm333, %v334, %v217
      %v336 = vshrl.u32 %v335, 4
      %v337 = vand.u32 %v335, 15
      %v338 = vsub.s32 0, %v337
      %v339 = vsel %vm333, %v338, %v337
      %vm340 = vcmp.lt.s32.totalorder %v218, 0
      %v341 = vsub.s32 0, %v218
      %v342 = vsel %vm340, %v341, %v218
      %v343 = vshrl.u32 %v342, 4
      %v344 = vand.u32 %v342, 15
      %v345 = vsub.s32 0, %v344
      %v346 = vsel %vm340, %v345, %v344
      %vm347 = vcmp.lt.s32.totalorder %v219, 0
      %v348 = vsub.s32 0, %v219
      %v349 = vsel %vm347, %v348, %v219
      %v350 = vshrl.u32 %v349, 4
      %v351 = vand.u32 %v349, 15
      %v352 = vsub.s32 0, %v351
      %v353 = vsel %vm347, %v352, %v351
      %vm354 = vcmp.lt.s32.totalorder %v220, 0
      %v355 = vsub.s32 0, %v220
      %v356 = vsel %vm354, %v355, %v220
      %v357 = vshrl.u32 %v356, 4
      %v358 = vand.u32 %v356, 15
      %v359 = vsub.s32 0, %v358
      %v360 = vsel %vm354, %v359, %v358
      %vm361 = vcmp.lt.s32.totalorder %v221, 0
      %v362 = vsub.s32 0, %v221
      %v363 = vsel %vm361, %v362, %v221
      %v364 = vshrl.u32 %v363, 4
      %v365 = vand.u32 %v363, 15
      %v366 = vsub.s32 0, %v365
      %v367 = vsel %vm361, %v366, %v365
      %vm368 = vcmp.lt.s32.totalorder %v222, 0
      %v369 = vsub.s32 0, %v222
      %v370 = vsel %vm368, %v369, %v222
      %v371 = vshrl.u32 %v370, 4
      %v372 = vand.u32 %v370, 15
      %v373 = vsub.s32 0, %v372
      %v374 = vsel %vm368, %v373, %v372
      %vm375 = vcmp.lt.s32.totalorder %v223, 0
      %v376 = vsub.s32 0, %v223
      %v377 = vsel %vm375, %v376, %v223
      %v378 = vshrl.u32 %v377, 4
      %v379 = vand.u32 %v377, 15
      %v380 = vsub.s32 0, %v379
      %v381 = vsel %vm375, %v380, %v379
      %vm382 = vcmp.lt.s32.totalorder %v224, 0
      %v383 = vsub.s32 0, %v224
      %v384 = vsel %vm382, %v383, %v224
      %v385 = vshrl.u32 %v384, 4
      %v386 = vand.u32 %v384, 15
      %v387 = vsub.s32 0, %v386
      %v388 = vsel %vm382, %v387, %v386
      %vm389 = vcmp.lt.s32.totalorder %v225, 0
      %v390 = vsub.s32 0, %v225
      %v391 = vsel %vm389, %v390, %v225
      %v392 = vshrl.u32 %v391, 4
      %v393 = vand.u32 %v391, 15
      %v394 = vsub.s32 0, %v393
      %v395 = vsel %vm389, %v394, %v393
      %vm396 = vcmp.lt.s32.totalorder %v226, 0
      %v397 = vsub.s32 0, %v226
      %v398 = vsel %vm396, %v397, %v226
      %v399 = vshrl.u32 %v398, 4
      %v400 = vand.u32 %v398, 15
      %v401 = vsub.s32 0, %v400
      %v402 = vsel %vm396, %v401, %v400
      %vm403 = vcmp.lt.s32.totalorder %v227, 0
      %v404 = vsub.s32 0, %v227
      %v405 = vsel %vm403, %v404, %v227
      %v406 = vshrl.u32 %v405, 4
      %v407 = vand.u32 %v405, 15
      %v408 = vsub.s32 0, %v407
      %v409 = vsel %vm403, %v408, %v407
      %vm410 = vcmp.lt.s32.totalorder %v228, 0
      %v411 = vsub.s32 0, %v228
      %v412 = vsel %vm410, %v411, %v228
      %v413 = vshrl.u32 %v412, 4
      %v414 = vand.u32 %v412, 15
      %v415 = vsub.s32 0, %v414
      %v416 = vsel %vm410, %v415, %v414
      %vm417 = vcmp.lt.s32.totalorder %v229, 0
      %v418 = vsub.s32 0, %v229
      %v419 = vsel %vm417, %v418, %v229
      %v420 = vshrl.u32 %v419, 4
      %v421 = vand.u32 %v419, 15
      %v422 = vsub.s32 0, %v421
      %v423 = vsel %vm417, %v422, %v421
      %vm424 = vcmp.lt.s32.totalorder %v230, 0
      %v425 = vsub.s32 0, %v230
      %v426 = vsel %vm424, %v425, %v230
      %v427 = vshrl.u32 %v426, 4
      %v428 = vand.u32 %v426, 15
      %v429 = vsub.s32 0, %v428
      %v430 = vsel %vm424, %v429, %v428
      %vm431 = vcmp.lt.s32.totalorder %v231, 0
      %v432 = vsub.s32 0, %v231
      %v433 = vsel %vm431, %v432, %v231
      %v434 = vshrl.u32 %v433, 4
      %v435 = vand.u32 %v433, 15
      %v436 = vsub.s32 0, %v435
      %v437 = vsel %vm431, %v436, %v435
      %vm438 = vcmp.lt.s32.totalorder %v232, 0
      %v439 = vsub.s32 0, %v232
      %v440 = vsel %vm438, %v439, %v232
      %v441 = vshrl.u32 %v440, 4
      %v442 = vand.u32 %v440, 15
      %v443 = vsub.s32 0, %v442
      %v444 = vsel %vm438, %v443, %v442
      %vm445 = vcmp.lt.s32.totalorder %v233, 0
      %v446 = vsub.s32 0, %v233
      %v447 = vsel %vm445, %v446, %v233
      %v448 = vshrl.u32 %v447, 4
      %v449 = vand.u32 %v447, 15
      %v450 = vsub.s32 0, %v449
      %v451 = vsel %vm445, %v450, %v449
      %vm452 = vcmp.lt.s32.totalorder %v234, 0
      %v453 = vsub.s32 0, %v234
      %v454 = vsel %vm452, %v453, %v234
      %v455 = vshrl.u32 %v454, 4
      %v456 = vand.u32 %v454, 15
      %v457 = vsub.s32 0, %v456
      %v458 = vsel %vm452, %v457, %v456
      %vm459 = vcmp.ne.s32.totalorder %v241, 0
      %vm460 = vcmp.ne.s32.totalorder %v248, 0
      %vm461 = vcmp.ne.s32.totalorder %v255, 0
      %vm462 = vcmp.ne.s32.totalorder %v262, 0
      %vm463 = vcmp.ne.s32.totalorder %v269, 0
      %vm464 = vcmp.ne.s32.totalorder %v276, 0
      %vm465 = vcmp.ne.s32.totalorder %v283, 0
      %vm466 = vcmp.ne.s32.totalorder %v290, 0
      %vm467 = vcmp.ne.s32.totalorder %v297, 0
      %vm468 = vcmp.ne.s32.totalorder %v304, 0
      %vm469 = vcmp.ne.s32.totalorder %v311, 0
      %vm470 = vcmp.ne.s32.totalorder %v318, 0
      %vm471 = vcmp.ne.s32.totalorder %v325, 0
      %vm472 = vcmp.ne.s32.totalorder %v332, 0
      %vm473 = vcmp.ne.s32.totalorder %v339, 0
      %vm474 = vcmp.ne.s32.totalorder %v346, 0
      %vm475 = vcmp.ne.s32.totalorder %v353, 0
      %vm476 = vcmp.ne.s32.totalorder %v360, 0
      %vm477 = vcmp.ne.s32.totalorder %v367, 0
      %vm478 = vcmp.ne.s32.totalorder %v374, 0
      %vm479 = vcmp.ne.s32.totalorder %v381, 0
      %vm480 = vcmp.ne.s32.totalorder %v388, 0
      %vm481 = vcmp.ne.s32.totalorder %v395, 0
      %vm482 = vcmp.ne.s32.totalorder %v402, 0
      %vm483 = vcmp.ne.s32.totalorder %v409, 0
      %vm484 = vcmp.ne.s32.totalorder %v416, 0
      %vm485 = vcmp.ne.s32.totalorder %v423, 0
      %vm486 = vcmp.ne.s32.totalorder %v430, 0
      %vm487 = vcmp.ne.s32.totalorder %v437, 0
      %vm488 = vcmp.ne.s32.totalorder %v444, 0
      %vm489 = vcmp.ne.s32.totalorder %v451, 0
      %vm490 = vcmp.ne.s32.totalorder %v458, 0
      %vm491 = vcmp.lt.s32.totalorder %v241, 0
      %vm492 = vcmp.lt.s32.totalorder %v248, 0
      %vm493 = vcmp.lt.s32.totalorder %v255, 0
      %vm494 = vcmp.lt.s32.totalorder %v262, 0
      %vm495 = vcmp.lt.s32.totalorder %v269, 0
      %vm496 = vcmp.lt.s32.totalorder %v276, 0
      %vm497 = vcmp.lt.s32.totalorder %v283, 0
      %vm498 = vcmp.lt.s32.totalorder %v290, 0
      %vm499 = vcmp.lt.s32.totalorder %v297, 0
      %vm500 = vcmp.lt.s32.totalorder %v304, 0
      %vm501 = vcmp.lt.s32.totalorder %v311, 0
      %vm502 = vcmp.lt.s32.totalorder %v318, 0
      %vm503 = vcmp.lt.s32.totalorder %v325, 0
      %vm504 = vcmp.lt.s32.totalorder %v332, 0
      %vm505 = vcmp.lt.s32.totalorder %v339, 0
      %vm506 = vcmp.lt.s32.totalorder %v346, 0
      %vm507 = vcmp.lt.s32.totalorder %v353, 0
      %vm508 = vcmp.lt.s32.totalorder %v360, 0
      %vm509 = vcmp.lt.s32.totalorder %v367, 0
      %vm510 = vcmp.lt.s32.totalorder %v374, 0
      %vm511 = vcmp.lt.s32.totalorder %v381, 0
      %vm512 = vcmp.lt.s32.totalorder %v388, 0
      %vm513 = vcmp.lt.s32.totalorder %v395, 0
      %vm514 = vcmp.lt.s32.totalorder %v402, 0
      %vm515 = vcmp.lt.s32.totalorder %v409, 0
      %vm516 = vcmp.lt.s32.totalorder %v416, 0
      %vm517 = vcmp.lt.s32.totalorder %v423, 0
      %vm518 = vcmp.lt.s32.totalorder %v430, 0
      %vm519 = vcmp.lt.s32.totalorder %v437, 0
      %vm520 = vcmp.lt.s32.totalorder %v444, 0
      %vm521 = vcmp.lt.s32.totalorder %v451, 0
      %vm522 = vcmp.lt.s32.totalorder %v458, 0
      %vm523 = vmand %vm491, %vm459
      %vm524 = vmand %vm492, %vm460
      %vm525 = vmand %vm493, %vm461
      %vm526 = vmand %vm494, %vm462
      %vm527 = vmand %vm495, %vm463
      %vm528 = vmand %vm496, %vm464
      %vm529 = vmand %vm497, %vm465
      %vm530 = vmand %vm498, %vm466
      %vm531 = vmand %vm499, %vm467
      %vm532 = vmand %vm500, %vm468
      %vm533 = vmand %vm501, %vm469
      %vm534 = vmand %vm502, %vm470
      %vm535 = vmand %vm503, %vm471
      %vm536 = vmand %vm504, %vm472
      %vm537 = vmand %vm505, %vm473
      %vm538 = vmand %vm506, %vm474
      %vm539 = vmand %vm507, %vm475
      %vm540 = vmand %vm508, %vm476
      %vm541 = vmand %vm509, %vm477
      %vm542 = vmand %vm510, %vm478
      %vm543 = vmand %vm511, %vm479
      %vm544 = vmand %vm512, %vm480
      %vm545 = vmand %vm513, %vm481
      %vm546 = vmand %vm514, %vm482
      %vm547 = vmand %vm515, %vm483
      %vm548 = vmand %vm516, %vm484
      %vm549 = vmand %vm517, %vm485
      %vm550 = vmand %vm518, %vm486
      %vm551 = vmand %vm519, %vm487
      %vm552 = vmand %vm520, %vm488
      %vm553 = vmand %vm521, %vm489
      %vm554 = vmand %vm522, %vm490
      %v555 = vadd.s32 %v241, 16
      %v556 = vadd.s32 %v248, 16
      %v557 = vadd.s32 %v255, 16
      %v558 = vadd.s32 %v262, 16
      %v559 = vadd.s32 %v269, 16
      %v560 = vadd.s32 %v276, 16
      %v561 = vadd.s32 %v283, 16
      %v562 = vadd.s32 %v290, 16
      %v563 = vadd.s32 %v297, 16
      %v564 = vadd.s32 %v304, 16
      %v565 = vadd.s32 %v311, 16
      %v566 = vadd.s32 %v318, 16
      %v567 = vadd.s32 %v325, 16
      %v568 = vadd.s32 %v332, 16
      %v569 = vadd.s32 %v339, 16
      %v570 = vadd.s32 %v346, 16
      %v571 = vadd.s32 %v353, 16
      %v572 = vadd.s32 %v360, 16
      %v573 = vadd.s32 %v367, 16
      %v574 = vadd.s32 %v374, 16
      %v575 = vadd.s32 %v381, 16
      %v576 = vadd.s32 %v388, 16
      %v577 = vadd.s32 %v395, 16
      %v578 = vadd.s32 %v402, 16
      %v579 = vadd.s32 %v409, 16
      %v580 = vadd.s32 %v416, 16
      %v581 = vadd.s32 %v423, 16
      %v582 = vadd.s32 %v430, 16
      %v583 = vadd.s32 %v437, 16
      %v584 = vadd.s32 %v444, 16
      %v585 = vadd.s32 %v451, 16
      %v586 = vadd.s32 %v458, 16
      %v587 = vsel %vm523, %v555, %v241
      %v588 = vsel %vm524, %v556, %v248
      %v589 = vsel %vm525, %v557, %v255
      %v590 = vsel %vm526, %v558, %v262
      %v591 = vsel %vm527, %v559, %v269
      %v592 = vsel %vm528, %v560, %v276
      %v593 = vsel %vm529, %v561, %v283
      %v594 = vsel %vm530, %v562, %v290
      %v595 = vsel %vm531, %v563, %v297
      %v596 = vsel %vm532, %v564, %v304
      %v597 = vsel %vm533, %v565, %v311
      %v598 = vsel %vm534, %v566, %v318
      %v599 = vsel %vm535, %v567, %v325
      %v600 = vsel %vm536, %v568, %v332
      %v601 = vsel %vm537, %v569, %v339
      %v602 = vsel %vm538, %v570, %v346
      %v603 = vsel %vm539, %v571, %v353
      %v604 = vsel %vm540, %v572, %v360
      %v605 = vsel %vm541, %v573, %v367
      %v606 = vsel %vm542, %v574, %v374
      %v607 = vsel %vm543, %v575, %v381
      %v608 = vsel %vm544, %v576, %v388
      %v609 = vsel %vm545, %v577, %v395
      %v610 = vsel %vm546, %v578, %v402
      %v611 = vsel %vm547, %v579, %v409
      %v612 = vsel %vm548, %v580, %v416
      %v613 = vsel %vm549, %v581, %v423
      %v614 = vsel %vm550, %v582, %v430
      %v615 = vsel %vm551, %v583, %v437
      %v616 = vsel %vm552, %v584, %v444
      %v617 = vsel %vm553, %v585, %v451
      %v618 = vsel %vm554, %v586, %v458
      %vm619 = vcmp.gt.s32.totalorder %v587, 0
      %vm620 = vcmp.gt.s32.totalorder %v588, 0
      %vm621 = vcmp.gt.s32.totalorder %v589, 0
      %vm622 = vcmp.gt.s32.totalorder %v590, 0
      %vm623 = vcmp.gt.s32.totalorder %v591, 0
      %vm624 = vcmp.gt.s32.totalorder %v592, 0
      %vm625 = vcmp.gt.s32.totalorder %v593, 0
      %vm626 = vcmp.gt.s32.totalorder %v594, 0
      %vm627 = vcmp.gt.s32.totalorder %v595, 0
      %vm628 = vcmp.gt.s32.totalorder %v596, 0
      %vm629 = vcmp.gt.s32.totalorder %v597, 0
      %vm630 = vcmp.gt.s32.totalorder %v598, 0
      %vm631 = vcmp.gt.s32.totalorder %v599, 0
      %vm632 = vcmp.gt.s32.totalorder %v600, 0
      %vm633 = vcmp.gt.s32.totalorder %v601, 0
      %vm634 = vcmp.gt.s32.totalorder %v602, 0
      %vm635 = vcmp.gt.s32.totalorder %v603, 0
      %vm636 = vcmp.gt.s32.totalorder %v604, 0
      %vm637 = vcmp.gt.s32.totalorder %v605, 0
      %vm638 = vcmp.gt.s32.totalorder %v606, 0
      %vm639 = vcmp.gt.s32.totalorder %v607, 0
      %vm640 = vcmp.gt.s32.totalorder %v608, 0
      %vm641 = vcmp.gt.s32.totalorder %v609, 0
      %vm642 = vcmp.gt.s32.totalorder %v610, 0
      %vm643 = vcmp.gt.s32.totalorder %v611, 0
      %vm644 = vcmp.gt.s32.totalorder %v612, 0
      %vm645 = vcmp.gt.s32.totalorder %v613, 0
      %vm646 = vcmp.gt.s32.totalorder %v614, 0
      %vm647 = vcmp.gt.s32.totalorder %v615, 0
      %vm648 = vcmp.gt.s32.totalorder %v616, 0
      %vm649 = vcmp.gt.s32.totalorder %v617, 0
      %vm650 = vcmp.gt.s32.totalorder %v618, 0
      %vm651 = vcmp.lt.s32.totalorder %v587, 15
      %vm652 = vcmp.lt.s32.totalorder %v588, 15
      %vm653 = vcmp.lt.s32.totalorder %v589, 15
      %vm654 = vcmp.lt.s32.totalorder %v590, 15
      %vm655 = vcmp.lt.s32.totalorder %v591, 15
      %vm656 = vcmp.lt.s32.totalorder %v592, 15
      %vm657 = vcmp.lt.s32.totalorder %v593, 15
      %vm658 = vcmp.lt.s32.totalorder %v594, 15
      %vm659 = vcmp.lt.s32.totalorder %v595, 15
      %vm660 = vcmp.lt.s32.totalorder %v596, 15
      %vm661 = vcmp.lt.s32.totalorder %v597, 15
      %vm662 = vcmp.lt.s32.totalorder %v598, 15
      %vm663 = vcmp.lt.s32.totalorder %v599, 15
      %vm664 = vcmp.lt.s32.totalorder %v600, 15
      %vm665 = vcmp.lt.s32.totalorder %v601, 15
      %vm666 = vcmp.lt.s32.totalorder %v602, 15
      %vm667 = vcmp.lt.s32.totalorder %v603, 15
      %vm668 = vcmp.lt.s32.totalorder %v604, 15
      %vm669 = vcmp.lt.s32.totalorder %v605, 15
      %vm670 = vcmp.lt.s32.totalorder %v606, 15
      %vm671 = vcmp.lt.s32.totalorder %v607, 15
      %vm672 = vcmp.lt.s32.totalorder %v608, 15
      %vm673 = vcmp.lt.s32.totalorder %v609, 15
      %vm674 = vcmp.lt.s32.totalorder %v610, 15
      %vm675 = vcmp.lt.s32.totalorder %v611, 15
      %vm676 = vcmp.lt.s32.totalorder %v612, 15
      %vm677 = vcmp.lt.s32.totalorder %v613, 15
      %vm678 = vcmp.lt.s32.totalorder %v614, 15
      %vm679 = vcmp.lt.s32.totalorder %v615, 15
      %vm680 = vcmp.lt.s32.totalorder %v616, 15
      %vm681 = vcmp.lt.s32.totalorder %v617, 15
      %vm682 = vcmp.lt.s32.totalorder %v618, 15
      %v683 = vld [vmem:[%s193 + $0x7] sm:$0xff]
      %v684 = vld [vmem:[%s193 + $0xf] sm:$0xff]
      %v685 = vld [vmem:[%s193 + $0x17] sm:$0xff]
      %v686 = vld [vmem:[%s193 + $0x1f] sm:$0xff]
      %v687 = vld [vmem:[%s193 + $0x27] sm:$0xff]
      %v688 = vld [vmem:[%s193 + $0x2f] sm:$0xff]
      %v689 = vld [vmem:[%s193 + $0x37] sm:$0xff]
      %v690 = vld [vmem:[%s193 + $0x3f] sm:$0xff]
      %v691 = vld [vmem:[%s193 + $0x47] sm:$0xff]
      %v692 = vld [vmem:[%s193 + $0x4f] sm:$0xff]
      %v693 = vld [vmem:[%s193 + $0x57] sm:$0xff]
      %v694 = vld [vmem:[%s193 + $0x5f] sm:$0xff]
      %v695 = vld [vmem:[%s193 + $0x67] sm:$0xff]
      %v696 = vld [vmem:[%s193 + $0x6f] sm:$0xff]
      %v697 = vld [vmem:[%s193 + $0x77] sm:$0xff]
      %v698 = vld [vmem:[%s193 + $0x7f] sm:$0xff]
      %v699 = vld [vmem:[%s193 + $0x87] sm:$0xff]
      %v700 = vld [vmem:[%s193 + $0x8f] sm:$0xff]
      %v701 = vld [vmem:[%s193 + $0x97] sm:$0xff]
      %v702 = vld [vmem:[%s193 + $0x9f] sm:$0xff]
      %v703 = vld [vmem:[%s193 + $0xa7] sm:$0xff]
      %v704 = vld [vmem:[%s193 + $0xaf] sm:$0xff]
      %v705 = vld [vmem:[%s193 + $0xb7] sm:$0xff]
      %v706 = vld [vmem:[%s193 + $0xbf] sm:$0xff]
      %v707 = vld [vmem:[%s193 + $0xc7] sm:$0xff]
      %v708 = vld [vmem:[%s193 + $0xcf] sm:$0xff]
      %v709 = vld [vmem:[%s193 + $0xd7] sm:$0xff]
      %v710 = vld [vmem:[%s193 + $0xdf] sm:$0xff]
      %v711 = vld [vmem:[%s193 + $0xe7] sm:$0xff]
      %v712 = vld [vmem:[%s193 + $0xef] sm:$0xff]
      %v713 = vld [vmem:[%s193 + $0xf7] sm:$0xff]
      %v714 = vld [vmem:[%s193 + $0xff] sm:$0xff]
      %v715 = vsel %vm619, 1, 0
      %v716 = vsel %vm620, 1, 0
      %v717 = vsel %vm621, 1, 0
      %v718 = vsel %vm622, 1, 0
      %v719 = vsel %vm623, 1, 0
      %v720 = vsel %vm624, 1, 0
      %v721 = vsel %vm625, 1, 0
      %v722 = vsel %vm626, 1, 0
      %v723 = vsel %vm627, 1, 0
      %v724 = vsel %vm628, 1, 0
      %v725 = vsel %vm629, 1, 0
      %v726 = vsel %vm630, 1, 0
      %v727 = vsel %vm631, 1, 0
      %v728 = vsel %vm632, 1, 0
      %v729 = vsel %vm633, 1, 0
      %v730 = vsel %vm634, 1, 0
      %v731 = vsel %vm635, 1, 0
      %v732 = vsel %vm636, 1, 0
      %v733 = vsel %vm637, 1, 0
      %v734 = vsel %vm638, 1, 0
      %v735 = vsel %vm639, 1, 0
      %v736 = vsel %vm640, 1, 0
      %v737 = vsel %vm641, 1, 0
      %v738 = vsel %vm642, 1, 0
      %v739 = vsel %vm643, 1, 0
      %v740 = vsel %vm644, 1, 0
      %v741 = vsel %vm645, 1, 0
      %v742 = vsel %vm646, 1, 0
      %v743 = vsel %vm647, 1, 0
      %v744 = vsel %vm648, 1, 0
      %v745 = vsel %vm649, 1, 0
      %v746 = vsel %vm650, 1, 0
      %vm747 = vcmp.eq.s32.totalorder %v715, 1
      %vm748 = vcmp.eq.s32.totalorder %v716, 1
      %vm749 = vcmp.eq.s32.totalorder %v717, 1
      %vm750 = vcmp.eq.s32.totalorder %v718, 1
      %vm751 = vcmp.eq.s32.totalorder %v719, 1
      %vm752 = vcmp.eq.s32.totalorder %v720, 1
      %vm753 = vcmp.eq.s32.totalorder %v721, 1
      %vm754 = vcmp.eq.s32.totalorder %v722, 1
      %vm755 = vcmp.eq.s32.totalorder %v723, 1
      %vm756 = vcmp.eq.s32.totalorder %v724, 1
      %vm757 = vcmp.eq.s32.totalorder %v725, 1
      %vm758 = vcmp.eq.s32.totalorder %v726, 1
      %vm759 = vcmp.eq.s32.totalorder %v727, 1
      %vm760 = vcmp.eq.s32.totalorder %v728, 1
      %vm761 = vcmp.eq.s32.totalorder %v729, 1
      %vm762 = vcmp.eq.s32.totalorder %v730, 1
      %vm763 = vcmp.eq.s32.totalorder %v731, 1
      %vm764 = vcmp.eq.s32.totalorder %v732, 1
      %vm765 = vcmp.eq.s32.totalorder %v733, 1
      %vm766 = vcmp.eq.s32.totalorder %v734, 1
      %vm767 = vcmp.eq.s32.totalorder %v735, 1
      %vm768 = vcmp.eq.s32.totalorder %v736, 1
      %vm769 = vcmp.eq.s32.totalorder %v737, 1
      %vm770 = vcmp.eq.s32.totalorder %v738, 1
      %vm771 = vcmp.eq.s32.totalorder %v739, 1
      %vm772 = vcmp.eq.s32.totalorder %v740, 1
      %vm773 = vcmp.eq.s32.totalorder %v741, 1
      %vm774 = vcmp.eq.s32.totalorder %v742, 1
      %vm775 = vcmp.eq.s32.totalorder %v743, 1
      %vm776 = vcmp.eq.s32.totalorder %v744, 1
      %vm777 = vcmp.eq.s32.totalorder %v745, 1
      %vm778 = vcmp.eq.s32.totalorder %v746, 1
      %v779 = vsel %vm747, %v683, 0.0
      %v780 = vsel %vm748, %v684, 0.0
      %v781 = vsel %vm749, %v685, 0.0
      %v782 = vsel %vm750, %v686, 0.0
      %v783 = vsel %vm751, %v687, 0.0
      %v784 = vsel %vm752, %v688, 0.0
      %v785 = vsel %vm753, %v689, 0.0
      %v786 = vsel %vm754, %v690, 0.0
      %v787 = vsel %vm755, %v691, 0.0
      %v788 = vsel %vm756, %v692, 0.0
      %v789 = vsel %vm757, %v693, 0.0
      %v790 = vsel %vm758, %v694, 0.0
      %v791 = vsel %vm759, %v695, 0.0
      %v792 = vsel %vm760, %v696, 0.0
      %v793 = vsel %vm761, %v697, 0.0
      %v794 = vsel %vm762, %v698, 0.0
      %v795 = vsel %vm763, %v699, 0.0
      %v796 = vsel %vm764, %v700, 0.0
      %v797 = vsel %vm765, %v701, 0.0
      %v798 = vsel %vm766, %v702, 0.0
      %v799 = vsel %vm767, %v703, 0.0
      %v800 = vsel %vm768, %v704, 0.0
      %v801 = vsel %vm769, %v705, 0.0
      %v802 = vsel %vm770, %v706, 0.0
      %v803 = vsel %vm771, %v707, 0.0
      %v804 = vsel %vm772, %v708, 0.0
      %v805 = vsel %vm773, %v709, 0.0
      %v806 = vsel %vm774, %v710, 0.0
      %v807 = vsel %vm775, %v711, 0.0
      %v808 = vsel %vm776, %v712, 0.0
      %v809 = vsel %vm777, %v713, 0.0
      %v810 = vsel %vm778, %v714, 0.0
      %v811 = vld [vmem:[%s193 + $0x8] sm:$0xff]
      %v812 = vld [vmem:[%s193 + $0x10] sm:$0xff]
      %v813 = vld [vmem:[%s193 + $0x18] sm:$0xff]
      %v814 = vld [vmem:[%s193 + $0x20] sm:$0xff]
      %v815 = vld [vmem:[%s193 + $0x28] sm:$0xff]
      %v816 = vld [vmem:[%s193 + $0x30] sm:$0xff]
      %v817 = vld [vmem:[%s193 + $0x38] sm:$0xff]
      %v818 = vld [vmem:[%s193 + $0x40] sm:$0xff]
      %v819 = vld [vmem:[%s193 + $0x48] sm:$0xff]
      %v820 = vld [vmem:[%s193 + $0x50] sm:$0xff]
      %v821 = vld [vmem:[%s193 + $0x58] sm:$0xff]
      %v822 = vld [vmem:[%s193 + $0x60] sm:$0xff]
      %v823 = vld [vmem:[%s193 + $0x68] sm:$0xff]
      %v824 = vld [vmem:[%s193 + $0x70] sm:$0xff]
      %v825 = vld [vmem:[%s193 + $0x78] sm:$0xff]
      %v826 = vld [vmem:[%s193 + $0x80] sm:$0xff]
      %v827 = vld [vmem:[%s193 + $0x88] sm:$0xff]
      %v828 = vld [vmem:[%s193 + $0x90] sm:$0xff]
      %v829 = vld [vmem:[%s193 + $0x98] sm:$0xff]
      %v830 = vld [vmem:[%s193 + $0xa0] sm:$0xff]
      %v831 = vld [vmem:[%s193 + $0xa8] sm:$0xff]
      %v832 = vld [vmem:[%s193 + $0xb0] sm:$0xff]
      %v833 = vld [vmem:[%s193 + $0xb8] sm:$0xff]
      %v834 = vld [vmem:[%s193 + $0xc0] sm:$0xff]
      %v835 = vld [vmem:[%s193 + $0xc8] sm:$0xff]
      %v836 = vld [vmem:[%s193 + $0xd0] sm:$0xff]
      %v837 = vld [vmem:[%s193 + $0xd8] sm:$0xff]
      %v838 = vld [vmem:[%s193 + $0xe0] sm:$0xff]
      %v839 = vld [vmem:[%s193 + $0xe8] sm:$0xff]
      %v840 = vld [vmem:[%s193 + $0xf0] sm:$0xff]
      %v841 = vld [vmem:[%s193 + $0xf8] sm:$0xff]
      %v842 = vld [vmem:[%s193 + $0x100] sm:$0xff]
      %v843 = vld [vmem:[%s193 + $0x9] sm:$0xff]
      %v844 = vld [vmem:[%s193 + $0x11] sm:$0xff]
      %v845 = vld [vmem:[%s193 + $0x19] sm:$0xff]
      %v846 = vld [vmem:[%s193 + $0x21] sm:$0xff]
      %v847 = vld [vmem:[%s193 + $0x29] sm:$0xff]
      %v848 = vld [vmem:[%s193 + $0x31] sm:$0xff]
      %v849 = vld [vmem:[%s193 + $0x39] sm:$0xff]
      %v850 = vld [vmem:[%s193 + $0x41] sm:$0xff]
      %v851 = vld [vmem:[%s193 + $0x49] sm:$0xff]
      %v852 = vld [vmem:[%s193 + $0x51] sm:$0xff]
      %v853 = vld [vmem:[%s193 + $0x59] sm:$0xff]
      %v854 = vld [vmem:[%s193 + $0x61] sm:$0xff]
      %v855 = vld [vmem:[%s193 + $0x69] sm:$0xff]
      %v856 = vld [vmem:[%s193 + $0x71] sm:$0xff]
      %v857 = vld [vmem:[%s193 + $0x79] sm:$0xff]
      %v858 = vld [vmem:[%s193 + $0x81] sm:$0xff]
      %v859 = vld [vmem:[%s193 + $0x89] sm:$0xff]
      %v860 = vld [vmem:[%s193 + $0x91] sm:$0xff]
      %v861 = vld [vmem:[%s193 + $0x99] sm:$0xff]
      %v862 = vld [vmem:[%s193 + $0xa1] sm:$0xff]
      %v863 = vld [vmem:[%s193 + $0xa9] sm:$0xff]
      %v864 = vld [vmem:[%s193 + $0xb1] sm:$0xff]
      %v865 = vld [vmem:[%s193 + $0xb9] sm:$0xff]
      %v866 = vld [vmem:[%s193 + $0xc1] sm:$0xff]
      %v867 = vld [vmem:[%s193 + $0xc9] sm:$0xff]
      %v868 = vld [vmem:[%s193 + $0xd1] sm:$0xff]
      %v869 = vld [vmem:[%s193 + $0xd9] sm:$0xff]
      %v870 = vld [vmem:[%s193 + $0xe1] sm:$0xff]
      %v871 = vld [vmem:[%s193 + $0xe9] sm:$0xff]
      %v872 = vld [vmem:[%s193 + $0xf1] sm:$0xff]
      %v873 = vld [vmem:[%s193 + $0xf9] sm:$0xff]
      %v874 = vld [vmem:[%s193 + $0x101] sm:$0xff]
      %v875 = vsel %vm651, 1, 0
      %v876 = vsel %vm652, 1, 0
      %v877 = vsel %vm653, 1, 0
      %v878 = vsel %vm654, 1, 0
      %v879 = vsel %vm655, 1, 0
      %v880 = vsel %vm656, 1, 0
      %v881 = vsel %vm657, 1, 0
      %v882 = vsel %vm658, 1, 0
      %v883 = vsel %vm659, 1, 0
      %v884 = vsel %vm660, 1, 0
      %v885 = vsel %vm661, 1, 0
      %v886 = vsel %vm662, 1, 0
      %v887 = vsel %vm663, 1, 0
      %v888 = vsel %vm664, 1, 0
      %v889 = vsel %vm665, 1, 0
      %v890 = vsel %vm666, 1, 0
      %v891 = vsel %vm667, 1, 0
      %v892 = vsel %vm668, 1, 0
      %v893 = vsel %vm669, 1, 0
      %v894 = vsel %vm670, 1, 0
      %v895 = vsel %vm671, 1, 0
      %v896 = vsel %vm672, 1, 0
      %v897 = vsel %vm673, 1, 0
      %v898 = vsel %vm674, 1, 0
      %v899 = vsel %vm675, 1, 0
      %v900 = vsel %vm676, 1, 0
      %v901 = vsel %vm677, 1, 0
      %v902 = vsel %vm678, 1, 0
      %v903 = vsel %vm679, 1, 0
      %v904 = vsel %vm680, 1, 0
      %v905 = vsel %vm681, 1, 0
      %v906 = vsel %vm682, 1, 0
      %vm907 = vcmp.eq.s32.totalorder %v875, 1
      %vm908 = vcmp.eq.s32.totalorder %v876, 1
      %vm909 = vcmp.eq.s32.totalorder %v877, 1
      %vm910 = vcmp.eq.s32.totalorder %v878, 1
      %vm911 = vcmp.eq.s32.totalorder %v879, 1
      %vm912 = vcmp.eq.s32.totalorder %v880, 1
      %vm913 = vcmp.eq.s32.totalorder %v881, 1
      %vm914 = vcmp.eq.s32.totalorder %v882, 1
      %vm915 = vcmp.eq.s32.totalorder %v883, 1
      %vm916 = vcmp.eq.s32.totalorder %v884, 1
      %vm917 = vcmp.eq.s32.totalorder %v885, 1
      %vm918 = vcmp.eq.s32.totalorder %v886, 1
      %vm919 = vcmp.eq.s32.totalorder %v887, 1
      %vm920 = vcmp.eq.s32.totalorder %v888, 1
      %vm921 = vcmp.eq.s32.totalorder %v889, 1
      %vm922 = vcmp.eq.s32.totalorder %v890, 1
      %vm923 = vcmp.eq.s32.totalorder %v891, 1
      %vm924 = vcmp.eq.s32.totalorder %v892, 1
      %vm925 = vcmp.eq.s32.totalorder %v893, 1
      %vm926 = vcmp.eq.s32.totalorder %v894, 1
      %vm927 = vcmp.eq.s32.totalorder %v895, 1
      %vm928 = vcmp.eq.s32.totalorder %v896, 1
      %vm929 = vcmp.eq.s32.totalorder %v897, 1
      %vm930 = vcmp.eq.s32.totalorder %v898, 1
      %vm931 = vcmp.eq.s32.totalorder %v899, 1
      %vm932 = vcmp.eq.s32.totalorder %v900, 1
      %vm933 = vcmp.eq.s32.totalorder %v901, 1
      %vm934 = vcmp.eq.s32.totalorder %v902, 1
      %vm935 = vcmp.eq.s32.totalorder %v903, 1
      %vm936 = vcmp.eq.s32.totalorder %v904, 1
      %vm937 = vcmp.eq.s32.totalorder %v905, 1
      %vm938 = vcmp.eq.s32.totalorder %v906, 1
      %v939 = vsel %vm907, %v843, 0.0
      %v940 = vsel %vm908, %v844, 0.0
      %v941 = vsel %vm909, %v845, 0.0
      %v942 = vsel %vm910, %v846, 0.0
      %v943 = vsel %vm911, %v847, 0.0
      %v944 = vsel %vm912, %v848, 0.0
      %v945 = vsel %vm913, %v849, 0.0
      %v946 = vsel %vm914, %v850, 0.0
      %v947 = vsel %vm915, %v851, 0.0
      %v948 = vsel %vm916, %v852, 0.0
      %v949 = vsel %vm917, %v853, 0.0
      %v950 = vsel %vm918, %v854, 0.0
      %v951 = vsel %vm919, %v855, 0.0
      %v952 = vsel %vm920, %v856, 0.0
      %v953 = vsel %vm921, %v857, 0.0
      %v954 = vsel %vm922, %v858, 0.0
      %v955 = vsel %vm923, %v859, 0.0
      %v956 = vsel %vm924, %v860, 0.0
      %v957 = vsel %vm925, %v861, 0.0
      %v958 = vsel %vm926, %v862, 0.0
      %v959 = vsel %vm927, %v863, 0.0
      %v960 = vsel %vm928, %v864, 0.0
      %v961 = vsel %vm929, %v865, 0.0
      %v962 = vsel %vm930, %v866, 0.0
      %v963 = vsel %vm931, %v867, 0.0
      %v964 = vsel %vm932, %v868, 0.0
      %v965 = vsel %vm933, %v869, 0.0
      %v966 = vsel %vm934, %v870, 0.0
      %v967 = vsel %vm935, %v871, 0.0
      %v968 = vsel %vm936, %v872, 0.0
      %v969 = vsel %vm937, %v873, 0.0
      %v970 = vsel %vm938, %v874, 0.0
      %v971 = vld [vmem:[%s193 + $0x107] sm:$0xff]
      %v972 = vld [vmem:[%s193 + $0x10f] sm:$0xff]
      %v973 = vsel %vm747, %v685, 0.0
      %v974 = vsel %vm748, %v686, 0.0
      %v975 = vsel %vm749, %v687, 0.0
      %v976 = vsel %vm750, %v688, 0.0
      %v977 = vsel %vm751, %v689, 0.0
      %v978 = vsel %vm752, %v690, 0.0
      %v979 = vsel %vm753, %v691, 0.0
      %v980 = vsel %vm754, %v692, 0.0
      %v981 = vsel %vm755, %v693, 0.0
      %v982 = vsel %vm756, %v694, 0.0
      %v983 = vsel %vm757, %v695, 0.0
      %v984 = vsel %vm758, %v696, 0.0
      %v985 = vsel %vm759, %v697, 0.0
      %v986 = vsel %vm760, %v698, 0.0
      %v987 = vsel %vm761, %v699, 0.0
      %v988 = vsel %vm762, %v700, 0.0
      %v989 = vsel %vm763, %v701, 0.0
      %v990 = vsel %vm764, %v702, 0.0
      %v991 = vsel %vm765, %v703, 0.0
      %v992 = vsel %vm766, %v704, 0.0
      %v993 = vsel %vm767, %v705, 0.0
      %v994 = vsel %vm768, %v706, 0.0
      %v995 = vsel %vm769, %v707, 0.0
      %v996 = vsel %vm770, %v708, 0.0
      %v997 = vsel %vm771, %v709, 0.0
      %v998 = vsel %vm772, %v710, 0.0
      %v999 = vsel %vm773, %v711, 0.0
      %v1000 = vsel %vm774, %v712, 0.0
      %v1001 = vsel %vm775, %v713, 0.0
      %v1002 = vsel %vm776, %v714, 0.0
      %v1003 = vsel %vm777, %v971, 0.0
      %v1004 = vsel %vm778, %v972, 0.0
      %v1005 = vld [vmem:[%s193 + $0x108] sm:$0xff]
      %v1006 = vld [vmem:[%s193 + $0x110] sm:$0xff]
      %v1007 = vld [vmem:[%s193 + $0x109] sm:$0xff]
      %v1008 = vld [vmem:[%s193 + $0x111] sm:$0xff]
      %v1009 = vsel %vm907, %v845, 0.0
      %v1010 = vsel %vm908, %v846, 0.0
      %v1011 = vsel %vm909, %v847, 0.0
      %v1012 = vsel %vm910, %v848, 0.0
      %v1013 = vsel %vm911, %v849, 0.0
      %v1014 = vsel %vm912, %v850, 0.0
      %v1015 = vsel %vm913, %v851, 0.0
      %v1016 = vsel %vm914, %v852, 0.0
      %v1017 = vsel %vm915, %v853, 0.0
      %v1018 = vsel %vm916, %v854, 0.0
      %v1019 = vsel %vm917, %v855, 0.0
      %v1020 = vsel %vm918, %v856, 0.0
      %v1021 = vsel %vm919, %v857, 0.0
      %v1022 = vsel %vm920, %v858, 0.0
      %v1023 = vsel %vm921, %v859, 0.0
      %v1024 = vsel %vm922, %v860, 0.0
      %v1025 = vsel %vm923, %v861, 0.0
      %v1026 = vsel %vm924, %v862, 0.0
      %v1027 = vsel %vm925, %v863, 0.0
      %v1028 = vsel %vm926, %v864, 0.0
      %v1029 = vsel %vm927, %v865, 0.0
      %v1030 = vsel %vm928, %v866, 0.0
      %v1031 = vsel %vm929, %v867, 0.0
      %v1032 = vsel %vm930, %v868, 0.0
      %v1033 = vsel %vm931, %v869, 0.0
      %v1034 = vsel %vm932, %v870, 0.0
      %v1035 = vsel %vm933, %v871, 0.0
      %v1036 = vsel %vm934, %v872, 0.0
      %v1037 = vsel %vm935, %v873, 0.0
      %v1038 = vsel %vm936, %v874, 0.0
      %v1039 = vsel %vm937, %v1007, 0.0
      %v1040 = vsel %vm938, %v1008, 0.0
      %v1041 = vld [vmem:[%s193 + $0x117] sm:$0xff]
      %v1042 = vld [vmem:[%s193 + $0x11f] sm:$0xff]
      %v1043 = vsel %vm747, %v687, 0.0
      %v1044 = vsel %vm748, %v688, 0.0
      %v1045 = vsel %vm749, %v689, 0.0
      %v1046 = vsel %vm750, %v690, 0.0
      %v1047 = vsel %vm751, %v691, 0.0
      %v1048 = vsel %vm752, %v692, 0.0
      %v1049 = vsel %vm753, %v693, 0.0
      %v1050 = vsel %vm754, %v694, 0.0
      %v1051 = vsel %vm755, %v695, 0.0
      %v1052 = vsel %vm756, %v696, 0.0
      %v1053 = vsel %vm757, %v697, 0.0
      %v1054 = vsel %vm758, %v698, 0.0
      %v1055 = vsel %vm759, %v699, 0.0
      %v1056 = vsel %vm760, %v700, 0.0
      %v1057 = vsel %vm761, %v701, 0.0
      %v1058 = vsel %vm762, %v702, 0.0
      %v1059 = vsel %vm763, %v703, 0.0
      %v1060 = vsel %vm764, %v704, 0.0
      %v1061 = vsel %vm765, %v705, 0.0
      %v1062 = vsel %vm766, %v706, 0.0
      %v1063 = vsel %vm767, %v707, 0.0
      %v1064 = vsel %vm768, %v708, 0.0
      %v1065 = vsel %vm769, %v709, 0.0
      %v1066 = vsel %vm770, %v710, 0.0
      %v1067 = vsel %vm771, %v711, 0.0
      %v1068 = vsel %vm772, %v712, 0.0
      %v1069 = vsel %vm773, %v713, 0.0
      %v1070 = vsel %vm774, %v714, 0.0
      %v1071 = vsel %vm775, %v971, 0.0
      %v1072 = vsel %vm776, %v972, 0.0
      %v1073 = vsel %vm777, %v1041, 0.0
      %v1074 = vsel %vm778, %v1042, 0.0
      %v1075 = vld [vmem:[%s193 + $0x118] sm:$0xff]
      %v1076 = vld [vmem:[%s193 + $0x120] sm:$0xff]
      %v1077 = vld [vmem:[%s193 + $0x119] sm:$0xff]
      %v1078 = vld [vmem:[%s193 + $0x121] sm:$0xff]
      %v1079 = vsel %vm907, %v847, 0.0
      %v1080 = vsel %vm908, %v848, 0.0
      %v1081 = vsel %vm909, %v849, 0.0
      %v1082 = vsel %vm910, %v850, 0.0
      %v1083 = vsel %vm911, %v851, 0.0
      %v1084 = vsel %vm912, %v852, 0.0
      %v1085 = vsel %vm913, %v853, 0.0
      %v1086 = vsel %vm914, %v854, 0.0
      %v1087 = vsel %vm915, %v855, 0.0
      %v1088 = vsel %vm916, %v856, 0.0
      %v1089 = vsel %vm917, %v857, 0.0
      %v1090 = vsel %vm918, %v858, 0.0
      %v1091 = vsel %vm919, %v859, 0.0
      %v1092 = vsel %vm920, %v860, 0.0
      %v1093 = vsel %vm921, %v861, 0.0
      %v1094 = vsel %vm922, %v862, 0.0
      %v1095 = vsel %vm923, %v863, 0.0
      %v1096 = vsel %vm924, %v864, 0.0
      %v1097 = vsel %vm925, %v865, 0.0
      %v1098 = vsel %vm926, %v866, 0.0
      %v1099 = vsel %vm927, %v867, 0.0
      %v1100 = vsel %vm928, %v868, 0.0
      %v1101 = vsel %vm929, %v869, 0.0
      %v1102 = vsel %vm930, %v870, 0.0
      %v1103 = vsel %vm931, %v871, 0.0
      %v1104 = vsel %vm932, %v872, 0.0
      %v1105 = vsel %vm933, %v873, 0.0
      %v1106 = vsel %vm934, %v874, 0.0
      %v1107 = vsel %vm935, %v1007, 0.0
      %v1108 = vsel %vm936, %v1008, 0.0
      %v1109 = vsel %vm937, %v1077, 0.0
      %v1110 = vsel %vm938, %v1078, 0.0
      %1143 = vrot.lane.b32.xlu0 %v811, 4
      %v1144 = vpop.permute.xlu0 %1143
      %1145 = vrot.lane.b32.xlu0 %v812, 4
      %v1146 = vpop.permute.xlu0 %1145
      %1147 = vrot.lane.b32.xlu0 %v813, 4
      %v1148 = vpop.permute.xlu0 %1147
      %1149 = vrot.lane.b32.xlu0 %v814, 4
      %v1150 = vpop.permute.xlu0 %1149
      %1151 = vrot.lane.b32.xlu0 %v815, 4
      %v1152 = vpop.permute.xlu0 %1151
      %1153 = vrot.lane.b32.xlu0 %v816, 4
      %v1154 = vpop.permute.xlu0 %1153
      %1155 = vrot.lane.b32.xlu0 %v817, 4
      %v1156 = vpop.permute.xlu0 %1155
      %1157 = vrot.lane.b32.xlu0 %v818, 4
      %v1158 = vpop.permute.xlu0 %1157
      %1159 = vrot.lane.b32.xlu0 %v819, 4
      %v1160 = vpop.permute.xlu0 %1159
      %1161 = vrot.lane.b32.xlu0 %v820, 4
      %v1162 = vpop.permute.xlu0 %1161
      %1163 = vrot.lane.b32.xlu0 %v821, 4
      %v1164 = vpop.permute.xlu0 %1163
      %1165 = vrot.lane.b32.xlu0 %v822, 4
      %v1166 = vpop.permute.xlu0 %1165
      %1167 = vrot.lane.b32.xlu0 %v823, 4
      %v1168 = vpop.permute.xlu0 %1167
      %1169 = vrot.lane.b32.xlu0 %v824, 4
      %v1170 = vpop.permute.xlu0 %1169
      %1171 = vrot.lane.b32.xlu0 %v825, 4
      %v1172 = vpop.permute.xlu0 %1171
      %1173 = vrot.lane.b32.xlu0 %v826, 4
      %v1174 = vpop.permute.xlu0 %1173
      %1175 = vrot.lane.b32.xlu0 %v827, 4
      %v1176 = vpop.permute.xlu0 %1175
      %1177 = vrot.lane.b32.xlu0 %v828, 4
      %v1178 = vpop.permute.xlu0 %1177
      %1179 = vrot.lane.b32.xlu0 %v829, 4
      %v1180 = vpop.permute.xlu0 %1179
      %1181 = vrot.lane.b32.xlu0 %v830, 4
      %v1182 = vpop.permute.xlu0 %1181
      %1183 = vrot.lane.b32.xlu0 %v831, 4
      %v1184 = vpop.permute.xlu0 %1183
      %1185 = vrot.lane.b32.xlu0 %v832, 4
      %v1186 = vpop.permute.xlu0 %1185
      %1187 = vrot.lane.b32.xlu0 %v833, 4
      %v1188 = vpop.permute.xlu0 %1187
      %1189 = vrot.lane.b32.xlu0 %v834, 4
      %v1190 = vpop.permute.xlu0 %1189
      %1191 = vrot.lane.b32.xlu0 %v835, 4
      %v1192 = vpop.permute.xlu0 %1191
      %1193 = vrot.lane.b32.xlu0 %v836, 4
      %v1194 = vpop.permute.xlu0 %1193
      %1195 = vrot.lane.b32.xlu0 %v837, 4
      %v1196 = vpop.permute.xlu0 %1195
      %1197 = vrot.lane.b32.xlu0 %v838, 4
      %v1198 = vpop.permute.xlu0 %1197
      %1199 = vrot.lane.b32.xlu0 %v839, 4
      %v1200 = vpop.permute.xlu0 %1199
      %1201 = vrot.lane.b32.xlu0 %v840, 4
      %v1202 = vpop.permute.xlu0 %1201
      %1203 = vrot.lane.b32.xlu0 %v841, 4
      %v1204 = vpop.permute.xlu0 %1203
      %1205 = vrot.lane.b32.xlu0 %v842, 4
      %v1206 = vpop.permute.xlu0 %1205
      %1271 = vrot.lane.b32.xlu0 %v939, 8
      %v1272 = vpop.permute.xlu0 %1271
      %1273 = vrot.lane.b32.xlu0 %v940, 8
      %v1274 = vpop.permute.xlu0 %1273
      %1275 = vrot.lane.b32.xlu0 %v941, 8
      %v1276 = vpop.permute.xlu0 %1275
      %1277 = vrot.lane.b32.xlu0 %v942, 8
      %v1278 = vpop.permute.xlu0 %1277
      %1279 = vrot.lane.b32.xlu0 %v943, 8
      %v1280 = vpop.permute.xlu0 %1279
      %1281 = vrot.lane.b32.xlu0 %v944, 8
      %v1282 = vpop.permute.xlu0 %1281
      %1283 = vrot.lane.b32.xlu0 %v945, 8
      %v1284 = vpop.permute.xlu0 %1283
      %1285 = vrot.lane.b32.xlu0 %v946, 8
      %v1286 = vpop.permute.xlu0 %1285
      %1287 = vrot.lane.b32.xlu0 %v947, 8
      %v1288 = vpop.permute.xlu0 %1287
      %1289 = vrot.lane.b32.xlu0 %v948, 8
      %v1290 = vpop.permute.xlu0 %1289
      %1291 = vrot.lane.b32.xlu0 %v949, 8
      %v1292 = vpop.permute.xlu0 %1291
      %1293 = vrot.lane.b32.xlu0 %v950, 8
      %v1294 = vpop.permute.xlu0 %1293
      %1295 = vrot.lane.b32.xlu0 %v951, 8
      %v1296 = vpop.permute.xlu0 %1295
      %1297 = vrot.lane.b32.xlu0 %v952, 8
      %v1298 = vpop.permute.xlu0 %1297
      %1299 = vrot.lane.b32.xlu0 %v953, 8
      %v1300 = vpop.permute.xlu0 %1299
      %1301 = vrot.lane.b32.xlu0 %v954, 8
      %v1302 = vpop.permute.xlu0 %1301
      %1303 = vrot.lane.b32.xlu0 %v955, 8
      %v1304 = vpop.permute.xlu0 %1303
      %1305 = vrot.lane.b32.xlu0 %v956, 8
      %v1306 = vpop.permute.xlu0 %1305
      %1307 = vrot.lane.b32.xlu0 %v957, 8
      %v1308 = vpop.permute.xlu0 %1307
      %1309 = vrot.lane.b32.xlu0 %v958, 8
      %v1310 = vpop.permute.xlu0 %1309
      %1311 = vrot.lane.b32.xlu0 %v959, 8
      %v1312 = vpop.permute.xlu0 %1311
      %1313 = vrot.lane.b32.xlu0 %v960, 8
      %v1314 = vpop.permute.xlu0 %1313
      %1315 = vrot.lane.b32.xlu0 %v961, 8
      %v1316 = vpop.permute.xlu0 %1315
      %1317 = vrot.lane.b32.xlu0 %v962, 8
      %v1318 = vpop.permute.xlu0 %1317
      %1319 = vrot.lane.b32.xlu0 %v963, 8
      %v1320 = vpop.permute.xlu0 %1319
      %1321 = vrot.lane.b32.xlu0 %v964, 8
      %v1322 = vpop.permute.xlu0 %1321
      %1323 = vrot.lane.b32.xlu0 %v965, 8
      %v1324 = vpop.permute.xlu0 %1323
      %1325 = vrot.lane.b32.xlu0 %v966, 8
      %v1326 = vpop.permute.xlu0 %1325
      %1327 = vrot.lane.b32.xlu0 %v967, 8
      %v1328 = vpop.permute.xlu0 %1327
      %1329 = vrot.lane.b32.xlu0 %v968, 8
      %v1330 = vpop.permute.xlu0 %1329
      %1331 = vrot.lane.b32.xlu0 %v969, 8
      %v1332 = vpop.permute.xlu0 %1331
      %1333 = vrot.lane.b32.xlu0 %v970, 8
      %v1334 = vpop.permute.xlu0 %1333
      %1399 = vrot.lane.b32.xlu0 %v973, 12
      %v1400 = vpop.permute.xlu0 %1399
      %1401 = vrot.lane.b32.xlu0 %v974, 12
      %v1402 = vpop.permute.xlu0 %1401
      %1403 = vrot.lane.b32.xlu0 %v975, 12
      %v1404 = vpop.permute.xlu0 %1403
      %1405 = vrot.lane.b32.xlu0 %v976, 12
      %v1406 = vpop.permute.xlu0 %1405
      %1407 = vrot.lane.b32.xlu0 %v977, 12
      %v1408 = vpop.permute.xlu0 %1407
      %1409 = vrot.lane.b32.xlu0 %v978, 12
      %v1410 = vpop.permute.xlu0 %1409
      %1411 = vrot.lane.b32.xlu0 %v979, 12
      %v1412 = vpop.permute.xlu0 %1411
      %1413 = vrot.lane.b32.xlu0 %v980, 12
      %v1414 = vpop.permute.xlu0 %1413
      %1415 = vrot.lane.b32.xlu0 %v981, 12
      %v1416 = vpop.permute.xlu0 %1415
      %1417 = vrot.lane.b32.xlu0 %v982, 12
      %v1418 = vpop.permute.xlu0 %1417
      %1419 = vrot.lane.b32.xlu0 %v983, 12
      %v1420 = vpop.permute.xlu0 %1419
      %1421 = vrot.lane.b32.xlu0 %v984, 12
      %v1422 = vpop.permute.xlu0 %1421
      %1423 = vrot.lane.b32.xlu0 %v985, 12
      %v1424 = vpop.permute.xlu0 %1423
      %1425 = vrot.lane.b32.xlu0 %v986, 12
      %v1426 = vpop.permute.xlu0 %1425
      %1427 = vrot.lane.b32.xlu0 %v987, 12
      %v1428 = vpop.permute.xlu0 %1427
      %1429 = vrot.lane.b32.xlu0 %v988, 12
      %v1430 = vpop.permute.xlu0 %1429
      %1431 = vrot.lane.b32.xlu0 %v989, 12
      %v1432 = vpop.permute.xlu0 %1431
      %1433 = vrot.lane.b32.xlu0 %v990, 12
      %v1434 = vpop.permute.xlu0 %1433
      %1435 = vrot.lane.b32.xlu0 %v991, 12
      %v1436 = vpop.permute.xlu0 %1435
      %1437 = vrot.lane.b32.xlu0 %v992, 12
      %v1438 = vpop.permute.xlu0 %1437
      %1439 = vrot.lane.b32.xlu0 %v993, 12
      %v1440 = vpop.permute.xlu0 %1439
      %1441 = vrot.lane.b32.xlu0 %v994, 12
      %v1442 = vpop.permute.xlu0 %1441
      %1443 = vrot.lane.b32.xlu0 %v995, 12
      %v1444 = vpop.permute.xlu0 %1443
      %1445 = vrot.lane.b32.xlu0 %v996, 12
      %v1446 = vpop.permute.xlu0 %1445
      %1447 = vrot.lane.b32.xlu0 %v997, 12
      %v1448 = vpop.permute.xlu0 %1447
      %1449 = vrot.lane.b32.xlu0 %v998, 12
      %v1450 = vpop.permute.xlu0 %1449
      %1451 = vrot.lane.b32.xlu0 %v999, 12
      %v1452 = vpop.permute.xlu0 %1451
      %1453 = vrot.lane.b32.xlu0 %v1000, 12
      %v1454 = vpop.permute.xlu0 %1453
      %1455 = vrot.lane.b32.xlu0 %v1001, 12
      %v1456 = vpop.permute.xlu0 %1455
      %1457 = vrot.lane.b32.xlu0 %v1002, 12
      %v1458 = vpop.permute.xlu0 %1457
      %1459 = vrot.lane.b32.xlu0 %v1003, 12
      %v1460 = vpop.permute.xlu0 %1459
      %1461 = vrot.lane.b32.xlu0 %v1004, 12
      %v1462 = vpop.permute.xlu0 %1461
      %1497 = vrot.lane.b32.xlu0 %v813, 16
      %v1498 = vpop.permute.xlu0 %1497
      %1499 = vrot.lane.b32.xlu0 %v814, 16
      %v1500 = vpop.permute.xlu0 %1499
      %1501 = vrot.lane.b32.xlu0 %v815, 16
      %v1502 = vpop.permute.xlu0 %1501
      %1503 = vrot.lane.b32.xlu0 %v816, 16
      %v1504 = vpop.permute.xlu0 %1503
      %1505 = vrot.lane.b32.xlu0 %v817, 16
      %v1506 = vpop.permute.xlu0 %1505
      %1507 = vrot.lane.b32.xlu0 %v818, 16
      %v1508 = vpop.permute.xlu0 %1507
      %1509 = vrot.lane.b32.xlu0 %v819, 16
      %v1510 = vpop.permute.xlu0 %1509
      %1511 = vrot.lane.b32.xlu0 %v820, 16
      %v1512 = vpop.permute.xlu0 %1511
      %1513 = vrot.lane.b32.xlu0 %v821, 16
      %v1514 = vpop.permute.xlu0 %1513
      %1515 = vrot.lane.b32.xlu0 %v822, 16
      %v1516 = vpop.permute.xlu0 %1515
      %1517 = vrot.lane.b32.xlu0 %v823, 16
      %v1518 = vpop.permute.xlu0 %1517
      %1519 = vrot.lane.b32.xlu0 %v824, 16
      %v1520 = vpop.permute.xlu0 %1519
      %1521 = vrot.lane.b32.xlu0 %v825, 16
      %v1522 = vpop.permute.xlu0 %1521
      %1523 = vrot.lane.b32.xlu0 %v826, 16
      %v1524 = vpop.permute.xlu0 %1523
      %1525 = vrot.lane.b32.xlu0 %v827, 16
      %v1526 = vpop.permute.xlu0 %1525
      %1527 = vrot.lane.b32.xlu0 %v828, 16
      %v1528 = vpop.permute.xlu0 %1527
      %1529 = vrot.lane.b32.xlu0 %v829, 16
      %v1530 = vpop.permute.xlu0 %1529
      %1531 = vrot.lane.b32.xlu0 %v830, 16
      %v1532 = vpop.permute.xlu0 %1531
      %1533 = vrot.lane.b32.xlu0 %v831, 16
      %v1534 = vpop.permute.xlu0 %1533
      %1535 = vrot.lane.b32.xlu0 %v832, 16
      %v1536 = vpop.permute.xlu0 %1535
      %1537 = vrot.lane.b32.xlu0 %v833, 16
      %v1538 = vpop.permute.xlu0 %1537
      %1539 = vrot.lane.b32.xlu0 %v834, 16
      %v1540 = vpop.permute.xlu0 %1539
      %1541 = vrot.lane.b32.xlu0 %v835, 16
      %v1542 = vpop.permute.xlu0 %1541
      %1543 = vrot.lane.b32.xlu0 %v836, 16
      %v1544 = vpop.permute.xlu0 %1543
      %1545 = vrot.lane.b32.xlu0 %v837, 16
      %v1546 = vpop.permute.xlu0 %1545
      %1547 = vrot.lane.b32.xlu0 %v838, 16
      %v1548 = vpop.permute.xlu0 %1547
      %1549 = vrot.lane.b32.xlu0 %v839, 16
      %v1550 = vpop.permute.xlu0 %1549
      %1551 = vrot.lane.b32.xlu0 %v840, 16
      %v1552 = vpop.permute.xlu0 %1551
      %1553 = vrot.lane.b32.xlu0 %v841, 16
      %v1554 = vpop.permute.xlu0 %1553
      %1555 = vrot.lane.b32.xlu0 %v842, 16
      %v1556 = vpop.permute.xlu0 %1555
      %1557 = vrot.lane.b32.xlu0 %v1005, 16
      %v1558 = vpop.permute.xlu0 %1557
      %1559 = vrot.lane.b32.xlu0 %v1006, 16
      %v1560 = vpop.permute.xlu0 %1559
      %1625 = vrot.lane.b32.xlu0 %v1009, 20
      %v1626 = vpop.permute.xlu0 %1625
      %1627 = vrot.lane.b32.xlu0 %v1010, 20
      %v1628 = vpop.permute.xlu0 %1627
      %1629 = vrot.lane.b32.xlu0 %v1011, 20
      %v1630 = vpop.permute.xlu0 %1629
      %1631 = vrot.lane.b32.xlu0 %v1012, 20
      %v1632 = vpop.permute.xlu0 %1631
      %1633 = vrot.lane.b32.xlu0 %v1013, 20
      %v1634 = vpop.permute.xlu0 %1633
      %1635 = vrot.lane.b32.xlu0 %v1014, 20
      %v1636 = vpop.permute.xlu0 %1635
      %1637 = vrot.lane.b32.xlu0 %v1015, 20
      %v1638 = vpop.permute.xlu0 %1637
      %1639 = vrot.lane.b32.xlu0 %v1016, 20
      %v1640 = vpop.permute.xlu0 %1639
      %1641 = vrot.lane.b32.xlu0 %v1017, 20
      %v1642 = vpop.permute.xlu0 %1641
      %1643 = vrot.lane.b32.xlu0 %v1018, 20
      %v1644 = vpop.permute.xlu0 %1643
      %1645 = vrot.lane.b32.xlu0 %v1019, 20
      %v1646 = vpop.permute.xlu0 %1645
      %1647 = vrot.lane.b32.xlu0 %v1020, 20
      %v1648 = vpop.permute.xlu0 %1647
      %1649 = vrot.lane.b32.xlu0 %v1021, 20
      %v1650 = vpop.permute.xlu0 %1649
      %1651 = vrot.lane.b32.xlu0 %v1022, 20
      %v1652 = vpop.permute.xlu0 %1651
      %1653 = vrot.lane.b32.xlu0 %v1023, 20
      %v1654 = vpop.permute.xlu0 %1653
      %1655 = vrot.lane.b32.xlu0 %v1024, 20
      %v1656 = vpop.permute.xlu0 %1655
      %1657 = vrot.lane.b32.xlu0 %v1025, 20
      %v1658 = vpop.permute.xlu0 %1657
      %1659 = vrot.lane.b32.xlu0 %v1026, 20
      %v1660 = vpop.permute.xlu0 %1659
      %1661 = vrot.lane.b32.xlu0 %v1027, 20
      %v1662 = vpop.permute.xlu0 %1661
      %1663 = vrot.lane.b32.xlu0 %v1028, 20
      %v1664 = vpop.permute.xlu0 %1663
      %1665 = vrot.lane.b32.xlu0 %v1029, 20
      %v1666 = vpop.permute.xlu0 %1665
      %1667 = vrot.lane.b32.xlu0 %v1030, 20
      %v1668 = vpop.permute.xlu0 %1667
      %1669 = vrot.lane.b32.xlu0 %v1031, 20
      %v1670 = vpop.permute.xlu0 %1669
      %1671 = vrot.lane.b32.xlu0 %v1032, 20
      %v1672 = vpop.permute.xlu0 %1671
      %1673 = vrot.lane.b32.xlu0 %v1033, 20
      %v1674 = vpop.permute.xlu0 %1673
      %1675 = vrot.lane.b32.xlu0 %v1034, 20
      %v1676 = vpop.permute.xlu0 %1675
      %1677 = vrot.lane.b32.xlu0 %v1035, 20
      %v1678 = vpop.permute.xlu0 %1677
      %1679 = vrot.lane.b32.xlu0 %v1036, 20
      %v1680 = vpop.permute.xlu0 %1679
      %1681 = vrot.lane.b32.xlu0 %v1037, 20
      %v1682 = vpop.permute.xlu0 %1681
      %1683 = vrot.lane.b32.xlu0 %v1038, 20
      %v1684 = vpop.permute.xlu0 %1683
      %1685 = vrot.lane.b32.xlu0 %v1039, 20
      %v1686 = vpop.permute.xlu0 %1685
      %1687 = vrot.lane.b32.xlu0 %v1040, 20
      %v1688 = vpop.permute.xlu0 %1687
      %1753 = vrot.lane.b32.xlu0 %v1043, 24
      %v1754 = vpop.permute.xlu0 %1753
      %1755 = vrot.lane.b32.xlu0 %v1044, 24
      %v1756 = vpop.permute.xlu0 %1755
      %1757 = vrot.lane.b32.xlu0 %v1045, 24
      %v1758 = vpop.permute.xlu0 %1757
      %1759 = vrot.lane.b32.xlu0 %v1046, 24
      %v1760 = vpop.permute.xlu0 %1759
      %1761 = vrot.lane.b32.xlu0 %v1047, 24
      %v1762 = vpop.permute.xlu0 %1761
      %1763 = vrot.lane.b32.xlu0 %v1048, 24
      %v1764 = vpop.permute.xlu0 %1763
      %1765 = vrot.lane.b32.xlu0 %v1049, 24
      %v1766 = vpop.permute.xlu0 %1765
      %1767 = vrot.lane.b32.xlu0 %v1050, 24
      %v1768 = vpop.permute.xlu0 %1767
      %1769 = vrot.lane.b32.xlu0 %v1051, 24
      %v1770 = vpop.permute.xlu0 %1769
      %1771 = vrot.lane.b32.xlu0 %v1052, 24
      %v1772 = vpop.permute.xlu0 %1771
      %1773 = vrot.lane.b32.xlu0 %v1053, 24
      %v1774 = vpop.permute.xlu0 %1773
      %1775 = vrot.lane.b32.xlu0 %v1054, 24
      %v1776 = vpop.permute.xlu0 %1775
      %1777 = vrot.lane.b32.xlu0 %v1055, 24
      %v1778 = vpop.permute.xlu0 %1777
      %1779 = vrot.lane.b32.xlu0 %v1056, 24
      %v1780 = vpop.permute.xlu0 %1779
      %1781 = vrot.lane.b32.xlu0 %v1057, 24
      %v1782 = vpop.permute.xlu0 %1781
      %1783 = vrot.lane.b32.xlu0 %v1058, 24
      %v1784 = vpop.permute.xlu0 %1783
      %1785 = vrot.lane.b32.xlu0 %v1059, 24
      %v1786 = vpop.permute.xlu0 %1785
      %1787 = vrot.lane.b32.xlu0 %v1060, 24
      %v1788 = vpop.permute.xlu0 %1787
      %1789 = vrot.lane.b32.xlu0 %v1061, 24
      %v1790 = vpop.permute.xlu0 %1789
      %1791 = vrot.lane.b32.xlu0 %v1062, 24
      %v1792 = vpop.permute.xlu0 %1791
      %1793 = vrot.lane.b32.xlu0 %v1063, 24
      %v1794 = vpop.permute.xlu0 %1793
      %1795 = vrot.lane.b32.xlu0 %v1064, 24
      %v1796 = vpop.permute.xlu0 %1795
      %1797 = vrot.lane.b32.xlu0 %v1065, 24
      %v1798 = vpop.permute.xlu0 %1797
      %1799 = vrot.lane.b32.xlu0 %v1066, 24
      %v1800 = vpop.permute.xlu0 %1799
      %1801 = vrot.lane.b32.xlu0 %v1067, 24
      %v1802 = vpop.permute.xlu0 %1801
      %1803 = vrot.lane.b32.xlu0 %v1068, 24
      %v1804 = vpop.permute.xlu0 %1803
      %1805 = vrot.lane.b32.xlu0 %v1069, 24
      %v1806 = vpop.permute.xlu0 %1805
      %1807 = vrot.lane.b32.xlu0 %v1070, 24
      %v1808 = vpop.permute.xlu0 %1807
      %1809 = vrot.lane.b32.xlu0 %v1071, 24
      %v1810 = vpop.permute.xlu0 %1809
      %1811 = vrot.lane.b32.xlu0 %v1072, 24
      %v1812 = vpop.permute.xlu0 %1811
      %1813 = vrot.lane.b32.xlu0 %v1073, 24
      %v1814 = vpop.permute.xlu0 %1813
      %1815 = vrot.lane.b32.xlu0 %v1074, 24
      %v1816 = vpop.permute.xlu0 %1815
      %1851 = vrot.lane.b32.xlu0 %v815, 28
      %v1852 = vpop.permute.xlu0 %1851
      %1853 = vrot.lane.b32.xlu0 %v816, 28
      %v1854 = vpop.permute.xlu0 %1853
      %1855 = vrot.lane.b32.xlu0 %v817, 28
      %v1856 = vpop.permute.xlu0 %1855
      %1857 = vrot.lane.b32.xlu0 %v818, 28
      %v1858 = vpop.permute.xlu0 %1857
      %1859 = vrot.lane.b32.xlu0 %v819, 28
      %v1860 = vpop.permute.xlu0 %1859
      %1861 = vrot.lane.b32.xlu0 %v820, 28
      %v1862 = vpop.permute.xlu0 %1861
      %1863 = vrot.lane.b32.xlu0 %v821, 28
      %v1864 = vpop.permute.xlu0 %1863
      %1865 = vrot.lane.b32.xlu0 %v822, 28
      %v1866 = vpop.permute.xlu0 %1865
      %1867 = vrot.lane.b32.xlu0 %v823, 28
      %v1868 = vpop.permute.xlu0 %1867
      %1869 = vrot.lane.b32.xlu0 %v824, 28
      %v1870 = vpop.permute.xlu0 %1869
      %1871 = vrot.lane.b32.xlu0 %v825, 28
      %v1872 = vpop.permute.xlu0 %1871
      %1873 = vrot.lane.b32.xlu0 %v826, 28
      %v1874 = vpop.permute.xlu0 %1873
      %1875 = vrot.lane.b32.xlu0 %v827, 28
      %v1876 = vpop.permute.xlu0 %1875
      %1877 = vrot.lane.b32.xlu0 %v828, 28
      %v1878 = vpop.permute.xlu0 %1877
      %1879 = vrot.lane.b32.xlu0 %v829, 28
      %v1880 = vpop.permute.xlu0 %1879
      %1881 = vrot.lane.b32.xlu0 %v830, 28
      %v1882 = vpop.permute.xlu0 %1881
      %1883 = vrot.lane.b32.xlu0 %v831, 28
      %v1884 = vpop.permute.xlu0 %1883
      %1885 = vrot.lane.b32.xlu0 %v832, 28
      %v1886 = vpop.permute.xlu0 %1885
      %1887 = vrot.lane.b32.xlu0 %v833, 28
      %v1888 = vpop.permute.xlu0 %1887
      %1889 = vrot.lane.b32.xlu0 %v834, 28
      %v1890 = vpop.permute.xlu0 %1889
      %1891 = vrot.lane.b32.xlu0 %v835, 28
      %v1892 = vpop.permute.xlu0 %1891
      %1893 = vrot.lane.b32.xlu0 %v836, 28
      %v1894 = vpop.permute.xlu0 %1893
      %1895 = vrot.lane.b32.xlu0 %v837, 28
      %v1896 = vpop.permute.xlu0 %1895
      %1897 = vrot.lane.b32.xlu0 %v838, 28
      %v1898 = vpop.permute.xlu0 %1897
      %1899 = vrot.lane.b32.xlu0 %v839, 28
      %v1900 = vpop.permute.xlu0 %1899
      %1901 = vrot.lane.b32.xlu0 %v840, 28
      %v1902 = vpop.permute.xlu0 %1901
      %1903 = vrot.lane.b32.xlu0 %v841, 28
      %v1904 = vpop.permute.xlu0 %1903
      %1905 = vrot.lane.b32.xlu0 %v842, 28
      %v1906 = vpop.permute.xlu0 %1905
      %1907 = vrot.lane.b32.xlu0 %v1005, 28
      %v1908 = vpop.permute.xlu0 %1907
      %1909 = vrot.lane.b32.xlu0 %v1006, 28
      %v1910 = vpop.permute.xlu0 %1909
      %1911 = vrot.lane.b32.xlu0 %v1075, 28
      %v1912 = vpop.permute.xlu0 %1911
      %1913 = vrot.lane.b32.xlu0 %v1076, 28
      %v1914 = vpop.permute.xlu0 %1913
      %1979 = vrot.lane.b32.xlu0 %v1079, 32
      %v1980 = vpop.permute.xlu0 %1979
      %1981 = vrot.lane.b32.xlu0 %v1080, 32
      %v1982 = vpop.permute.xlu0 %1981
      %1983 = vrot.lane.b32.xlu0 %v1081, 32
      %v1984 = vpop.permute.xlu0 %1983
      %1985 = vrot.lane.b32.xlu0 %v1082, 32
      %v1986 = vpop.permute.xlu0 %1985
      %1987 = vrot.lane.b32.xlu0 %v1083, 32
      %v1988 = vpop.permute.xlu0 %1987
      %1989 = vrot.lane.b32.xlu0 %v1084, 32
      %v1990 = vpop.permute.xlu0 %1989
      %1991 = vrot.lane.b32.xlu0 %v1085, 32
      %v1992 = vpop.permute.xlu0 %1991
      %1993 = vrot.lane.b32.xlu0 %v1086, 32
      %v1994 = vpop.permute.xlu0 %1993
      %1995 = vrot.lane.b32.xlu0 %v1087, 32
      %v1996 = vpop.permute.xlu0 %1995
      %1997 = vrot.lane.b32.xlu0 %v1088, 32
      %v1998 = vpop.permute.xlu0 %1997
      %1999 = vrot.lane.b32.xlu0 %v1089, 32
      %v2000 = vpop.permute.xlu0 %1999
      %2001 = vrot.lane.b32.xlu0 %v1090, 32
      %v2002 = vpop.permute.xlu0 %2001
      %2003 = vrot.lane.b32.xlu0 %v1091, 32
      %v2004 = vpop.permute.xlu0 %2003
      %2005 = vrot.lane.b32.xlu0 %v1092, 32
      %v2006 = vpop.permute.xlu0 %2005
      %2007 = vrot.lane.b32.xlu0 %v1093, 32
      %v2008 = vpop.permute.xlu0 %2007
      %2009 = vrot.lane.b32.xlu0 %v1094, 32
      %v2010 = vpop.permute.xlu0 %2009
      %2011 = vrot.lane.b32.xlu0 %v1095, 32
      %v2012 = vpop.permute.xlu0 %2011
      %2013 = vrot.lane.b32.xlu0 %v1096, 32
      %v2014 = vpop.permute.xlu0 %2013
      %2015 = vrot.lane.b32.xlu0 %v1097, 32
      %v2016 = vpop.permute.xlu0 %2015
      %2017 = vrot.lane.b32.xlu0 %v1098, 32
      %v2018 = vpop.permute.xlu0 %2017
      %2019 = vrot.lane.b32.xlu0 %v1099, 32
      %v2020 = vpop.permute.xlu0 %2019
      %2021 = vrot.lane.b32.xlu0 %v1100, 32
      %v2022 = vpop.permute.xlu0 %2021
      %2023 = vrot.lane.b32.xlu0 %v1101, 32
      %v2024 = vpop.permute.xlu0 %2023
      %2025 = vrot.lane.b32.xlu0 %v1102, 32
      %v2026 = vpop.permute.xlu0 %2025
      %2027 = vrot.lane.b32.xlu0 %v1103, 32
      %v2028 = vpop.permute.xlu0 %2027
      %2029 = vrot.lane.b32.xlu0 %v1104, 32
      %v2030 = vpop.permute.xlu0 %2029
      %2031 = vrot.lane.b32.xlu0 %v1105, 32
      %v2032 = vpop.permute.xlu0 %2031
      %2033 = vrot.lane.b32.xlu0 %v1106, 32
      %v2034 = vpop.permute.xlu0 %2033
      %2035 = vrot.lane.b32.xlu0 %v1107, 32
      %v2036 = vpop.permute.xlu0 %2035
      %2037 = vrot.lane.b32.xlu0 %v1108, 32
      %v2038 = vpop.permute.xlu0 %2037
      %2039 = vrot.lane.b32.xlu0 %v1109, 32
      %v2040 = vpop.permute.xlu0 %2039
      %2041 = vrot.lane.b32.xlu0 %v1110, 32
      %v2042 = vpop.permute.xlu0 %2041
      %vm2075 = vcmask 31744
      %v2076 = vsel %vm2075, %v779, %v1144
      %v2077 = vsel %vm2075, %v780, %v1146
      %v2078 = vsel %vm2075, %v781, %v1148
      %v2079 = vsel %vm2075, %v782, %v1150
      %v2080 = vsel %vm2075, %v783, %v1152
      %v2081 = vsel %vm2075, %v784, %v1154
      %v2082 = vsel %vm2075, %v785, %v1156
      %v2083 = vsel %vm2075, %v786, %v1158
      %v2084 = vsel %vm2075, %v787, %v1160
      %v2085 = vsel %vm2075, %v788, %v1162
      %v2086 = vsel %vm2075, %v789, %v1164
      %v2087 = vsel %vm2075, %v790, %v1166
      %v2088 = vsel %vm2075, %v791, %v1168
      %v2089 = vsel %vm2075, %v792, %v1170
      %v2090 = vsel %vm2075, %v793, %v1172
      %v2091 = vsel %vm2075, %v794, %v1174
      %v2092 = vsel %vm2075, %v795, %v1176
      %v2093 = vsel %vm2075, %v796, %v1178
      %v2094 = vsel %vm2075, %v797, %v1180
      %v2095 = vsel %vm2075, %v798, %v1182
      %v2096 = vsel %vm2075, %v799, %v1184
      %v2097 = vsel %vm2075, %v800, %v1186
      %v2098 = vsel %vm2075, %v801, %v1188
      %v2099 = vsel %vm2075, %v802, %v1190
      %v2100 = vsel %vm2075, %v803, %v1192
      %v2101 = vsel %vm2075, %v804, %v1194
      %v2102 = vsel %vm2075, %v805, %v1196
      %v2103 = vsel %vm2075, %v806, %v1198
      %v2104 = vsel %vm2075, %v807, %v1200
      %v2105 = vsel %vm2075, %v808, %v1202
      %v2106 = vsel %vm2075, %v809, %v1204
      %v2107 = vsel %vm2075, %v810, %v1206
      %vm2108 = vcmask 64512
      %v2109 = vsel %vm2108, %v2076, %v1272
      %v2110 = vsel %vm2108, %v2077, %v1274
      %v2111 = vsel %vm2108, %v2078, %v1276
      %v2112 = vsel %vm2108, %v2079, %v1278
      %v2113 = vsel %vm2108, %v2080, %v1280
      %v2114 = vsel %vm2108, %v2081, %v1282
      %v2115 = vsel %vm2108, %v2082, %v1284
      %v2116 = vsel %vm2108, %v2083, %v1286
      %v2117 = vsel %vm2108, %v2084, %v1288
      %v2118 = vsel %vm2108, %v2085, %v1290
      %v2119 = vsel %vm2108, %v2086, %v1292
      %v2120 = vsel %vm2108, %v2087, %v1294
      %v2121 = vsel %vm2108, %v2088, %v1296
      %v2122 = vsel %vm2108, %v2089, %v1298
      %v2123 = vsel %vm2108, %v2090, %v1300
      %v2124 = vsel %vm2108, %v2091, %v1302
      %v2125 = vsel %vm2108, %v2092, %v1304
      %v2126 = vsel %vm2108, %v2093, %v1306
      %v2127 = vsel %vm2108, %v2094, %v1308
      %v2128 = vsel %vm2108, %v2095, %v1310
      %v2129 = vsel %vm2108, %v2096, %v1312
      %v2130 = vsel %vm2108, %v2097, %v1314
      %v2131 = vsel %vm2108, %v2098, %v1316
      %v2132 = vsel %vm2108, %v2099, %v1318
      %v2133 = vsel %vm2108, %v2100, %v1320
      %v2134 = vsel %vm2108, %v2101, %v1322
      %v2135 = vsel %vm2108, %v2102, %v1324
      %v2136 = vsel %vm2108, %v2103, %v1326
      %v2137 = vsel %vm2108, %v2104, %v1328
      %v2138 = vsel %vm2108, %v2105, %v1330
      %v2139 = vsel %vm2108, %v2106, %v1332
      %v2140 = vsel %vm2108, %v2107, %v1334
      %vm2141 = vcmask 97280
      %v2142 = vsel %vm2141, %v2109, %v1400
      %v2143 = vsel %vm2141, %v2110, %v1402
      %v2144 = vsel %vm2141, %v2111, %v1404
      %v2145 = vsel %vm2141, %v2112, %v1406
      %v2146 = vsel %vm2141, %v2113, %v1408
      %v2147 = vsel %vm2141, %v2114, %v1410
      %v2148 = vsel %vm2141, %v2115, %v1412
      %v2149 = vsel %vm2141, %v2116, %v1414
      %v2150 = vsel %vm2141, %v2117, %v1416
      %v2151 = vsel %vm2141, %v2118, %v1418
      %v2152 = vsel %vm2141, %v2119, %v1420
      %v2153 = vsel %vm2141, %v2120, %v1422
      %v2154 = vsel %vm2141, %v2121, %v1424
      %v2155 = vsel %vm2141, %v2122, %v1426
      %v2156 = vsel %vm2141, %v2123, %v1428
      %v2157 = vsel %vm2141, %v2124, %v1430
      %v2158 = vsel %vm2141, %v2125, %v1432
      %v2159 = vsel %vm2141, %v2126, %v1434
      %v2160 = vsel %vm2141, %v2127, %v1436
      %v2161 = vsel %vm2141, %v2128, %v1438
      %v2162 = vsel %vm2141, %v2129, %v1440
      %v2163 = vsel %vm2141, %v2130, %v1442
      %v2164 = vsel %vm2141, %v2131, %v1444
      %v2165 = vsel %vm2141, %v2132, %v1446
      %v2166 = vsel %vm2141, %v2133, %v1448
      %v2167 = vsel %vm2141, %v2134, %v1450
      %v2168 = vsel %vm2141, %v2135, %v1452
      %v2169 = vsel %vm2141, %v2136, %v1454
      %v2170 = vsel %vm2141, %v2137, %v1456
      %v2171 = vsel %vm2141, %v2138, %v1458
      %v2172 = vsel %vm2141, %v2139, %v1460
      %v2173 = vsel %vm2141, %v2140, %v1462
      %vm2174 = vcmask 130048
      %v2175 = vsel %vm2174, %v2142, %v1498
      %v2176 = vsel %vm2174, %v2143, %v1500
      %v2177 = vsel %vm2174, %v2144, %v1502
      %v2178 = vsel %vm2174, %v2145, %v1504
      %v2179 = vsel %vm2174, %v2146, %v1506
      %v2180 = vsel %vm2174, %v2147, %v1508
      %v2181 = vsel %vm2174, %v2148, %v1510
      %v2182 = vsel %vm2174, %v2149, %v1512
      %v2183 = vsel %vm2174, %v2150, %v1514
      %v2184 = vsel %vm2174, %v2151, %v1516
      %v2185 = vsel %vm2174, %v2152, %v1518
      %v2186 = vsel %vm2174, %v2153, %v1520
      %v2187 = vsel %vm2174, %v2154, %v1522
      %v2188 = vsel %vm2174, %v2155, %v1524
      %v2189 = vsel %vm2174, %v2156, %v1526
      %v2190 = vsel %vm2174, %v2157, %v1528
      %v2191 = vsel %vm2174, %v2158, %v1530
      %v2192 = vsel %vm2174, %v2159, %v1532
      %v2193 = vsel %vm2174, %v2160, %v1534
      %v2194 = vsel %vm2174, %v2161, %v1536
      %v2195 = vsel %vm2174, %v2162, %v1538
      %v2196 = vsel %vm2174, %v2163, %v1540
      %v2197 = vsel %vm2174, %v2164, %v1542
      %v2198 = vsel %vm2174, %v2165, %v1544
      %v2199 = vsel %vm2174, %v2166, %v1546
      %v2200 = vsel %vm2174, %v2167, %v1548
      %v2201 = vsel %vm2174, %v2168, %v1550
      %v2202 = vsel %vm2174, %v2169, %v1552
      %v2203 = vsel %vm2174, %v2170, %v1554
      %v2204 = vsel %vm2174, %v2171, %v1556
      %v2205 = vsel %vm2174, %v2172, %v1558
      %v2206 = vsel %vm2174, %v2173, %v1560
      %vm2207 = vcmask 162816
      %v2208 = vsel %vm2207, %v2175, %v1626
      %v2209 = vsel %vm2207, %v2176, %v1628
      %v2210 = vsel %vm2207, %v2177, %v1630
      %v2211 = vsel %vm2207, %v2178, %v1632
      %v2212 = vsel %vm2207, %v2179, %v1634
      %v2213 = vsel %vm2207, %v2180, %v1636
      %v2214 = vsel %vm2207, %v2181, %v1638
      %v2215 = vsel %vm2207, %v2182, %v1640
      %v2216 = vsel %vm2207, %v2183, %v1642
      %v2217 = vsel %vm2207, %v2184, %v1644
      %v2218 = vsel %vm2207, %v2185, %v1646
      %v2219 = vsel %vm2207, %v2186, %v1648
      %v2220 = vsel %vm2207, %v2187, %v1650
      %v2221 = vsel %vm2207, %v2188, %v1652
      %v2222 = vsel %vm2207, %v2189, %v1654
      %v2223 = vsel %vm2207, %v2190, %v1656
      %v2224 = vsel %vm2207, %v2191, %v1658
      %v2225 = vsel %vm2207, %v2192, %v1660
      %v2226 = vsel %vm2207, %v2193, %v1662
      %v2227 = vsel %vm2207, %v2194, %v1664
      %v2228 = vsel %vm2207, %v2195, %v1666
      %v2229 = vsel %vm2207, %v2196, %v1668
      %v2230 = vsel %vm2207, %v2197, %v1670
      %v2231 = vsel %vm2207, %v2198, %v1672
      %v2232 = vsel %vm2207, %v2199, %v1674
      %v2233 = vsel %vm2207, %v2200, %v1676
      %v2234 = vsel %vm2207, %v2201, %v1678
      %v2235 = vsel %vm2207, %v2202, %v1680
      %v2236 = vsel %vm2207, %v2203, %v1682
      %v2237 = vsel %vm2207, %v2204, %v1684
      %v2238 = vsel %vm2207, %v2205, %v1686
      %v2239 = vsel %vm2207, %v2206, %v1688
      %vm2240 = vcmask 195584
      %v2241 = vsel %vm2240, %v2208, %v1754
      %v2242 = vsel %vm2240, %v2209, %v1756
      %v2243 = vsel %vm2240, %v2210, %v1758
      %v2244 = vsel %vm2240, %v2211, %v1760
      %v2245 = vsel %vm2240, %v2212, %v1762
      %v2246 = vsel %vm2240, %v2213, %v1764
      %v2247 = vsel %vm2240, %v2214, %v1766
      %v2248 = vsel %vm2240, %v2215, %v1768
      %v2249 = vsel %vm2240, %v2216, %v1770
      %v2250 = vsel %vm2240, %v2217, %v1772
      %v2251 = vsel %vm2240, %v2218, %v1774
      %v2252 = vsel %vm2240, %v2219, %v1776
      %v2253 = vsel %vm2240, %v2220, %v1778
      %v2254 = vsel %vm2240, %v2221, %v1780
      %v2255 = vsel %vm2240, %v2222, %v1782
      %v2256 = vsel %vm2240, %v2223, %v1784
      %v2257 = vsel %vm2240, %v2224, %v1786
      %v2258 = vsel %vm2240, %v2225, %v1788
      %v2259 = vsel %vm2240, %v2226, %v1790
      %v2260 = vsel %vm2240, %v2227, %v1792
      %v2261 = vsel %vm2240, %v2228, %v1794
      %v2262 = vsel %vm2240, %v2229, %v1796
      %v2263 = vsel %vm2240, %v2230, %v1798
      %v2264 = vsel %vm2240, %v2231, %v1800
      %v2265 = vsel %vm2240, %v2232, %v1802
      %v2266 = vsel %vm2240, %v2233, %v1804
      %v2267 = vsel %vm2240, %v2234, %v1806
      %v2268 = vsel %vm2240, %v2235, %v1808
      %v2269 = vsel %vm2240, %v2236, %v1810
      %v2270 = vsel %vm2240, %v2237, %v1812
      %v2271 = vsel %vm2240, %v2238, %v1814
      %v2272 = vsel %vm2240, %v2239, %v1816
      %vm2273 = vcmask 228352
      %v2274 = vsel %vm2273, %v2241, %v1852
      %v2275 = vsel %vm2273, %v2242, %v1854
      %v2276 = vsel %vm2273, %v2243, %v1856
      %v2277 = vsel %vm2273, %v2244, %v1858
      %v2278 = vsel %vm2273, %v2245, %v1860
      %v2279 = vsel %vm2273, %v2246, %v1862
      %v2280 = vsel %vm2273, %v2247, %v1864
      %v2281 = vsel %vm2273, %v2248, %v1866
      %v2282 = vsel %vm2273, %v2249, %v1868
      %v2283 = vsel %vm2273, %v2250, %v1870
      %v2284 = vsel %vm2273, %v2251, %v1872
      %v2285 = vsel %vm2273, %v2252, %v1874
      %v2286 = vsel %vm2273, %v2253, %v1876
      %v2287 = vsel %vm2273, %v2254, %v1878
      %v2288 = vsel %vm2273, %v2255, %v1880
      %v2289 = vsel %vm2273, %v2256, %v1882
      %v2290 = vsel %vm2273, %v2257, %v1884
      %v2291 = vsel %vm2273, %v2258, %v1886
      %v2292 = vsel %vm2273, %v2259, %v1888
      %v2293 = vsel %vm2273, %v2260, %v1890
      %v2294 = vsel %vm2273, %v2261, %v1892
      %v2295 = vsel %vm2273, %v2262, %v1894
      %v2296 = vsel %vm2273, %v2263, %v1896
      %v2297 = vsel %vm2273, %v2264, %v1898
      %v2298 = vsel %vm2273, %v2265, %v1900
      %v2299 = vsel %vm2273, %v2266, %v1902
      %v2300 = vsel %vm2273, %v2267, %v1904
      %v2301 = vsel %vm2273, %v2268, %v1906
      %v2302 = vsel %vm2273, %v2269, %v1908
      %v2303 = vsel %vm2273, %v2270, %v1910
      %v2304 = vsel %vm2273, %v2271, %v1912
      %v2305 = vsel %vm2273, %v2272, %v1914
      %vm2306 = vcmask 261120
      %v2307 = vsel %vm2306, %v2274, %v1980
      %v2308 = vsel %vm2306, %v2275, %v1982
      %v2309 = vsel %vm2306, %v2276, %v1984
      %v2310 = vsel %vm2306, %v2277, %v1986
      %v2311 = vsel %vm2306, %v2278, %v1988
      %v2312 = vsel %vm2306, %v2279, %v1990
      %v2313 = vsel %vm2306, %v2280, %v1992
      %v2314 = vsel %vm2306, %v2281, %v1994
      %v2315 = vsel %vm2306, %v2282, %v1996
      %v2316 = vsel %vm2306, %v2283, %v1998
      %v2317 = vsel %vm2306, %v2284, %v2000
      %v2318 = vsel %vm2306, %v2285, %v2002
      %v2319 = vsel %vm2306, %v2286, %v2004
      %v2320 = vsel %vm2306, %v2287, %v2006
      %v2321 = vsel %vm2306, %v2288, %v2008
      %v2322 = vsel %vm2306, %v2289, %v2010
      %v2323 = vsel %vm2306, %v2290, %v2012
      %v2324 = vsel %vm2306, %v2291, %v2014
      %v2325 = vsel %vm2306, %v2292, %v2016
      %v2326 = vsel %vm2306, %v2293, %v2018
      %v2327 = vsel %vm2306, %v2294, %v2020
      %v2328 = vsel %vm2306, %v2295, %v2022
      %v2329 = vsel %vm2306, %v2296, %v2024
      %v2330 = vsel %vm2306, %v2297, %v2026
      %v2331 = vsel %vm2306, %v2298, %v2028
      %v2332 = vsel %vm2306, %v2299, %v2030
      %v2333 = vsel %vm2306, %v2300, %v2032
      %v2334 = vsel %vm2306, %v2301, %v2034
      %v2335 = vsel %vm2306, %v2302, %v2036
      %v2336 = vsel %vm2306, %v2303, %v2038
      %v2337 = vsel %vm2306, %v2304, %v2040
      %v2338 = vsel %vm2306, %v2305, %v2042
      %v2339 = vpack.c.bf16 %v2308, %v2307
      %v2340 = vpack.c.bf16 %v2310, %v2309
      %v2341 = vpack.c.bf16 %v2312, %v2311
      %v2342 = vpack.c.bf16 %v2314, %v2313
      %v2343 = vpack.c.bf16 %v2316, %v2315
      %v2344 = vpack.c.bf16 %v2318, %v2317
      %v2345 = vpack.c.bf16 %v2320, %v2319
      %v2346 = vpack.c.bf16 %v2322, %v2321
      %v2347 = vpack.c.bf16 %v2324, %v2323
      %v2348 = vpack.c.bf16 %v2326, %v2325
      %v2349 = vpack.c.bf16 %v2328, %v2327
      %v2350 = vpack.c.bf16 %v2330, %v2329
      %v2351 = vpack.c.bf16 %v2332, %v2331
      %v2352 = vpack.c.bf16 %v2334, %v2333
      %v2353 = vpack.c.bf16 %v2336, %v2335
      %v2354 = vpack.c.bf16 %v2338, %v2337
      %v2355 = vld [vmem:[%s1] sm:$0xf]
      %v2356 = vld [vmem:[%s1 + $0x4] sm:$0xf]
      %v2357 = vld [vmem:[%s1 + $0x8] sm:$0xf]
      %v2358 = vld [vmem:[%s1 + $0xc] sm:$0xf]
      %v2359 = vld [vmem:[%s1 + $0x10] sm:$0x3]
      %v2360 = vld [vmem:[%s3] sm:$0x1]
      %v2362 = vlaneseq
      %v2363 = vshrl.u32 %v2362, 7
      %v2364 = vsub.s32 0, %v2363
      %v2365 = vrot.slane %v2360, %v2364
      %v2372 = vunpack.c.l.b16 %v2355
      %v2373 = vunpack.c.l.b16 %v2356
      %v2374 = vunpack.c.l.b16 %v2357
      %v2375 = vunpack.c.l.b16 %v2358
      %v2376 = vunpack.c.l.b16 %v2359
      %v2377 = vpack.c.b16 %v2373, %v2372
      %v2378 = vpack.c.b16 %v2375, %v2374
      %v2379 = vpack.c.b16 %v2376, %v2376
      %vm2382 = vcmask 293888
      %v2384 = vsel %vm2382, %v2339, 0
      %v2387 = vsel %vm2382, %v2340, 0
      %v2390 = vsel %vm2382, %v2341, 0
      %v2393 = vsel %vm2382, %v2342, 0
      %v2396 = vsel %vm2382, %v2343, 0
      %v2399 = vsel %vm2382, %v2344, 0
      %v2402 = vsel %vm2382, %v2345, 0
      %v2405 = vsel %vm2382, %v2346, 0
      %v2408 = vsel %vm2382, %v2347, 0
      %v2411 = vsel %vm2382, %v2348, 0
      %v2414 = vsel %vm2382, %v2349, 0
      %v2417 = vsel %vm2382, %v2350, 0
      %v2420 = vsel %vm2382, %v2351, 0
      %v2423 = vsel %vm2382, %v2352, 0
      %v2426 = vsel %vm2382, %v2353, 0
      %v2429 = vsel %vm2382, %v2354, 0
      %vm2431 = vcmask 1041408
      %v2433 = vsel %vm2431, %v2379, 0
      %2435 = vmatprep.subr.bf16.mxu0 0
      %2436 = vmatpush1.bf16.msra.mxu0 0
      %2437 = vmatprep.subr.bf16.mxu0 0
      %2438 = vmatpush1.bf16.msra.mxu0 0
      %2439 = vmatprep.subr.bf16.mxu0 0
      %2440 = vmatpush1.bf16.msra.mxu0 0
      %2441 = vmatprep.subr.bf16.mxu0 0
      %2442 = vmatpush1.bf16.msra.mxu0 0
      %2443 = vmatprep.subr.bf16.mxu0 0
      %2444 = vmatpush1.bf16.msra.mxu0 0
      %2445 = vmatprep.subr.bf16.mxu0 0
      %2446 = vmatpush1.bf16.msra.mxu0 %v2433
      %2447 = vmatprep.subr.bf16.mxu0 0
      %2448 = vmatpush1.bf16.msra.mxu0 %v2378
      %2449 = vmatprep.subr.bf16.mxu0 0
      %2450 = vmatpush1.bf16.msra.mxu0 %v2377
      %2451 = vmatprep.subr.bf16.mxu0 0
      %2452 = vmatpush2.bf16.msra.mxu0 0
      %2453 = vmatprep.subr.bf16.mxu0 0
      %2454 = vmatpush2.bf16.msra.mxu0 0
      %2455 = vmatprep.subr.bf16.mxu0 0
      %2456 = vmatpush2.bf16.msra.mxu0 0
      %2457 = vmatprep.subr.bf16.mxu0 0
      %2458 = vmatpush2.bf16.msra.mxu0 0
      %2459 = vmatprep.subr.bf16.mxu0 0
      %2460 = vmatpush2.bf16.msra.mxu0 0
      %2461 = vmatprep.subr.bf16.mxu0 0
      %2462 = vmatpush2.bf16.msra.mxu0 0
      %2463 = vmatprep.subr.bf16.mxu0 0
      %2464 = vmatpush2.bf16.msra.mxu0 0
      %2465 = vmatprep.subr.bf16.mxu0 0
      %2466 = vmatpush2.bf16.msra.mxu0 0
      %2467 = vmatprep.mubr.bf16.mxu0 0
      %2468 = vmatmul.mubr.bf16.gmra.mxu0 %v2384
      %v2469 = vpop.f32.mrf.mxu0
      %v2470 = vadd.f32 %v2365, %v2469
      %v2471 = vpop.f32.mrf.mxu0
      %v2472 = vpop.f32.mrf.mxu0
      %v2473 = vadd.f32 %v2365, %v2472
      %v2474 = vpop.f32.mrf.mxu0
      %2475 = vmatprep.mubr.bf16.mxu0 0
      %2476 = vmatmul.mubr.bf16.gmra.mxu0 %v2387
      %v2477 = vpop.f32.mrf.mxu0
      %v2478 = vadd.f32 %v2365, %v2477
      %v2479 = vpop.f32.mrf.mxu0
      %v2480 = vpop.f32.mrf.mxu0
      %v2481 = vadd.f32 %v2365, %v2480
      %v2482 = vpop.f32.mrf.mxu0
      %2483 = vmatprep.mubr.bf16.mxu0 0
      %2484 = vmatmul.mubr.bf16.gmra.mxu0 %v2390
      %v2485 = vpop.f32.mrf.mxu0
      %v2486 = vadd.f32 %v2365, %v2485
      %v2487 = vpop.f32.mrf.mxu0
      %v2488 = vpop.f32.mrf.mxu0
      %v2489 = vadd.f32 %v2365, %v2488
      %v2490 = vpop.f32.mrf.mxu0
      %2491 = vmatprep.mubr.bf16.mxu0 0
      %2492 = vmatmul.mubr.bf16.gmra.mxu0 %v2393
      %v2493 = vpop.f32.mrf.mxu0
      %v2494 = vadd.f32 %v2365, %v2493
      %v2495 = vpop.f32.mrf.mxu0
      %v2496 = vpop.f32.mrf.mxu0
      %v2497 = vadd.f32 %v2365, %v2496
      %v2498 = vpop.f32.mrf.mxu0
      %2499 = vmatprep.mubr.bf16.mxu0 0
      %2500 = vmatmul.mubr.bf16.gmra.mxu0 %v2396
      %v2501 = vpop.f32.mrf.mxu0
      %v2502 = vadd.f32 %v2365, %v2501
      %v2503 = vpop.f32.mrf.mxu0
      %v2504 = vpop.f32.mrf.mxu0
      %v2505 = vadd.f32 %v2365, %v2504
      %v2506 = vpop.f32.mrf.mxu0
      %2507 = vmatprep.mubr.bf16.mxu0 0
      %2508 = vmatmul.mubr.bf16.gmra.mxu0 %v2399
      %v2509 = vpop.f32.mrf.mxu0
      %v2510 = vadd.f32 %v2365, %v2509
      %v2511 = vpop.f32.mrf.mxu0
      %v2512 = vpop.f32.mrf.mxu0
      %v2513 = vadd.f32 %v2365, %v2512
      %v2514 = vpop.f32.mrf.mxu0
      %2515 = vmatprep.mubr.bf16.mxu0 0
      %2516 = vmatmul.mubr.bf16.gmra.mxu0 %v2402
      %v2517 = vpop.f32.mrf.mxu0
      %v2518 = vadd.f32 %v2365, %v2517
      %v2519 = vpop.f32.mrf.mxu0
      %v2520 = vpop.f32.mrf.mxu0
      %v2521 = vadd.f32 %v2365, %v2520
      %v2522 = vpop.f32.mrf.mxu0
      %2523 = vmatprep.mubr.bf16.mxu0 0
      %2524 = vmatmul.mubr.bf16.gmra.mxu0 %v2405
      %v2525 = vpop.f32.mrf.mxu0
      %v2526 = vadd.f32 %v2365, %v2525
      %v2527 = vpop.f32.mrf.mxu0
      %v2528 = vpop.f32.mrf.mxu0
      %v2529 = vadd.f32 %v2365, %v2528
      %v2530 = vpop.f32.mrf.mxu0
      %2531 = vmatprep.mubr.bf16.mxu0 0
      %2532 = vmatmul.mubr.bf16.gmra.mxu0 %v2408
      %v2533 = vpop.f32.mrf.mxu0
      %v2534 = vadd.f32 %v2365, %v2533
      %v2535 = vpop.f32.mrf.mxu0
      %v2536 = vpop.f32.mrf.mxu0
      %v2537 = vadd.f32 %v2365, %v2536
      %v2538 = vpop.f32.mrf.mxu0
      %2539 = vmatprep.mubr.bf16.mxu0 0
      %2540 = vmatmul.mubr.bf16.gmra.mxu0 %v2411
      %v2541 = vpop.f32.mrf.mxu0
      %v2542 = vadd.f32 %v2365, %v2541
      %v2543 = vpop.f32.mrf.mxu0
      %v2544 = vpop.f32.mrf.mxu0
      %v2545 = vadd.f32 %v2365, %v2544
      %v2546 = vpop.f32.mrf.mxu0
      %2547 = vmatprep.mubr.bf16.mxu0 0
      %2548 = vmatmul.mubr.bf16.gmra.mxu0 %v2414
      %v2549 = vpop.f32.mrf.mxu0
      %v2550 = vadd.f32 %v2365, %v2549
      %v2551 = vpop.f32.mrf.mxu0
      %v2552 = vpop.f32.mrf.mxu0
      %v2553 = vadd.f32 %v2365, %v2552
      %v2554 = vpop.f32.mrf.mxu0
      %2555 = vmatprep.mubr.bf16.mxu0 0
      %2556 = vmatmul.mubr.bf16.gmra.mxu0 %v2417
      %v2557 = vpop.f32.mrf.mxu0
      %v2558 = vadd.f32 %v2365, %v2557
      %v2559 = vpop.f32.mrf.mxu0
      %v2560 = vpop.f32.mrf.mxu0
      %v2561 = vadd.f32 %v2365, %v2560
      %v2562 = vpop.f32.mrf.mxu0
      %2563 = vmatprep.mubr.bf16.mxu0 0
      %2564 = vmatmul.mubr.bf16.gmra.mxu0 %v2420
      %v2565 = vpop.f32.mrf.mxu0
      %v2566 = vadd.f32 %v2365, %v2565
      %v2567 = vpop.f32.mrf.mxu0
      %v2568 = vpop.f32.mrf.mxu0
      %v2569 = vadd.f32 %v2365, %v2568
      %v2570 = vpop.f32.mrf.mxu0
      %2571 = vmatprep.mubr.bf16.mxu0 0
      %2572 = vmatmul.mubr.bf16.gmra.mxu0 %v2423
      %v2573 = vpop.f32.mrf.mxu0
      %v2574 = vadd.f32 %v2365, %v2573
      %v2575 = vpop.f32.mrf.mxu0
      %v2576 = vpop.f32.mrf.mxu0
      %v2577 = vadd.f32 %v2365, %v2576
      %v2578 = vpop.f32.mrf.mxu0
      %2579 = vmatprep.mubr.bf16.mxu0 0
      %2580 = vmatmul.mubr.bf16.gmra.mxu0 %v2426
      %v2581 = vpop.f32.mrf.mxu0
      %v2582 = vadd.f32 %v2365, %v2581
      %v2583 = vpop.f32.mrf.mxu0
      %v2584 = vpop.f32.mrf.mxu0
      %v2585 = vadd.f32 %v2365, %v2584
      %v2586 = vpop.f32.mrf.mxu0
      %2587 = vmatprep.mubr.bf16.mxu0 0
      %2588 = vmatmul.mubr.bf16.gmra.mxu0 %v2429
      %v2589 = vpop.f32.mrf.mxu0
      %v2590 = vadd.f32 %v2365, %v2589
      %v2591 = vpop.f32.mrf.mxu0
      %v2592 = vpop.f32.mrf.mxu0
      %v2593 = vadd.f32 %v2365, %v2592
      %v2594 = vpop.f32.mrf.mxu0
      %2595 = vdwg.mxu0
      %v2596 = vmax.f32 %v2470, 0.0
      %v2597 = vmax.f32 %v2473, 0.0
      %v2598 = vmax.f32 %v2478, 0.0
      %v2599 = vmax.f32 %v2481, 0.0
      %v2600 = vmax.f32 %v2486, 0.0
      %v2601 = vmax.f32 %v2489, 0.0
      %v2602 = vmax.f32 %v2494, 0.0
      %v2603 = vmax.f32 %v2497, 0.0
      %v2604 = vmax.f32 %v2502, 0.0
      %v2605 = vmax.f32 %v2505, 0.0
      %v2606 = vmax.f32 %v2510, 0.0
      %v2607 = vmax.f32 %v2513, 0.0
      %v2608 = vmax.f32 %v2518, 0.0
      %v2609 = vmax.f32 %v2521, 0.0
      %v2610 = vmax.f32 %v2526, 0.0
      %v2611 = vmax.f32 %v2529, 0.0
      %v2612 = vmax.f32 %v2534, 0.0
      %v2613 = vmax.f32 %v2537, 0.0
      %v2614 = vmax.f32 %v2542, 0.0
      %v2615 = vmax.f32 %v2545, 0.0
      %v2616 = vmax.f32 %v2550, 0.0
      %v2617 = vmax.f32 %v2553, 0.0
      %v2618 = vmax.f32 %v2558, 0.0
      %v2619 = vmax.f32 %v2561, 0.0
      %v2620 = vmax.f32 %v2566, 0.0
      %v2621 = vmax.f32 %v2569, 0.0
      %v2622 = vmax.f32 %v2574, 0.0
      %v2623 = vmax.f32 %v2577, 0.0
      %v2624 = vmax.f32 %v2582, 0.0
      %v2625 = vmax.f32 %v2585, 0.0
      %v2626 = vmax.f32 %v2590, 0.0
      %v2627 = vmax.f32 %v2593, 0.0
      %2628 = vst.msk [vmem:[#allocation2] sm:$0xff] %vm2075, 0.0
      %2629 = vst.msk [vmem:[#allocation2 + $0x8] sm:$0xff] %vm2075, 0.0
      %2630 = vst.msk [vmem:[#allocation2 + $0x10] sm:$0xff] %vm2075, 0.0
      %2631 = vst.msk [vmem:[#allocation2 + $0x118] sm:$0xff] %vm2075, 0.0
      %2632 = vst.msk [vmem:[#allocation2 + $0x120] sm:$0xff] %vm2075, 0.0
      %2633 = vst.msk [vmem:[#allocation2 + $0x128] sm:$0xff] %vm2075, 0.0
      %2634 = vst.msk [vmem:[#allocation2 + $0x18] sm:$0xff] %vm2075, %v2596
      %2635 = vst.msk [vmem:[#allocation2 + $0x20] sm:$0xff] %vm2075, %v2597
      %2636 = vst.msk [vmem:[#allocation2 + $0x28] sm:$0xff] %vm2075, %v2598
      %2637 = vst.msk [vmem:[#allocation2 + $0x30] sm:$0xff] %vm2075, %v2599
      %2638 = vst.msk [vmem:[#allocation2 + $0x38] sm:$0xff] %vm2075, %v2600
      %2639 = vst.msk [vmem:[#allocation2 + $0x40] sm:$0xff] %vm2075, %v2601
      %2640 = vst.msk [vmem:[#allocation2 + $0x48] sm:$0xff] %vm2075, %v2602
      %2641 = vst.msk [vmem:[#allocation2 + $0x50] sm:$0xff] %vm2075, %v2603
      %2642 = vst.msk [vmem:[#allocation2 + $0x58] sm:$0xff] %vm2075, %v2604
      %2643 = vst.msk [vmem:[#allocation2 + $0x60] sm:$0xff] %vm2075, %v2605
      %2644 = vst.msk [vmem:[#allocation2 + $0x68] sm:$0xff] %vm2075, %v2606
      %2645 = vst.msk [vmem:[#allocation2 + $0x70] sm:$0xff] %vm2075, %v2607
      %2646 = vst.msk [vmem:[#allocation2 + $0x78] sm:$0xff] %vm2075, %v2608
      %2647 = vst.msk [vmem:[#allocation2 + $0x80] sm:$0xff] %vm2075, %v2609
      %2648 = vst.msk [vmem:[#allocation2 + $0x88] sm:$0xff] %vm2075, %v2610
      %2649 = vst.msk [vmem:[#allocation2 + $0x90] sm:$0xff] %vm2075, %v2611
      %2650 = vst.msk [vmem:[#allocation2 + $0x98] sm:$0xff] %vm2075, %v2612
      %2651 = vst.msk [vmem:[#allocation2 + $0xa0] sm:$0xff] %vm2075, %v2613
      %2652 = vst.msk [vmem:[#allocation2 + $0xa8] sm:$0xff] %vm2075, %v2614
      %2653 = vst.msk [vmem:[#allocation2 + $0xb0] sm:$0xff] %vm2075, %v2615
      %2654 = vst.msk [vmem:[#allocation2 + $0xb8] sm:$0xff] %vm2075, %v2616
      %2655 = vst.msk [vmem:[#allocation2 + $0xc0] sm:$0xff] %vm2075, %v2617
      %2656 = vst.msk [vmem:[#allocation2 + $0xc8] sm:$0xff] %vm2075, %v2618
      %2657 = vst.msk [vmem:[#allocation2 + $0xd0] sm:$0xff] %vm2075, %v2619
      %2658 = vst.msk [vmem:[#allocation2 + $0xd8] sm:$0xff] %vm2075, %v2620
      %2659 = vst.msk [vmem:[#allocation2 + $0xe0] sm:$0xff] %vm2075, %v2621
      %2660 = vst.msk [vmem:[#allocation2 + $0xe8] sm:$0xff] %vm2075, %v2622
      %2661 = vst.msk [vmem:[#allocation2 + $0xf0] sm:$0xff] %vm2075, %v2623
      %2662 = vst.msk [vmem:[#allocation2 + $0xf8] sm:$0xff] %vm2075, %v2624
      %2663 = vst.msk [vmem:[#allocation2 + $0x100] sm:$0xff] %vm2075, %v2625
      %2664 = vst.msk [vmem:[#allocation2 + $0x108] sm:$0xff] %vm2075, %v2626
      %2665 = vst.msk [vmem:[#allocation2 + $0x110] sm:$0xff] %vm2075, %v2627
      %v2666 = vld [vmem:[%s193 + $0x18] sm:$0xff]
      %v2667 = vld [vmem:[%s193 + $0x20] sm:$0xff]
      %v2668 = vld [vmem:[%s193 + $0x28] sm:$0xff]
      %v2669 = vld [vmem:[%s193 + $0x30] sm:$0xff]
      %v2670 = vld [vmem:[%s193 + $0x38] sm:$0xff]
      %v2671 = vld [vmem:[%s193 + $0x40] sm:$0xff]
      %v2672 = vld [vmem:[%s193 + $0x48] sm:$0xff]
      %v2673 = vld [vmem:[%s193 + $0x50] sm:$0xff]
      %v2674 = vld [vmem:[%s193 + $0x58] sm:$0xff]
      %v2675 = vld [vmem:[%s193 + $0x60] sm:$0xff]
      %v2676 = vld [vmem:[%s193 + $0x68] sm:$0xff]
      %v2677 = vld [vmem:[%s193 + $0x70] sm:$0xff]
      %v2678 = vld [vmem:[%s193 + $0x78] sm:$0xff]
      %v2679 = vld [vmem:[%s193 + $0x80] sm:$0xff]
      %v2680 = vld [vmem:[%s193 + $0x88] sm:$0xff]
      %v2681 = vld [vmem:[%s193 + $0x90] sm:$0xff]
      %v2682 = vld [vmem:[%s193 + $0x98] sm:$0xff]
      %v2683 = vld [vmem:[%s193 + $0xa0] sm:$0xff]
      %v2684 = vld [vmem:[%s193 + $0xa8] sm:$0xff]
      %v2685 = vld [vmem:[%s193 + $0xb0] sm:$0xff]
      %v2686 = vld [vmem:[%s193 + $0xb8] sm:$0xff]
      %v2687 = vld [vmem:[%s193 + $0xc0] sm:$0xff]
      %v2688 = vld [vmem:[%s193 + $0xc8] sm:$0xff]
      %v2689 = vld [vmem:[%s193 + $0xd0] sm:$0xff]
      %v2690 = vld [vmem:[%s193 + $0xd8] sm:$0xff]
      %v2691 = vld [vmem:[%s193 + $0xe0] sm:$0xff]
      %v2692 = vld [vmem:[%s193 + $0xe8] sm:$0xff]
      %v2693 = vld [vmem:[%s193 + $0xf0] sm:$0xff]
      %v2694 = vld [vmem:[%s193 + $0xf8] sm:$0xff]
      %v2695 = vld [vmem:[%s193 + $0x100] sm:$0xff]
      %v2696 = vld [vmem:[%s193 + $0x108] sm:$0xff]
      %v2697 = vld [vmem:[%s193 + $0x110] sm:$0xff]
      %v2698 = vld [vmem:[#allocation2 + $0x7] sm:$0xff]
      %v2699 = vld [vmem:[#allocation2 + $0xf] sm:$0xff]
      %v2700 = vld [vmem:[#allocation2 + $0x17] sm:$0xff]
      %v2701 = vld [vmem:[#allocation2 + $0x1f] sm:$0xff]
      %v2702 = vld [vmem:[#allocation2 + $0x27] sm:$0xff]
      %v2703 = vld [vmem:[#allocation2 + $0x2f] sm:$0xff]
      %v2704 = vld [vmem:[#allocation2 + $0x37] sm:$0xff]
      %v2705 = vld [vmem:[#allocation2 + $0x3f] sm:$0xff]
      %v2706 = vld [vmem:[#allocation2 + $0x47] sm:$0xff]
      %v2707 = vld [vmem:[#allocation2 + $0x4f] sm:$0xff]
      %v2708 = vld [vmem:[#allocation2 + $0x57] sm:$0xff]
      %v2709 = vld [vmem:[#allocation2 + $0x5f] sm:$0xff]
      %v2710 = vld [vmem:[#allocation2 + $0x67] sm:$0xff]
      %v2711 = vld [vmem:[#allocation2 + $0x6f] sm:$0xff]
      %v2712 = vld [vmem:[#allocation2 + $0x77] sm:$0xff]
      %v2713 = vld [vmem:[#allocation2 + $0x7f] sm:$0xff]
      %v2714 = vld [vmem:[#allocation2 + $0x87] sm:$0xff]
      %v2715 = vld [vmem:[#allocation2 + $0x8f] sm:$0xff]
      %v2716 = vld [vmem:[#allocation2 + $0x97] sm:$0xff]
      %v2717 = vld [vmem:[#allocation2 + $0x9f] sm:$0xff]
      %v2718 = vld [vmem:[#allocation2 + $0xa7] sm:$0xff]
      %v2719 = vld [vmem:[#allocation2 + $0xaf] sm:$0xff]
      %v2720 = vld [vmem:[#allocation2 + $0xb7] sm:$0xff]
      %v2721 = vld [vmem:[#allocation2 + $0xbf] sm:$0xff]
      %v2722 = vld [vmem:[#allocation2 + $0xc7] sm:$0xff]
      %v2723 = vld [vmem:[#allocation2 + $0xcf] sm:$0xff]
      %v2724 = vld [vmem:[#allocation2 + $0xd7] sm:$0xff]
      %v2725 = vld [vmem:[#allocation2 + $0xdf] sm:$0xff]
      %v2726 = vld [vmem:[#allocation2 + $0xe7] sm:$0xff]
      %v2727 = vld [vmem:[#allocation2 + $0xef] sm:$0xff]
      %v2728 = vld [vmem:[#allocation2 + $0xf7] sm:$0xff]
      %v2729 = vld [vmem:[#allocation2 + $0xff] sm:$0xff]
      %v2730 = vsel %vm747, %v2698, 0.0
      %v2731 = vsel %vm748, %v2699, 0.0
      %v2732 = vsel %vm749, %v2700, 0.0
      %v2733 = vsel %vm750, %v2701, 0.0
      %v2734 = vsel %vm751, %v2702, 0.0
      %v2735 = vsel %vm752, %v2703, 0.0
      %v2736 = vsel %vm753, %v2704, 0.0
      %v2737 = vsel %vm754, %v2705, 0.0
      %v2738 = vsel %vm755, %v2706, 0.0
      %v2739 = vsel %vm756, %v2707, 0.0
      %v2740 = vsel %vm757, %v2708, 0.0
      %v2741 = vsel %vm758, %v2709, 0.0
      %v2742 = vsel %vm759, %v2710, 0.0
      %v2743 = vsel %vm760, %v2711, 0.0
      %v2744 = vsel %vm761, %v2712, 0.0
      %v2745 = vsel %vm762, %v2713, 0.0
      %v2746 = vsel %vm763, %v2714, 0.0
      %v2747 = vsel %vm764, %v2715, 0.0
      %v2748 = vsel %vm765, %v2716, 0.0
      %v2749 = vsel %vm766, %v2717, 0.0
      %v2750 = vsel %vm767, %v2718, 0.0
      %v2751 = vsel %vm768, %v2719, 0.0
      %v2752 = vsel %vm769, %v2720, 0.0
      %v2753 = vsel %vm770, %v2721, 0.0
      %v2754 = vsel %vm771, %v2722, 0.0
      %v2755 = vsel %vm772, %v2723, 0.0
      %v2756 = vsel %vm773, %v2724, 0.0
      %v2757 = vsel %vm774, %v2725, 0.0
      %v2758 = vsel %vm775, %v2726, 0.0
      %v2759 = vsel %vm776, %v2727, 0.0
      %v2760 = vsel %vm777, %v2728, 0.0
      %v2761 = vsel %vm778, %v2729, 0.0
      %v2762 = vld [vmem:[#allocation2 + $0x8] sm:$0xff]
      %v2763 = vld [vmem:[#allocation2 + $0x10] sm:$0xff]
      %v2764 = vld [vmem:[#allocation2 + $0x18] sm:$0xff]
      %v2765 = vld [vmem:[#allocation2 + $0x20] sm:$0xff]
      %v2766 = vld [vmem:[#allocation2 + $0x28] sm:$0xff]
      %v2767 = vld [vmem:[#allocation2 + $0x30] sm:$0xff]
      %v2768 = vld [vmem:[#allocation2 + $0x38] sm:$0xff]
      %v2769 = vld [vmem:[#allocation2 + $0x40] sm:$0xff]
      %v2770 = vld [vmem:[#allocation2 + $0x48] sm:$0xff]
      %v2771 = vld [vmem:[#allocation2 + $0x50] sm:$0xff]
      %v2772 = vld [vmem:[#allocation2 + $0x58] sm:$0xff]
      %v2773 = vld [vmem:[#allocation2 + $0x60] sm:$0xff]
      %v2774 = vld [vmem:[#allocation2 + $0x68] sm:$0xff]
      %v2775 = vld [vmem:[#allocation2 + $0x70] sm:$0xff]
      %v2776 = vld [vmem:[#allocation2 + $0x78] sm:$0xff]
      %v2777 = vld [vmem:[#allocation2 + $0x80] sm:$0xff]
      %v2778 = vld [vmem:[#allocation2 + $0x88] sm:$0xff]
      %v2779 = vld [vmem:[#allocation2 + $0x90] sm:$0xff]
      %v2780 = vld [vmem:[#allocation2 + $0x98] sm:$0xff]
      %v2781 = vld [vmem:[#allocation2 + $0xa0] sm:$0xff]
      %v2782 = vld [vmem:[#allocation2 + $0xa8] sm:$0xff]
      %v2783 = vld [vmem:[#allocation2 + $0xb0] sm:$0xff]
      %v2784 = vld [vmem:[#allocation2 + $0xb8] sm:$0xff]
      %v2785 = vld [vmem:[#allocation2 + $0xc0] sm:$0xff]
      %v2786 = vld [vmem:[#allocation2 + $0xc8] sm:$0xff]
      %v2787 = vld [vmem:[#allocation2 + $0xd0] sm:$0xff]
      %v2788 = vld [vmem:[#allocation2 + $0xd8] sm:$0xff]
      %v2789 = vld [vmem:[#allocation2 + $0xe0] sm:$0xff]
      %v2790 = vld [vmem:[#allocation2 + $0xe8] sm:$0xff]
      %v2791 = vld [vmem:[#allocation2 + $0xf0] sm:$0xff]
      %v2792 = vld [vmem:[#allocation2 + $0xf8] sm:$0xff]
      %v2793 = vld [vmem:[#allocation2 + $0x100] sm:$0xff]
      %v2794 = vld [vmem:[#allocation2 + $0x9] sm:$0xff]
      %v2795 = vld [vmem:[#allocation2 + $0x11] sm:$0xff]
      %v2796 = vld [vmem:[#allocation2 + $0x19] sm:$0xff]
      %v2797 = vld [vmem:[#allocation2 + $0x21] sm:$0xff]
      %v2798 = vld [vmem:[#allocation2 + $0x29] sm:$0xff]
      %v2799 = vld [vmem:[#allocation2 + $0x31] sm:$0xff]
      %v2800 = vld [vmem:[#allocation2 + $0x39] sm:$0xff]
      %v2801 = vld [vmem:[#allocation2 + $0x41] sm:$0xff]
      %v2802 = vld [vmem:[#allocation2 + $0x49] sm:$0xff]
      %v2803 = vld [vmem:[#allocation2 + $0x51] sm:$0xff]
      %v2804 = vld [vmem:[#allocation2 + $0x59] sm:$0xff]
      %v2805 = vld [vmem:[#allocation2 + $0x61] sm:$0xff]
      %v2806 = vld [vmem:[#allocation2 + $0x69] sm:$0xff]
      %v2807 = vld [vmem:[#allocation2 + $0x71] sm:$0xff]
      %v2808 = vld [vmem:[#allocation2 + $0x79] sm:$0xff]
      %v2809 = vld [vmem:[#allocation2 + $0x81] sm:$0xff]
      %v2810 = vld [vmem:[#allocation2 + $0x89] sm:$0xff]
      %v2811 = vld [vmem:[#allocation2 + $0x91] sm:$0xff]
      %v2812 = vld [vmem:[#allocation2 + $0x99] sm:$0xff]
      %v2813 = vld [vmem:[#allocation2 + $0xa1] sm:$0xff]
      %v2814 = vld [vmem:[#allocation2 + $0xa9] sm:$0xff]
      %v2815 = vld [vmem:[#allocation2 + $0xb1] sm:$0xff]
      %v2816 = vld [vmem:[#allocation2 + $0xb9] sm:$0xff]
      %v2817 = vld [vmem:[#allocation2 + $0xc1] sm:$0xff]
      %v2818 = vld [vmem:[#allocation2 + $0xc9] sm:$0xff]
      %v2819 = vld [vmem:[#allocation2 + $0xd1] sm:$0xff]
      %v2820 = vld [vmem:[#allocation2 + $0xd9] sm:$0xff]
      %v2821 = vld [vmem:[#allocation2 + $0xe1] sm:$0xff]
      %v2822 = vld [vmem:[#allocation2 + $0xe9] sm:$0xff]
      %v2823 = vld [vmem:[#allocation2 + $0xf1] sm:$0xff]
      %v2824 = vld [vmem:[#allocation2 + $0xf9] sm:$0xff]
      %v2825 = vld [vmem:[#allocation2 + $0x101] sm:$0xff]
      %v2826 = vsel %vm907, %v2794, 0.0
      %v2827 = vsel %vm908, %v2795, 0.0
      %v2828 = vsel %vm909, %v2796, 0.0
      %v2829 = vsel %vm910, %v2797, 0.0
      %v2830 = vsel %vm911, %v2798, 0.0
      %v2831 = vsel %vm912, %v2799, 0.0
      %v2832 = vsel %vm913, %v2800, 0.0
      %v2833 = vsel %vm914, %v2801, 0.0
      %v2834 = vsel %vm915, %v2802, 0.0
      %v2835 = vsel %vm916, %v2803, 0.0
      %v2836 = vsel %vm917, %v2804, 0.0
      %v2837 = vsel %vm918, %v2805, 0.0
      %v2838 = vsel %vm919, %v2806, 0.0
      %v2839 = vsel %vm920, %v2807, 0.0
      %v2840 = vsel %vm921, %v2808, 0.0
      %v2841 = vsel %vm922, %v2809, 0.0
      %v2842 = vsel %vm923, %v2810, 0.0
      %v2843 = vsel %vm924, %v2811, 0.0
      %v2844 = vsel %vm925, %v2812, 0.0
      %v2845 = vsel %vm926, %v2813, 0.0
      %v2846 = vsel %vm927, %v2814, 0.0
      %v2847 = vsel %vm928, %v2815, 0.0
      %v2848 = vsel %vm929, %v2816, 0.0
      %v2849 = vsel %vm930, %v2817, 0.0
      %v2850 = vsel %vm931, %v2818, 0.0
      %v2851 = vsel %vm932, %v2819, 0.0
      %v2852 = vsel %vm933, %v2820, 0.0
      %v2853 = vsel %vm934, %v2821, 0.0
      %v2854 = vsel %vm935, %v2822, 0.0
      %v2855 = vsel %vm936, %v2823, 0.0
      %v2856 = vsel %vm937, %v2824, 0.0
      %v2857 = vsel %vm938, %v2825, 0.0
      %v2858 = vld [vmem:[#allocation2 + $0x107] sm:$0xff]
      %v2859 = vld [vmem:[#allocation2 + $0x10f] sm:$0xff]
      %v2860 = vsel %vm747, %v2700, 0.0
      %v2861 = vsel %vm748, %v2701, 0.0
      %v2862 = vsel %vm749, %v2702, 0.0
      %v2863 = vsel %vm750, %v2703, 0.0
      %v2864 = vsel %vm751, %v2704, 0.0
      %v2865 = vsel %vm752, %v2705, 0.0
      %v2866 = vsel %vm753, %v2706, 0.0
      %v2867 = vsel %vm754, %v2707, 0.0
      %v2868 = vsel %vm755, %v2708, 0.0
      %v2869 = vsel %vm756, %v2709, 0.0
      %v2870 = vsel %vm757, %v2710, 0.0
      %v2871 = vsel %vm758, %v2711, 0.0
      %v2872 = vsel %vm759, %v2712, 0.0
      %v2873 = vsel %vm760, %v2713, 0.0
      %v2874 = vsel %vm761, %v2714, 0.0
      %v2875 = vsel %vm762, %v2715, 0.0
      %v2876 = vsel %vm763, %v2716, 0.0
      %v2877 = vsel %vm764, %v2717, 0.0
      %v2878 = vsel %vm765, %v2718, 0.0
      %v2879 = vsel %vm766, %v2719, 0.0
      %v2880 = vsel %vm767, %v2720, 0.0
      %v2881 = vsel %vm768, %v2721, 0.0
      %v2882 = vsel %vm769, %v2722, 0.0
      %v2883 = vsel %vm770, %v2723, 0.0
      %v2884 = vsel %vm771, %v2724, 0.0
      %v2885 = vsel %vm772, %v2725, 0.0
      %v2886 = vsel %vm773, %v2726, 0.0
      %v2887 = vsel %vm774, %v2727, 0.0
      %v2888 = vsel %vm775, %v2728, 0.0
      %v2889 = vsel %vm776, %v2729, 0.0
      %v2890 = vsel %vm777, %v2858, 0.0
      %v2891 = vsel %vm778, %v2859, 0.0
      %v2892 = vld [vmem:[#allocation2 + $0x108] sm:$0xff]
      %v2893 = vld [vmem:[#allocation2 + $0x110] sm:$0xff]
      %v2894 = vld [vmem:[#allocation2 + $0x109] sm:$0xff]
      %v2895 = vld [vmem:[#allocation2 + $0x111] sm:$0xff]
      %v2896 = vsel %vm907, %v2796, 0.0
      %v2897 = vsel %vm908, %v2797, 0.0
      %v2898 = vsel %vm909, %v2798, 0.0
      %v2899 = vsel %vm910, %v2799, 0.0
      %v2900 = vsel %vm911, %v2800, 0.0
      %v2901 = vsel %vm912, %v2801, 0.0
      %v2902 = vsel %vm913, %v2802, 0.0
      %v2903 = vsel %vm914, %v2803, 0.0
      %v2904 = vsel %vm915, %v2804, 0.0
      %v2905 = vsel %vm916, %v2805, 0.0
      %v2906 = vsel %vm917, %v2806, 0.0
      %v2907 = vsel %vm918, %v2807, 0.0
      %v2908 = vsel %vm919, %v2808, 0.0
      %v2909 = vsel %vm920, %v2809, 0.0
      %v2910 = vsel %vm921, %v2810, 0.0
      %v2911 = vsel %vm922, %v2811, 0.0
      %v2912 = vsel %vm923, %v2812, 0.0
      %v2913 = vsel %vm924, %v2813, 0.0
      %v2914 = vsel %vm925, %v2814, 0.0
      %v2915 = vsel %vm926, %v2815, 0.0
      %v2916 = vsel %vm927, %v2816, 0.0
      %v2917 = vsel %vm928, %v2817, 0.0
      %v2918 = vsel %vm929, %v2818, 0.0
      %v2919 = vsel %vm930, %v2819, 0.0
      %v2920 = vsel %vm931, %v2820, 0.0
      %v2921 = vsel %vm932, %v2821, 0.0
      %v2922 = vsel %vm933, %v2822, 0.0
      %v2923 = vsel %vm934, %v2823, 0.0
      %v2924 = vsel %vm935, %v2824, 0.0
      %v2925 = vsel %vm936, %v2825, 0.0
      %v2926 = vsel %vm937, %v2894, 0.0
      %v2927 = vsel %vm938, %v2895, 0.0
      %v2928 = vld [vmem:[#allocation2 + $0x117] sm:$0xff]
      %v2929 = vld [vmem:[#allocation2 + $0x11f] sm:$0xff]
      %v2930 = vsel %vm747, %v2702, 0.0
      %v2931 = vsel %vm748, %v2703, 0.0
      %v2932 = vsel %vm749, %v2704, 0.0
      %v2933 = vsel %vm750, %v2705, 0.0
      %v2934 = vsel %vm751, %v2706, 0.0
      %v2935 = vsel %vm752, %v2707, 0.0
      %v2936 = vsel %vm753, %v2708, 0.0
      %v2937 = vsel %vm754, %v2709, 0.0
      %v2938 = vsel %vm755, %v2710, 0.0
      %v2939 = vsel %vm756, %v2711, 0.0
      %v2940 = vsel %vm757, %v2712, 0.0
      %v2941 = vsel %vm758, %v2713, 0.0
      %v2942 = vsel %vm759, %v2714, 0.0
      %v2943 = vsel %vm760, %v2715, 0.0
      %v2944 = vsel %vm761, %v2716, 0.0
      %v2945 = vsel %vm762, %v2717, 0.0
      %v2946 = vsel %vm763, %v2718, 0.0
      %v2947 = vsel %vm764, %v2719, 0.0
      %v2948 = vsel %vm765, %v2720, 0.0
      %v2949 = vsel %vm766, %v2721, 0.0
      %v2950 = vsel %vm767, %v2722, 0.0
      %v2951 = vsel %vm768, %v2723, 0.0
      %v2952 = vsel %vm769, %v2724, 0.0
      %v2953 = vsel %vm770, %v2725, 0.0
      %v2954 = vsel %vm771, %v2726, 0.0
      %v2955 = vsel %vm772, %v2727, 0.0
      %v2956 = vsel %vm773, %v2728, 0.0
      %v2957 = vsel %vm774, %v2729, 0.0
      %v2958 = vsel %vm775, %v2858, 0.0
      %v2959 = vsel %vm776, %v2859, 0.0
      %v2960 = vsel %vm777, %v2928, 0.0
      %v2961 = vsel %vm778, %v2929, 0.0
      %v2962 = vld [vmem:[#allocation2 + $0x118] sm:$0xff]
      %v2963 = vld [vmem:[#allocation2 + $0x120] sm:$0xff]
      %v2964 = vld [vmem:[#allocation2 + $0x119] sm:$0xff]
      %v2965 = vld [vmem:[#allocation2 + $0x121] sm:$0xff]
      %v2966 = vsel %vm907, %v2798, 0.0
      %v2967 = vsel %vm908, %v2799, 0.0
      %v2968 = vsel %vm909, %v2800, 0.0
      %v2969 = vsel %vm910, %v2801, 0.0
      %v2970 = vsel %vm911, %v2802, 0.0
      %v2971 = vsel %vm912, %v2803, 0.0
      %v2972 = vsel %vm913, %v2804, 0.0
      %v2973 = vsel %vm914, %v2805, 0.0
      %v2974 = vsel %vm915, %v2806, 0.0
      %v2975 = vsel %vm916, %v2807, 0.0
      %v2976 = vsel %vm917, %v2808, 0.0
      %v2977 = vsel %vm918, %v2809, 0.0
      %v2978 = vsel %vm919, %v2810, 0.0
      %v2979 = vsel %vm920, %v2811, 0.0
      %v2980 = vsel %vm921, %v2812, 0.0
      %v2981 = vsel %vm922, %v2813, 0.0
      %v2982 = vsel %vm923, %v2814, 0.0
      %v2983 = vsel %vm924, %v2815, 0.0
      %v2984 = vsel %vm925, %v2816, 0.0
      %v2985 = vsel %vm926, %v2817, 0.0
      %v2986 = vsel %vm927, %v2818, 0.0
      %v2987 = vsel %vm928, %v2819, 0.0
      %v2988 = vsel %vm929, %v2820, 0.0
      %v2989 = vsel %vm930, %v2821, 0.0
      %v2990 = vsel %vm931, %v2822, 0.0
      %v2991 = vsel %vm932, %v2823, 0.0
      %v2992 = vsel %vm933, %v2824, 0.0
      %v2993 = vsel %vm934, %v2825, 0.0
      %v2994 = vsel %vm935, %v2894, 0.0
      %v2995 = vsel %vm936, %v2895, 0.0
      %v2996 = vsel %vm937, %v2964, 0.0
      %v2997 = vsel %vm938, %v2965, 0.0
      %3030 = vrot.lane.b32.xlu0 %v2762, 4
      %v3031 = vpop.permute.xlu0 %3030
      %3032 = vrot.lane.b32.xlu0 %v2763, 4
      %v3033 = vpop.permute.xlu0 %3032
      %3034 = vrot.lane.b32.xlu0 %v2764, 4
      %v3035 = vpop.permute.xlu0 %3034
      %3036 = vrot.lane.b32.xlu0 %v2765, 4
      %v3037 = vpop.permute.xlu0 %3036
      %3038 = vrot.lane.b32.xlu0 %v2766, 4
      %v3039 = vpop.permute.xlu0 %3038
      %3040 = vrot.lane.b32.xlu0 %v2767, 4
      %v3041 = vpop.permute.xlu0 %3040
      %3042 = vrot.lane.b32.xlu0 %v2768, 4
      %v3043 = vpop.permute.xlu0 %3042
      %3044 = vrot.lane.b32.xlu0 %v2769, 4
      %v3045 = vpop.permute.xlu0 %3044
      %3046 = vrot.lane.b32.xlu0 %v2770, 4
      %v3047 = vpop.permute.xlu0 %3046
      %3048 = vrot.lane.b32.xlu0 %v2771, 4
      %v3049 = vpop.permute.xlu0 %3048
      %3050 = vrot.lane.b32.xlu0 %v2772, 4
      %v3051 = vpop.permute.xlu0 %3050
      %3052 = vrot.lane.b32.xlu0 %v2773, 4
      %v3053 = vpop.permute.xlu0 %3052
      %3054 = vrot.lane.b32.xlu0 %v2774, 4
      %v3055 = vpop.permute.xlu0 %3054
      %3056 = vrot.lane.b32.xlu0 %v2775, 4
      %v3057 = vpop.permute.xlu0 %3056
      %3058 = vrot.lane.b32.xlu0 %v2776, 4
      %v3059 = vpop.permute.xlu0 %3058
      %3060 = vrot.lane.b32.xlu0 %v2777, 4
      %v3061 = vpop.permute.xlu0 %3060
      %3062 = vrot.lane.b32.xlu0 %v2778, 4
      %v3063 = vpop.permute.xlu0 %3062
      %3064 = vrot.lane.b32.xlu0 %v2779, 4
      %v3065 = vpop.permute.xlu0 %3064
      %3066 = vrot.lane.b32.xlu0 %v2780, 4
      %v3067 = vpop.permute.xlu0 %3066
      %3068 = vrot.lane.b32.xlu0 %v2781, 4
      %v3069 = vpop.permute.xlu0 %3068
      %3070 = vrot.lane.b32.xlu0 %v2782, 4
      %v3071 = vpop.permute.xlu0 %3070
      %3072 = vrot.lane.b32.xlu0 %v2783, 4
      %v3073 = vpop.permute.xlu0 %3072
      %3074 = vrot.lane.b32.xlu0 %v2784, 4
      %v3075 = vpop.permute.xlu0 %3074
      %3076 = vrot.lane.b32.xlu0 %v2785, 4
      %v3077 = vpop.permute.xlu0 %3076
      %3078 = vrot.lane.b32.xlu0 %v2786, 4
      %v3079 = vpop.permute.xlu0 %3078
      %3080 = vrot.lane.b32.xlu0 %v2787, 4
      %v3081 = vpop.permute.xlu0 %3080
      %3082 = vrot.lane.b32.xlu0 %v2788, 4
      %v3083 = vpop.permute.xlu0 %3082
      %3084 = vrot.lane.b32.xlu0 %v2789, 4
      %v3085 = vpop.permute.xlu0 %3084
      %3086 = vrot.lane.b32.xlu0 %v2790, 4
      %v3087 = vpop.permute.xlu0 %3086
      %3088 = vrot.lane.b32.xlu0 %v2791, 4
      %v3089 = vpop.permute.xlu0 %3088
      %3090 = vrot.lane.b32.xlu0 %v2792, 4
      %v3091 = vpop.permute.xlu0 %3090
      %3092 = vrot.lane.b32.xlu0 %v2793, 4
      %v3093 = vpop.permute.xlu0 %3092
      %3158 = vrot.lane.b32.xlu0 %v2826, 8
      %v3159 = vpop.permute.xlu0 %3158
      %3160 = vrot.lane.b32.xlu0 %v2827, 8
      %v3161 = vpop.permute.xlu0 %3160
      %3162 = vrot.lane.b32.xlu0 %v2828, 8
      %v3163 = vpop.permute.xlu0 %3162
      %3164 = vrot.lane.b32.xlu0 %v2829, 8
      %v3165 = vpop.permute.xlu0 %3164
      %3166 = vrot.lane.b32.xlu0 %v2830, 8
      %v3167 = vpop.permute.xlu0 %3166
      %3168 = vrot.lane.b32.xlu0 %v2831, 8
      %v3169 = vpop.permute.xlu0 %3168
      %3170 = vrot.lane.b32.xlu0 %v2832, 8
      %v3171 = vpop.permute.xlu0 %3170
      %3172 = vrot.lane.b32.xlu0 %v2833, 8
      %v3173 = vpop.permute.xlu0 %3172
      %3174 = vrot.lane.b32.xlu0 %v2834, 8
      %v3175 = vpop.permute.xlu0 %3174
      %3176 = vrot.lane.b32.xlu0 %v2835, 8
      %v3177 = vpop.permute.xlu0 %3176
      %3178 = vrot.lane.b32.xlu0 %v2836, 8
      %v3179 = vpop.permute.xlu0 %3178
      %3180 = vrot.lane.b32.xlu0 %v2837, 8
      %v3181 = vpop.permute.xlu0 %3180
      %3182 = vrot.lane.b32.xlu0 %v2838, 8
      %v3183 = vpop.permute.xlu0 %3182
      %3184 = vrot.lane.b32.xlu0 %v2839, 8
      %v3185 = vpop.permute.xlu0 %3184
      %3186 = vrot.lane.b32.xlu0 %v2840, 8
      %v3187 = vpop.permute.xlu0 %3186
      %3188 = vrot.lane.b32.xlu0 %v2841, 8
      %v3189 = vpop.permute.xlu0 %3188
      %3190 = vrot.lane.b32.xlu0 %v2842, 8
      %v3191 = vpop.permute.xlu0 %3190
      %3192 = vrot.lane.b32.xlu0 %v2843, 8
      %v3193 = vpop.permute.xlu0 %3192
      %3194 = vrot.lane.b32.xlu0 %v2844, 8
      %v3195 = vpop.permute.xlu0 %3194
      %3196 = vrot.lane.b32.xlu0 %v2845, 8
      %v3197 = vpop.permute.xlu0 %3196
      %3198 = vrot.lane.b32.xlu0 %v2846, 8
      %v3199 = vpop.permute.xlu0 %3198
      %3200 = vrot.lane.b32.xlu0 %v2847, 8
      %v3201 = vpop.permute.xlu0 %3200
      %3202 = vrot.lane.b32.xlu0 %v2848, 8
      %v3203 = vpop.permute.xlu0 %3202
      %3204 = vrot.lane.b32.xlu0 %v2849, 8
      %v3205 = vpop.permute.xlu0 %3204
      %3206 = vrot.lane.b32.xlu0 %v2850, 8
      %v3207 = vpop.permute.xlu0 %3206
      %3208 = vrot.lane.b32.xlu0 %v2851, 8
      %v3209 = vpop.permute.xlu0 %3208
      %3210 = vrot.lane.b32.xlu0 %v2852, 8
      %v3211 = vpop.permute.xlu0 %3210
      %3212 = vrot.lane.b32.xlu0 %v2853, 8
      %v3213 = vpop.permute.xlu0 %3212
      %3214 = vrot.lane.b32.xlu0 %v2854, 8
      %v3215 = vpop.permute.xlu0 %3214
      %3216 = vrot.lane.b32.xlu0 %v2855, 8
      %v3217 = vpop.permute.xlu0 %3216
      %3218 = vrot.lane.b32.xlu0 %v2856, 8
      %v3219 = vpop.permute.xlu0 %3218
      %3220 = vrot.lane.b32.xlu0 %v2857, 8
      %v3221 = vpop.permute.xlu0 %3220
      %3286 = vrot.lane.b32.xlu0 %v2860, 12
      %v3287 = vpop.permute.xlu0 %3286
      %3288 = vrot.lane.b32.xlu0 %v2861, 12
      %v3289 = vpop.permute.xlu0 %3288
      %3290 = vrot.lane.b32.xlu0 %v2862, 12
      %v3291 = vpop.permute.xlu0 %3290
      %3292 = vrot.lane.b32.xlu0 %v2863, 12
      %v3293 = vpop.permute.xlu0 %3292
      %3294 = vrot.lane.b32.xlu0 %v2864, 12
      %v3295 = vpop.permute.xlu0 %3294
      %3296 = vrot.lane.b32.xlu0 %v2865, 12
      %v3297 = vpop.permute.xlu0 %3296
      %3298 = vrot.lane.b32.xlu0 %v2866, 12
      %v3299 = vpop.permute.xlu0 %3298
      %3300 = vrot.lane.b32.xlu0 %v2867, 12
      %v3301 = vpop.permute.xlu0 %3300
      %3302 = vrot.lane.b32.xlu0 %v2868, 12
      %v3303 = vpop.permute.xlu0 %3302
      %3304 = vrot.lane.b32.xlu0 %v2869, 12
      %v3305 = vpop.permute.xlu0 %3304
      %3306 = vrot.lane.b32.xlu0 %v2870, 12
      %v3307 = vpop.permute.xlu0 %3306
      %3308 = vrot.lane.b32.xlu0 %v2871, 12
      %v3309 = vpop.permute.xlu0 %3308
      %3310 = vrot.lane.b32.xlu0 %v2872, 12
      %v3311 = vpop.permute.xlu0 %3310
      %3312 = vrot.lane.b32.xlu0 %v2873, 12
      %v3313 = vpop.permute.xlu0 %3312
      %3314 = vrot.lane.b32.xlu0 %v2874, 12
      %v3315 = vpop.permute.xlu0 %3314
      %3316 = vrot.lane.b32.xlu0 %v2875, 12
      %v3317 = vpop.permute.xlu0 %3316
      %3318 = vrot.lane.b32.xlu0 %v2876, 12
      %v3319 = vpop.permute.xlu0 %3318
      %3320 = vrot.lane.b32.xlu0 %v2877, 12
      %v3321 = vpop.permute.xlu0 %3320
      %3322 = vrot.lane.b32.xlu0 %v2878, 12
      %v3323 = vpop.permute.xlu0 %3322
      %3324 = vrot.lane.b32.xlu0 %v2879, 12
      %v3325 = vpop.permute.xlu0 %3324
      %3326 = vrot.lane.b32.xlu0 %v2880, 12
      %v3327 = vpop.permute.xlu0 %3326
      %3328 = vrot.lane.b32.xlu0 %v2881, 12
      %v3329 = vpop.permute.xlu0 %3328
      %3330 = vrot.lane.b32.xlu0 %v2882, 12
      %v3331 = vpop.permute.xlu0 %3330
      %3332 = vrot.lane.b32.xlu0 %v2883, 12
      %v3333 = vpop.permute.xlu0 %3332
      %3334 = vrot.lane.b32.xlu0 %v2884, 12
      %v3335 = vpop.permute.xlu0 %3334
      %3336 = vrot.lane.b32.xlu0 %v2885, 12
      %v3337 = vpop.permute.xlu0 %3336
      %3338 = vrot.lane.b32.xlu0 %v2886, 12
      %v3339 = vpop.permute.xlu0 %3338
      %3340 = vrot.lane.b32.xlu0 %v2887, 12
      %v3341 = vpop.permute.xlu0 %3340
      %3342 = vrot.lane.b32.xlu0 %v2888, 12
      %v3343 = vpop.permute.xlu0 %3342
      %3344 = vrot.lane.b32.xlu0 %v2889, 12
      %v3345 = vpop.permute.xlu0 %3344
      %3346 = vrot.lane.b32.xlu0 %v2890, 12
      %v3347 = vpop.permute.xlu0 %3346
      %3348 = vrot.lane.b32.xlu0 %v2891, 12
      %v3349 = vpop.permute.xlu0 %3348
      %3384 = vrot.lane.b32.xlu0 %v2764, 16
      %v3385 = vpop.permute.xlu0 %3384
      %3386 = vrot.lane.b32.xlu0 %v2765, 16
      %v3387 = vpop.permute.xlu0 %3386
      %3388 = vrot.lane.b32.xlu0 %v2766, 16
      %v3389 = vpop.permute.xlu0 %3388
      %3390 = vrot.lane.b32.xlu0 %v2767, 16
      %v3391 = vpop.permute.xlu0 %3390
      %3392 = vrot.lane.b32.xlu0 %v2768, 16
      %v3393 = vpop.permute.xlu0 %3392
      %3394 = vrot.lane.b32.xlu0 %v2769, 16
      %v3395 = vpop.permute.xlu0 %3394
      %3396 = vrot.lane.b32.xlu0 %v2770, 16
      %v3397 = vpop.permute.xlu0 %3396
      %3398 = vrot.lane.b32.xlu0 %v2771, 16
      %v3399 = vpop.permute.xlu0 %3398
      %3400 = vrot.lane.b32.xlu0 %v2772, 16
      %v3401 = vpop.permute.xlu0 %3400
      %3402 = vrot.lane.b32.xlu0 %v2773, 16
      %v3403 = vpop.permute.xlu0 %3402
      %3404 = vrot.lane.b32.xlu0 %v2774, 16
      %v3405 = vpop.permute.xlu0 %3404
      %3406 = vrot.lane.b32.xlu0 %v2775, 16
      %v3407 = vpop.permute.xlu0 %3406
      %3408 = vrot.lane.b32.xlu0 %v2776, 16
      %v3409 = vpop.permute.xlu0 %3408
      %3410 = vrot.lane.b32.xlu0 %v2777, 16
      %v3411 = vpop.permute.xlu0 %3410
      %3412 = vrot.lane.b32.xlu0 %v2778, 16
      %v3413 = vpop.permute.xlu0 %3412
      %3414 = vrot.lane.b32.xlu0 %v2779, 16
      %v3415 = vpop.permute.xlu0 %3414
      %3416 = vrot.lane.b32.xlu0 %v2780, 16
      %v3417 = vpop.permute.xlu0 %3416
      %3418 = vrot.lane.b32.xlu0 %v2781, 16
      %v3419 = vpop.permute.xlu0 %3418
      %3420 = vrot.lane.b32.xlu0 %v2782, 16
      %v3421 = vpop.permute.xlu0 %3420
      %3422 = vrot.lane.b32.xlu0 %v2783, 16
      %v3423 = vpop.permute.xlu0 %3422
      %3424 = vrot.lane.b32.xlu0 %v2784, 16
      %v3425 = vpop.permute.xlu0 %3424
      %3426 = vrot.lane.b32.xlu0 %v2785, 16
      %v3427 = vpop.permute.xlu0 %3426
      %3428 = vrot.lane.b32.xlu0 %v2786, 16
      %v3429 = vpop.permute.xlu0 %3428
      %3430 = vrot.lane.b32.xlu0 %v2787, 16
      %v3431 = vpop.permute.xlu0 %3430
      %3432 = vrot.lane.b32.xlu0 %v2788, 16
      %v3433 = vpop.permute.xlu0 %3432
      %3434 = vrot.lane.b32.xlu0 %v2789, 16
      %v3435 = vpop.permute.xlu0 %3434
      %3436 = vrot.lane.b32.xlu0 %v2790, 16
      %v3437 = vpop.permute.xlu0 %3436
      %3438 = vrot.lane.b32.xlu0 %v2791, 16
      %v3439 = vpop.permute.xlu0 %3438
      %3440 = vrot.lane.b32.xlu0 %v2792, 16
      %v3441 = vpop.permute.xlu0 %3440
      %3442 = vrot.lane.b32.xlu0 %v2793, 16
      %v3443 = vpop.permute.xlu0 %3442
      %3444 = vrot.lane.b32.xlu0 %v2892, 16
      %v3445 = vpop.permute.xlu0 %3444
      %3446 = vrot.lane.b32.xlu0 %v2893, 16
      %v3447 = vpop.permute.xlu0 %3446
      %3512 = vrot.lane.b32.xlu0 %v2896, 20
      %v3513 = vpop.permute.xlu0 %3512
      %3514 = vrot.lane.b32.xlu0 %v2897, 20
      %v3515 = vpop.permute.xlu0 %3514
      %3516 = vrot.lane.b32.xlu0 %v2898, 20
      %v3517 = vpop.permute.xlu0 %3516
      %3518 = vrot.lane.b32.xlu0 %v2899, 20
      %v3519 = vpop.permute.xlu0 %3518
      %3520 = vrot.lane.b32.xlu0 %v2900, 20
      %v3521 = vpop.permute.xlu0 %3520
      %3522 = vrot.lane.b32.xlu0 %v2901, 20
      %v3523 = vpop.permute.xlu0 %3522
      %3524 = vrot.lane.b32.xlu0 %v2902, 20
      %v3525 = vpop.permute.xlu0 %3524
      %3526 = vrot.lane.b32.xlu0 %v2903, 20
      %v3527 = vpop.permute.xlu0 %3526
      %3528 = vrot.lane.b32.xlu0 %v2904, 20
      %v3529 = vpop.permute.xlu0 %3528
      %3530 = vrot.lane.b32.xlu0 %v2905, 20
      %v3531 = vpop.permute.xlu0 %3530
      %3532 = vrot.lane.b32.xlu0 %v2906, 20
      %v3533 = vpop.permute.xlu0 %3532
      %3534 = vrot.lane.b32.xlu0 %v2907, 20
      %v3535 = vpop.permute.xlu0 %3534
      %3536 = vrot.lane.b32.xlu0 %v2908, 20
      %v3537 = vpop.permute.xlu0 %3536
      %3538 = vrot.lane.b32.xlu0 %v2909, 20
      %v3539 = vpop.permute.xlu0 %3538
      %3540 = vrot.lane.b32.xlu0 %v2910, 20
      %v3541 = vpop.permute.xlu0 %3540
      %3542 = vrot.lane.b32.xlu0 %v2911, 20
      %v3543 = vpop.permute.xlu0 %3542
      %3544 = vrot.lane.b32.xlu0 %v2912, 20
      %v3545 = vpop.permute.xlu0 %3544
      %3546 = vrot.lane.b32.xlu0 %v2913, 20
      %v3547 = vpop.permute.xlu0 %3546
      %3548 = vrot.lane.b32.xlu0 %v2914, 20
      %v3549 = vpop.permute.xlu0 %3548
      %3550 = vrot.lane.b32.xlu0 %v2915, 20
      %v3551 = vpop.permute.xlu0 %3550
      %3552 = vrot.lane.b32.xlu0 %v2916, 20
      %v3553 = vpop.permute.xlu0 %3552
      %3554 = vrot.lane.b32.xlu0 %v2917, 20
      %v3555 = vpop.permute.xlu0 %3554
      %3556 = vrot.lane.b32.xlu0 %v2918, 20
      %v3557 = vpop.permute.xlu0 %3556
      %3558 = vrot.lane.b32.xlu0 %v2919, 20
      %v3559 = vpop.permute.xlu0 %3558
      %3560 = vrot.lane.b32.xlu0 %v2920, 20
      %v3561 = vpop.permute.xlu0 %3560
      %3562 = vrot.lane.b32.xlu0 %v2921, 20
      %v3563 = vpop.permute.xlu0 %3562
      %3564 = vrot.lane.b32.xlu0 %v2922, 20
      %v3565 = vpop.permute.xlu0 %3564
      %3566 = vrot.lane.b32.xlu0 %v2923, 20
      %v3567 = vpop.permute.xlu0 %3566
      %3568 = vrot.lane.b32.xlu0 %v2924, 20
      %v3569 = vpop.permute.xlu0 %3568
      %3570 = vrot.lane.b32.xlu0 %v2925, 20
      %v3571 = vpop.permute.xlu0 %3570
      %3572 = vrot.lane.b32.xlu0 %v2926, 20
      %v3573 = vpop.permute.xlu0 %3572
      %3574 = vrot.lane.b32.xlu0 %v2927, 20
      %v3575 = vpop.permute.xlu0 %3574
      %3640 = vrot.lane.b32.xlu0 %v2930, 24
      %v3641 = vpop.permute.xlu0 %3640
      %3642 = vrot.lane.b32.xlu0 %v2931, 24
      %v3643 = vpop.permute.xlu0 %3642
      %3644 = vrot.lane.b32.xlu0 %v2932, 24
      %v3645 = vpop.permute.xlu0 %3644
      %3646 = vrot.lane.b32.xlu0 %v2933, 24
      %v3647 = vpop.permute.xlu0 %3646
      %3648 = vrot.lane.b32.xlu0 %v2934, 24
      %v3649 = vpop.permute.xlu0 %3648
      %3650 = vrot.lane.b32.xlu0 %v2935, 24
      %v3651 = vpop.permute.xlu0 %3650
      %3652 = vrot.lane.b32.xlu0 %v2936, 24
      %v3653 = vpop.permute.xlu0 %3652
      %3654 = vrot.lane.b32.xlu0 %v2937, 24
      %v3655 = vpop.permute.xlu0 %3654
      %3656 = vrot.lane.b32.xlu0 %v2938, 24
      %v3657 = vpop.permute.xlu0 %3656
      %3658 = vrot.lane.b32.xlu0 %v2939, 24
      %v3659 = vpop.permute.xlu0 %3658
      %3660 = vrot.lane.b32.xlu0 %v2940, 24
      %v3661 = vpop.permute.xlu0 %3660
      %3662 = vrot.lane.b32.xlu0 %v2941, 24
      %v3663 = vpop.permute.xlu0 %3662
      %3664 = vrot.lane.b32.xlu0 %v2942, 24
      %v3665 = vpop.permute.xlu0 %3664
      %3666 = vrot.lane.b32.xlu0 %v2943, 24
      %v3667 = vpop.permute.xlu0 %3666
      %3668 = vrot.lane.b32.xlu0 %v2944, 24
      %v3669 = vpop.permute.xlu0 %3668
      %3670 = vrot.lane.b32.xlu0 %v2945, 24
      %v3671 = vpop.permute.xlu0 %3670
      %3672 = vrot.lane.b32.xlu0 %v2946, 24
      %v3673 = vpop.permute.xlu0 %3672
      %3674 = vrot.lane.b32.xlu0 %v2947, 24
      %v3675 = vpop.permute.xlu0 %3674
      %3676 = vrot.lane.b32.xlu0 %v2948, 24
      %v3677 = vpop.permute.xlu0 %3676
      %3678 = vrot.lane.b32.xlu0 %v2949, 24
      %v3679 = vpop.permute.xlu0 %3678
      %3680 = vrot.lane.b32.xlu0 %v2950, 24
      %v3681 = vpop.permute.xlu0 %3680
      %3682 = vrot.lane.b32.xlu0 %v2951, 24
      %v3683 = vpop.permute.xlu0 %3682
      %3684 = vrot.lane.b32.xlu0 %v2952, 24
      %v3685 = vpop.permute.xlu0 %3684
      %3686 = vrot.lane.b32.xlu0 %v2953, 24
      %v3687 = vpop.permute.xlu0 %3686
      %3688 = vrot.lane.b32.xlu0 %v2954, 24
      %v3689 = vpop.permute.xlu0 %3688
      %3690 = vrot.lane.b32.xlu0 %v2955, 24
      %v3691 = vpop.permute.xlu0 %3690
      %3692 = vrot.lane.b32.xlu0 %v2956, 24
      %v3693 = vpop.permute.xlu0 %3692
      %3694 = vrot.lane.b32.xlu0 %v2957, 24
      %v3695 = vpop.permute.xlu0 %3694
      %3696 = vrot.lane.b32.xlu0 %v2958, 24
      %v3697 = vpop.permute.xlu0 %3696
      %3698 = vrot.lane.b32.xlu0 %v2959, 24
      %v3699 = vpop.permute.xlu0 %3698
      %3700 = vrot.lane.b32.xlu0 %v2960, 24
      %v3701 = vpop.permute.xlu0 %3700
      %3702 = vrot.lane.b32.xlu0 %v2961, 24
      %v3703 = vpop.permute.xlu0 %3702
      %3738 = vrot.lane.b32.xlu0 %v2766, 28
      %v3739 = vpop.permute.xlu0 %3738
      %3740 = vrot.lane.b32.xlu0 %v2767, 28
      %v3741 = vpop.permute.xlu0 %3740
      %3742 = vrot.lane.b32.xlu0 %v2768, 28
      %v3743 = vpop.permute.xlu0 %3742
      %3744 = vrot.lane.b32.xlu0 %v2769, 28
      %v3745 = vpop.permute.xlu0 %3744
      %3746 = vrot.lane.b32.xlu0 %v2770, 28
      %v3747 = vpop.permute.xlu0 %3746
      %3748 = vrot.lane.b32.xlu0 %v2771, 28
      %v3749 = vpop.permute.xlu0 %3748
      %3750 = vrot.lane.b32.xlu0 %v2772, 28
      %v3751 = vpop.permute.xlu0 %3750
      %3752 = vrot.lane.b32.xlu0 %v2773, 28
      %v3753 = vpop.permute.xlu0 %3752
      %3754 = vrot.lane.b32.xlu0 %v2774, 28
      %v3755 = vpop.permute.xlu0 %3754
      %3756 = vrot.lane.b32.xlu0 %v2775, 28
      %v3757 = vpop.permute.xlu0 %3756
      %3758 = vrot.lane.b32.xlu0 %v2776, 28
      %v3759 = vpop.permute.xlu0 %3758
      %3760 = vrot.lane.b32.xlu0 %v2777, 28
      %v3761 = vpop.permute.xlu0 %3760
      %3762 = vrot.lane.b32.xlu0 %v2778, 28
      %v3763 = vpop.permute.xlu0 %3762
      %3764 = vrot.lane.b32.xlu0 %v2779, 28
      %v3765 = vpop.permute.xlu0 %3764
      %3766 = vrot.lane.b32.xlu0 %v2780, 28
      %v3767 = vpop.permute.xlu0 %3766
      %3768 = vrot.lane.b32.xlu0 %v2781, 28
      %v3769 = vpop.permute.xlu0 %3768
      %3770 = vrot.lane.b32.xlu0 %v2782, 28
      %v3771 = vpop.permute.xlu0 %3770
      %3772 = vrot.lane.b32.xlu0 %v2783, 28
      %v3773 = vpop.permute.xlu0 %3772
      %3774 = vrot.lane.b32.xlu0 %v2784, 28
      %v3775 = vpop.permute.xlu0 %3774
      %3776 = vrot.lane.b32.xlu0 %v2785, 28
      %v3777 = vpop.permute.xlu0 %3776
      %3778 = vrot.lane.b32.xlu0 %v2786, 28
      %v3779 = vpop.permute.xlu0 %3778
      %3780 = vrot.lane.b32.xlu0 %v2787, 28
      %v3781 = vpop.permute.xlu0 %3780
      %3782 = vrot.lane.b32.xlu0 %v2788, 28
      %v3783 = vpop.permute.xlu0 %3782
      %3784 = vrot.lane.b32.xlu0 %v2789, 28
      %v3785 = vpop.permute.xlu0 %3784
      %3786 = vrot.lane.b32.xlu0 %v2790, 28
      %v3787 = vpop.permute.xlu0 %3786
      %3788 = vrot.lane.b32.xlu0 %v2791, 28
      %v3789 = vpop.permute.xlu0 %3788
      %3790 = vrot.lane.b32.xlu0 %v2792, 28
      %v3791 = vpop.permute.xlu0 %3790
      %3792 = vrot.lane.b32.xlu0 %v2793, 28
      %v3793 = vpop.permute.xlu0 %3792
      %3794 = vrot.lane.b32.xlu0 %v2892, 28
      %v3795 = vpop.permute.xlu0 %3794
      %3796 = vrot.lane.b32.xlu0 %v2893, 28
      %v3797 = vpop.permute.xlu0 %3796
      %3798 = vrot.lane.b32.xlu0 %v2962, 28
      %v3799 = vpop.permute.xlu0 %3798
      %3800 = vrot.lane.b32.xlu0 %v2963, 28
      %v3801 = vpop.permute.xlu0 %3800
      %3866 = vrot.lane.b32.xlu0 %v2966, 32
      %v3867 = vpop.permute.xlu0 %3866
      %3868 = vrot.lane.b32.xlu0 %v2967, 32
      %v3869 = vpop.permute.xlu0 %3868
      %3870 = vrot.lane.b32.xlu0 %v2968, 32
      %v3871 = vpop.permute.xlu0 %3870
      %3872 = vrot.lane.b32.xlu0 %v2969, 32
      %v3873 = vpop.permute.xlu0 %3872
      %3874 = vrot.lane.b32.xlu0 %v2970, 32
      %v3875 = vpop.permute.xlu0 %3874
      %3876 = vrot.lane.b32.xlu0 %v2971, 32
      %v3877 = vpop.permute.xlu0 %3876
      %3878 = vrot.lane.b32.xlu0 %v2972, 32
      %v3879 = vpop.permute.xlu0 %3878
      %3880 = vrot.lane.b32.xlu0 %v2973, 32
      %v3881 = vpop.permute.xlu0 %3880
      %3882 = vrot.lane.b32.xlu0 %v2974, 32
      %v3883 = vpop.permute.xlu0 %3882
      %3884 = vrot.lane.b32.xlu0 %v2975, 32
      %v3885 = vpop.permute.xlu0 %3884
      %3886 = vrot.lane.b32.xlu0 %v2976, 32
      %v3887 = vpop.permute.xlu0 %3886
      %3888 = vrot.lane.b32.xlu0 %v2977, 32
      %v3889 = vpop.permute.xlu0 %3888
      %3890 = vrot.lane.b32.xlu0 %v2978, 32
      %v3891 = vpop.permute.xlu0 %3890
      %3892 = vrot.lane.b32.xlu0 %v2979, 32
      %v3893 = vpop.permute.xlu0 %3892
      %3894 = vrot.lane.b32.xlu0 %v2980, 32
      %v3895 = vpop.permute.xlu0 %3894
      %3896 = vrot.lane.b32.xlu0 %v2981, 32
      %v3897 = vpop.permute.xlu0 %3896
      %3898 = vrot.lane.b32.xlu0 %v2982, 32
      %v3899 = vpop.permute.xlu0 %3898
      %3900 = vrot.lane.b32.xlu0 %v2983, 32
      %v3901 = vpop.permute.xlu0 %3900
      %3902 = vrot.lane.b32.xlu0 %v2984, 32
      %v3903 = vpop.permute.xlu0 %3902
      %3904 = vrot.lane.b32.xlu0 %v2985, 32
      %v3905 = vpop.permute.xlu0 %3904
      %3906 = vrot.lane.b32.xlu0 %v2986, 32
      %v3907 = vpop.permute.xlu0 %3906
      %3908 = vrot.lane.b32.xlu0 %v2987, 32
      %v3909 = vpop.permute.xlu0 %3908
      %3910 = vrot.lane.b32.xlu0 %v2988, 32
      %v3911 = vpop.permute.xlu0 %3910
      %3912 = vrot.lane.b32.xlu0 %v2989, 32
      %v3913 = vpop.permute.xlu0 %3912
      %3914 = vrot.lane.b32.xlu0 %v2990, 32
      %v3915 = vpop.permute.xlu0 %3914
      %3916 = vrot.lane.b32.xlu0 %v2991, 32
      %v3917 = vpop.permute.xlu0 %3916
      %3918 = vrot.lane.b32.xlu0 %v2992, 32
      %v3919 = vpop.permute.xlu0 %3918
      %3920 = vrot.lane.b32.xlu0 %v2993, 32
      %v3921 = vpop.permute.xlu0 %3920
      %3922 = vrot.lane.b32.xlu0 %v2994, 32
      %v3923 = vpop.permute.xlu0 %3922
      %3924 = vrot.lane.b32.xlu0 %v2995, 32
      %v3925 = vpop.permute.xlu0 %3924
      %3926 = vrot.lane.b32.xlu0 %v2996, 32
      %v3927 = vpop.permute.xlu0 %3926
      %3928 = vrot.lane.b32.xlu0 %v2997, 32
      %v3929 = vpop.permute.xlu0 %3928
      %v3962 = vsel %vm2075, %v2730, %v3031
      %v3963 = vsel %vm2075, %v2731, %v3033
      %v3964 = vsel %vm2075, %v2732, %v3035
      %v3965 = vsel %vm2075, %v2733, %v3037
      %v3966 = vsel %vm2075, %v2734, %v3039
      %v3967 = vsel %vm2075, %v2735, %v3041
      %v3968 = vsel %vm2075, %v2736, %v3043
      %v3969 = vsel %vm2075, %v2737, %v3045
      %v3970 = vsel %vm2075, %v2738, %v3047
      %v3971 = vsel %vm2075, %v2739, %v3049
      %v3972 = vsel %vm2075, %v2740, %v3051
      %v3973 = vsel %vm2075, %v2741, %v3053
      %v3974 = vsel %vm2075, %v2742, %v3055
      %v3975 = vsel %vm2075, %v2743, %v3057
      %v3976 = vsel %vm2075, %v2744, %v3059
      %v3977 = vsel %vm2075, %v2745, %v3061
      %v3978 = vsel %vm2075, %v2746, %v3063
      %v3979 = vsel %vm2075, %v2747, %v3065
      %v3980 = vsel %vm2075, %v2748, %v3067
      %v3981 = vsel %vm2075, %v2749, %v3069
      %v3982 = vsel %vm2075, %v2750, %v3071
      %v3983 = vsel %vm2075, %v2751, %v3073
      %v3984 = vsel %vm2075, %v2752, %v3075
      %v3985 = vsel %vm2075, %v2753, %v3077
      %v3986 = vsel %vm2075, %v2754, %v3079
      %v3987 = vsel %vm2075, %v2755, %v3081
      %v3988 = vsel %vm2075, %v2756, %v3083
      %v3989 = vsel %vm2075, %v2757, %v3085
      %v3990 = vsel %vm2075, %v2758, %v3087
      %v3991 = vsel %vm2075, %v2759, %v3089
      %v3992 = vsel %vm2075, %v2760, %v3091
      %v3993 = vsel %vm2075, %v2761, %v3093
      %v3994 = vsel %vm2108, %v3962, %v3159
      %v3995 = vsel %vm2108, %v3963, %v3161
      %v3996 = vsel %vm2108, %v3964, %v3163
      %v3997 = vsel %vm2108, %v3965, %v3165
      %v3998 = vsel %vm2108, %v3966, %v3167
      %v3999 = vsel %vm2108, %v3967, %v3169
      %v4000 = vsel %vm2108, %v3968, %v3171
      %v4001 = vsel %vm2108, %v3969, %v3173
      %v4002 = vsel %vm2108, %v3970, %v3175
      %v4003 = vsel %vm2108, %v3971, %v3177
      %v4004 = vsel %vm2108, %v3972, %v3179
      %v4005 = vsel %vm2108, %v3973, %v3181
      %v4006 = vsel %vm2108, %v3974, %v3183
      %v4007 = vsel %vm2108, %v3975, %v3185
      %v4008 = vsel %vm2108, %v3976, %v3187
      %v4009 = vsel %vm2108, %v3977, %v3189
      %v4010 = vsel %vm2108, %v3978, %v3191
      %v4011 = vsel %vm2108, %v3979, %v3193
      %v4012 = vsel %vm2108, %v3980, %v3195
      %v4013 = vsel %vm2108, %v3981, %v3197
      %v4014 = vsel %vm2108, %v3982, %v3199
      %v4015 = vsel %vm2108, %v3983, %v3201
      %v4016 = vsel %vm2108, %v3984, %v3203
      %v4017 = vsel %vm2108, %v3985, %v3205
      %v4018 = vsel %vm2108, %v3986, %v3207
      %v4019 = vsel %vm2108, %v3987, %v3209
      %v4020 = vsel %vm2108, %v3988, %v3211
      %v4021 = vsel %vm2108, %v3989, %v3213
      %v4022 = vsel %vm2108, %v3990, %v3215
      %v4023 = vsel %vm2108, %v3991, %v3217
      %v4024 = vsel %vm2108, %v3992, %v3219
      %v4025 = vsel %vm2108, %v3993, %v3221
      %v4026 = vsel %vm2141, %v3994, %v3287
      %v4027 = vsel %vm2141, %v3995, %v3289
      %v4028 = vsel %vm2141, %v3996, %v3291
      %v4029 = vsel %vm2141, %v3997, %v3293
      %v4030 = vsel %vm2141, %v3998, %v3295
      %v4031 = vsel %vm2141, %v3999, %v3297
      %v4032 = vsel %vm2141, %v4000, %v3299
      %v4033 = vsel %vm2141, %v4001, %v3301
      %v4034 = vsel %vm2141, %v4002, %v3303
      %v4035 = vsel %vm2141, %v4003, %v3305
      %v4036 = vsel %vm2141, %v4004, %v3307
      %v4037 = vsel %vm2141, %v4005, %v3309
      %v4038 = vsel %vm2141, %v4006, %v3311
      %v4039 = vsel %vm2141, %v4007, %v3313
      %v4040 = vsel %vm2141, %v4008, %v3315
      %v4041 = vsel %vm2141, %v4009, %v3317
      %v4042 = vsel %vm2141, %v4010, %v3319
      %v4043 = vsel %vm2141, %v4011, %v3321
      %v4044 = vsel %vm2141, %v4012, %v3323
      %v4045 = vsel %vm2141, %v4013, %v3325
      %v4046 = vsel %vm2141, %v4014, %v3327
      %v4047 = vsel %vm2141, %v4015, %v3329
      %v4048 = vsel %vm2141, %v4016, %v3331
      %v4049 = vsel %vm2141, %v4017, %v3333
      %v4050 = vsel %vm2141, %v4018, %v3335
      %v4051 = vsel %vm2141, %v4019, %v3337
      %v4052 = vsel %vm2141, %v4020, %v3339
      %v4053 = vsel %vm2141, %v4021, %v3341
      %v4054 = vsel %vm2141, %v4022, %v3343
      %v4055 = vsel %vm2141, %v4023, %v3345
      %v4056 = vsel %vm2141, %v4024, %v3347
      %v4057 = vsel %vm2141, %v4025, %v3349
      %v4058 = vsel %vm2174, %v4026, %v3385
      %v4059 = vsel %vm2174, %v4027, %v3387
      %v4060 = vsel %vm2174, %v4028, %v3389
      %v4061 = vsel %vm2174, %v4029, %v3391
      %v4062 = vsel %vm2174, %v4030, %v3393
      %v4063 = vsel %vm2174, %v4031, %v3395
      %v4064 = vsel %vm2174, %v4032, %v3397
      %v4065 = vsel %vm2174, %v4033, %v3399
      %v4066 = vsel %vm2174, %v4034, %v3401
      %v4067 = vsel %vm2174, %v4035, %v3403
      %v4068 = vsel %vm2174, %v4036, %v3405
      %v4069 = vsel %vm2174, %v4037, %v3407
      %v4070 = vsel %vm2174, %v4038, %v3409
      %v4071 = vsel %vm2174, %v4039, %v3411
      %v4072 = vsel %vm2174, %v4040, %v3413
      %v4073 = vsel %vm2174, %v4041, %v3415
      %v4074 = vsel %vm2174, %v4042, %v3417
      %v4075 = vsel %vm2174, %v4043, %v3419
      %v4076 = vsel %vm2174, %v4044, %v3421
      %v4077 = vsel %vm2174, %v4045, %v3423
      %v4078 = vsel %vm2174, %v4046, %v3425
      %v4079 = vsel %vm2174, %v4047, %v3427
      %v4080 = vsel %vm2174, %v4048, %v3429
      %v4081 = vsel %vm2174, %v4049, %v3431
      %v4082 = vsel %vm2174, %v4050, %v3433
      %v4083 = vsel %vm2174, %v4051, %v3435
      %v4084 = vsel %vm2174, %v4052, %v3437
      %v4085 = vsel %vm2174, %v4053, %v3439
      %v4086 = vsel %vm2174, %v4054, %v3441
      %v4087 = vsel %vm2174, %v4055, %v3443
      %v4088 = vsel %vm2174, %v4056, %v3445
      %v4089 = vsel %vm2174, %v4057, %v3447
      %v4090 = vsel %vm2207, %v4058, %v3513
      %v4091 = vsel %vm2207, %v4059, %v3515
      %v4092 = vsel %vm2207, %v4060, %v3517
      %v4093 = vsel %vm2207, %v4061, %v3519
      %v4094 = vsel %vm2207, %v4062, %v3521
      %v4095 = vsel %vm2207, %v4063, %v3523
      %v4096 = vsel %vm2207, %v4064, %v3525
      %v4097 = vsel %vm2207, %v4065, %v3527
      %v4098 = vsel %vm2207, %v4066, %v3529
      %v4099 = vsel %vm2207, %v4067, %v3531
      %v4100 = vsel %vm2207, %v4068, %v3533
      %v4101 = vsel %vm2207, %v4069, %v3535
      %v4102 = vsel %vm2207, %v4070, %v3537
      %v4103 = vsel %vm2207, %v4071, %v3539
      %v4104 = vsel %vm2207, %v4072, %v3541
      %v4105 = vsel %vm2207, %v4073, %v3543
      %v4106 = vsel %vm2207, %v4074, %v3545
      %v4107 = vsel %vm2207, %v4075, %v3547
      %v4108 = vsel %vm2207, %v4076, %v3549
      %v4109 = vsel %vm2207, %v4077, %v3551
      %v4110 = vsel %vm2207, %v4078, %v3553
      %v4111 = vsel %vm2207, %v4079, %v3555
      %v4112 = vsel %vm2207, %v4080, %v3557
      %v4113 = vsel %vm2207, %v4081, %v3559
      %v4114 = vsel %vm2207, %v4082, %v3561
      %v4115 = vsel %vm2207, %v4083, %v3563
      %v4116 = vsel %vm2207, %v4084, %v3565
      %v4117 = vsel %vm2207, %v4085, %v3567
      %v4118 = vsel %vm2207, %v4086, %v3569
      %v4119 = vsel %vm2207, %v4087, %v3571
      %v4120 = vsel %vm2207, %v4088, %v3573
      %v4121 = vsel %vm2207, %v4089, %v3575
      %v4122 = vsel %vm2240, %v4090, %v3641
      %v4123 = vsel %vm2240, %v4091, %v3643
      %v4124 = vsel %vm2240, %v4092, %v3645
      %v4125 = vsel %vm2240, %v4093, %v3647
      %v4126 = vsel %vm2240, %v4094, %v3649
      %v4127 = vsel %vm2240, %v4095, %v3651
      %v4128 = vsel %vm2240, %v4096, %v3653
      %v4129 = vsel %vm2240, %v4097, %v3655
      %v4130 = vsel %vm2240, %v4098, %v3657
      %v4131 = vsel %vm2240, %v4099, %v3659
      %v4132 = vsel %vm2240, %v4100, %v3661
      %v4133 = vsel %vm2240, %v4101, %v3663
      %v4134 = vsel %vm2240, %v4102, %v3665
      %v4135 = vsel %vm2240, %v4103, %v3667
      %v4136 = vsel %vm2240, %v4104, %v3669
      %v4137 = vsel %vm2240, %v4105, %v3671
      %v4138 = vsel %vm2240, %v4106, %v3673
      %v4139 = vsel %vm2240, %v4107, %v3675
      %v4140 = vsel %vm2240, %v4108, %v3677
      %v4141 = vsel %vm2240, %v4109, %v3679
      %v4142 = vsel %vm2240, %v4110, %v3681
      %v4143 = vsel %vm2240, %v4111, %v3683
      %v4144 = vsel %vm2240, %v4112, %v3685
      %v4145 = vsel %vm2240, %v4113, %v3687
      %v4146 = vsel %vm2240, %v4114, %v3689
      %v4147 = vsel %vm2240, %v4115, %v3691
      %v4148 = vsel %vm2240, %v4116, %v3693
      %v4149 = vsel %vm2240, %v4117, %v3695
      %v4150 = vsel %vm2240, %v4118, %v3697
      %v4151 = vsel %vm2240, %v4119, %v3699
      %v4152 = vsel %vm2240, %v4120, %v3701
      %v4153 = vsel %vm2240, %v4121, %v3703
      %v4154 = vsel %vm2273, %v4122, %v3739
      %v4155 = vsel %vm2273, %v4123, %v3741
      %v4156 = vsel %vm2273, %v4124, %v3743
      %v4157 = vsel %vm2273, %v4125, %v3745
      %v4158 = vsel %vm2273, %v4126, %v3747
      %v4159 = vsel %vm2273, %v4127, %v3749
      %v4160 = vsel %vm2273, %v4128, %v3751
      %v4161 = vsel %vm2273, %v4129, %v3753
      %v4162 = vsel %vm2273, %v4130, %v3755
      %v4163 = vsel %vm2273, %v4131, %v3757
      %v4164 = vsel %vm2273, %v4132, %v3759
      %v4165 = vsel %vm2273, %v4133, %v3761
      %v4166 = vsel %vm2273, %v4134, %v3763
      %v4167 = vsel %vm2273, %v4135, %v3765
      %v4168 = vsel %vm2273, %v4136, %v3767
      %v4169 = vsel %vm2273, %v4137, %v3769
      %v4170 = vsel %vm2273, %v4138, %v3771
      %v4171 = vsel %vm2273, %v4139, %v3773
      %v4172 = vsel %vm2273, %v4140, %v3775
      %v4173 = vsel %vm2273, %v4141, %v3777
      %v4174 = vsel %vm2273, %v4142, %v3779
      %v4175 = vsel %vm2273, %v4143, %v3781
      %v4176 = vsel %vm2273, %v4144, %v3783
      %v4177 = vsel %vm2273, %v4145, %v3785
      %v4178 = vsel %vm2273, %v4146, %v3787
      %v4179 = vsel %vm2273, %v4147, %v3789
      %v4180 = vsel %vm2273, %v4148, %v3791
      %v4181 = vsel %vm2273, %v4149, %v3793
      %v4182 = vsel %vm2273, %v4150, %v3795
      %v4183 = vsel %vm2273, %v4151, %v3797
      %v4184 = vsel %vm2273, %v4152, %v3799
      %v4185 = vsel %vm2273, %v4153, %v3801
      %v4186 = vsel %vm2306, %v4154, %v3867
      %v4187 = vsel %vm2306, %v4155, %v3869
      %v4188 = vsel %vm2306, %v4156, %v3871
      %v4189 = vsel %vm2306, %v4157, %v3873
      %v4190 = vsel %vm2306, %v4158, %v3875
      %v4191 = vsel %vm2306, %v4159, %v3877
      %v4192 = vsel %vm2306, %v4160, %v3879
      %v4193 = vsel %vm2306, %v4161, %v3881
      %v4194 = vsel %vm2306, %v4162, %v3883
      %v4195 = vsel %vm2306, %v4163, %v3885
      %v4196 = vsel %vm2306, %v4164, %v3887
      %v4197 = vsel %vm2306, %v4165, %v3889
      %v4198 = vsel %vm2306, %v4166, %v3891
      %v4199 = vsel %vm2306, %v4167, %v3893
      %v4200 = vsel %vm2306, %v4168, %v3895
      %v4201 = vsel %vm2306, %v4169, %v3897
      %v4202 = vsel %vm2306, %v4170, %v3899
      %v4203 = vsel %vm2306, %v4171, %v3901
      %v4204 = vsel %vm2306, %v4172, %v3903
      %v4205 = vsel %vm2306, %v4173, %v3905
      %v4206 = vsel %vm2306, %v4174, %v3907
      %v4207 = vsel %vm2306, %v4175, %v3909
      %v4208 = vsel %vm2306, %v4176, %v3911
      %v4209 = vsel %vm2306, %v4177, %v3913
      %v4210 = vsel %vm2306, %v4178, %v3915
      %v4211 = vsel %vm2306, %v4179, %v3917
      %v4212 = vsel %vm2306, %v4180, %v3919
      %v4213 = vsel %vm2306, %v4181, %v3921
      %v4214 = vsel %vm2306, %v4182, %v3923
      %v4215 = vsel %vm2306, %v4183, %v3925
      %v4216 = vsel %vm2306, %v4184, %v3927
      %v4217 = vsel %vm2306, %v4185, %v3929
      %v4218 = vpack.c.bf16 %v4187, %v4186
      %v4219 = vpack.c.bf16 %v4189, %v4188
      %v4220 = vpack.c.bf16 %v4191, %v4190
      %v4221 = vpack.c.bf16 %v4193, %v4192
      %v4222 = vpack.c.bf16 %v4195, %v4194
      %v4223 = vpack.c.bf16 %v4197, %v4196
      %v4224 = vpack.c.bf16 %v4199, %v4198
      %v4225 = vpack.c.bf16 %v4201, %v4200
      %v4226 = vpack.c.bf16 %v4203, %v4202
      %v4227 = vpack.c.bf16 %v4205, %v4204
      %v4228 = vpack.c.bf16 %v4207, %v4206
      %v4229 = vpack.c.bf16 %v4209, %v4208
      %v4230 = vpack.c.bf16 %v4211, %v4210
      %v4231 = vpack.c.bf16 %v4213, %v4212
      %v4232 = vpack.c.bf16 %v4215, %v4214
      %v4233 = vpack.c.bf16 %v4217, %v4216
      %v4234 = vld [vmem:[%s2] sm:$0xf]
      %v4235 = vld [vmem:[%s2 + $0x4] sm:$0xf]
      %v4236 = vld [vmem:[%s2 + $0x8] sm:$0xf]
      %v4237 = vld [vmem:[%s2 + $0xc] sm:$0xf]
      %v4238 = vld [vmem:[%s2 + $0x10] sm:$0x3]
      %v4244 = vunpack.c.l.b16 %v4234
      %v4245 = vunpack.c.l.b16 %v4235
      %v4246 = vunpack.c.l.b16 %v4236
      %v4247 = vunpack.c.l.b16 %v4237
      %v4248 = vunpack.c.l.b16 %v4238
      %v4249 = vpack.c.b16 %v4245, %v4244
      %v4250 = vpack.c.b16 %v4247, %v4246
      %v4251 = vpack.c.b16 %v4248, %v4248
      %v4255 = vsel %vm2382, %v4218, 0
      %v4258 = vsel %vm2382, %v4219, 0
      %v4261 = vsel %vm2382, %v4220, 0
      %v4264 = vsel %vm2382, %v4221, 0
      %v4267 = vsel %vm2382, %v4222, 0
      %v4270 = vsel %vm2382, %v4223, 0
      %v4273 = vsel %vm2382, %v4224, 0
      %v4276 = vsel %vm2382, %v4225, 0
      %v4279 = vsel %vm2382, %v4226, 0
      %v4282 = vsel %vm2382, %v4227, 0
      %v4285 = vsel %vm2382, %v4228, 0
      %v4288 = vsel %vm2382, %v4229, 0
      %v4291 = vsel %vm2382, %v4230, 0
      %v4294 = vsel %vm2382, %v4231, 0
      %v4297 = vsel %vm2382, %v4232, 0
      %v4300 = vsel %vm2382, %v4233, 0
      %v4303 = vsel %vm2431, %v4251, 0
      %4305 = vmatprep.subr.bf16.mxu0 0
      %4306 = vmatpush1.bf16.msra.mxu0 0
      %4307 = vmatprep.subr.bf16.mxu0 0
      %4308 = vmatpush1.bf16.msra.mxu0 0
      %4309 = vmatprep.subr.bf16.mxu0 0
      %4310 = vmatpush1.bf16.msra.mxu0 0
      %4311 = vmatprep.subr.bf16.mxu0 0
      %4312 = vmatpush1.bf16.msra.mxu0 0
      %4313 = vmatprep.subr.bf16.mxu0 0
      %4314 = vmatpush1.bf16.msra.mxu0 0
      %4315 = vmatprep.subr.bf16.mxu0 0
      %4316 = vmatpush1.bf16.msra.mxu0 %v4303
      %4317 = vmatprep.subr.bf16.mxu0 0
      %4318 = vmatpush1.bf16.msra.mxu0 %v4250
      %4319 = vmatprep.subr.bf16.mxu0 0
      %4320 = vmatpush1.bf16.msra.mxu0 %v4249
      %4321 = vmatprep.subr.bf16.mxu0 0
      %4322 = vmatpush2.bf16.msra.mxu0 0
      %4323 = vmatprep.subr.bf16.mxu0 0
      %4324 = vmatpush2.bf16.msra.mxu0 0
      %4325 = vmatprep.subr.bf16.mxu0 0
      %4326 = vmatpush2.bf16.msra.mxu0 0
      %4327 = vmatprep.subr.bf16.mxu0 0
      %4328 = vmatpush2.bf16.msra.mxu0 0
      %4329 = vmatprep.subr.bf16.mxu0 0
      %4330 = vmatpush2.bf16.msra.mxu0 0
      %4331 = vmatprep.subr.bf16.mxu0 0
      %4332 = vmatpush2.bf16.msra.mxu0 0
      %4333 = vmatprep.subr.bf16.mxu0 0
      %4334 = vmatpush2.bf16.msra.mxu0 0
      %4335 = vmatprep.subr.bf16.mxu0 0
      %4336 = vmatpush2.bf16.msra.mxu0 0
      %4337 = vmatprep.mubr.bf16.mxu0 0
      %4338 = vmatmul.mubr.bf16.gmra.mxu0 %v4255
      %v4339 = vpop.f32.mrf.mxu0
      %v4340 = vadd.f32 0.0, %v4339
      %v4341 = vpop.f32.mrf.mxu0
      %v4342 = vpop.f32.mrf.mxu0
      %v4343 = vadd.f32 0.0, %v4342
      %v4344 = vpop.f32.mrf.mxu0
      %4345 = vmatprep.mubr.bf16.mxu0 0
      %4346 = vmatmul.mubr.bf16.gmra.mxu0 %v4258
      %v4347 = vpop.f32.mrf.mxu0
      %v4348 = vadd.f32 0.0, %v4347
      %v4349 = vpop.f32.mrf.mxu0
      %v4350 = vpop.f32.mrf.mxu0
      %v4351 = vadd.f32 0.0, %v4350
      %v4352 = vpop.f32.mrf.mxu0
      %4353 = vmatprep.mubr.bf16.mxu0 0
      %4354 = vmatmul.mubr.bf16.gmra.mxu0 %v4261
      %v4355 = vpop.f32.mrf.mxu0
      %v4356 = vadd.f32 0.0, %v4355
      %v4357 = vpop.f32.mrf.mxu0
      %v4358 = vpop.f32.mrf.mxu0
      %v4359 = vadd.f32 0.0, %v4358
      %v4360 = vpop.f32.mrf.mxu0
      %4361 = vmatprep.mubr.bf16.mxu0 0
      %4362 = vmatmul.mubr.bf16.gmra.mxu0 %v4264
      %v4363 = vpop.f32.mrf.mxu0
      %v4364 = vadd.f32 0.0, %v4363
      %v4365 = vpop.f32.mrf.mxu0
      %v4366 = vpop.f32.mrf.mxu0
      %v4367 = vadd.f32 0.0, %v4366
      %v4368 = vpop.f32.mrf.mxu0
      %4369 = vmatprep.mubr.bf16.mxu0 0
      %4370 = vmatmul.mubr.bf16.gmra.mxu0 %v4267
      %v4371 = vpop.f32.mrf.mxu0
      %v4372 = vadd.f32 0.0, %v4371
      %v4373 = vpop.f32.mrf.mxu0
      %v4374 = vpop.f32.mrf.mxu0
      %v4375 = vadd.f32 0.0, %v4374
      %v4376 = vpop.f32.mrf.mxu0
      %4377 = vmatprep.mubr.bf16.mxu0 0
      %4378 = vmatmul.mubr.bf16.gmra.mxu0 %v4270
      %v4379 = vpop.f32.mrf.mxu0
      %v4380 = vadd.f32 0.0, %v4379
      %v4381 = vpop.f32.mrf.mxu0
      %v4382 = vpop.f32.mrf.mxu0
      %v4383 = vadd.f32 0.0, %v4382
      %v4384 = vpop.f32.mrf.mxu0
      %4385 = vmatprep.mubr.bf16.mxu0 0
      %4386 = vmatmul.mubr.bf16.gmra.mxu0 %v4273
      %v4387 = vpop.f32.mrf.mxu0
      %v4388 = vadd.f32 0.0, %v4387
      %v4389 = vpop.f32.mrf.mxu0
      %v4390 = vpop.f32.mrf.mxu0
      %v4391 = vadd.f32 0.0, %v4390
      %v4392 = vpop.f32.mrf.mxu0
      %4393 = vmatprep.mubr.bf16.mxu0 0
      %4394 = vmatmul.mubr.bf16.gmra.mxu0 %v4276
      %v4395 = vpop.f32.mrf.mxu0
      %v4396 = vadd.f32 0.0, %v4395
      %v4397 = vpop.f32.mrf.mxu0
      %v4398 = vpop.f32.mrf.mxu0
      %v4399 = vadd.f32 0.0, %v4398
      %v4400 = vpop.f32.mrf.mxu0
      %4401 = vmatprep.mubr.bf16.mxu0 0
      %4402 = vmatmul.mubr.bf16.gmra.mxu0 %v4279
      %v4403 = vpop.f32.mrf.mxu0
      %v4404 = vadd.f32 0.0, %v4403
      %v4405 = vpop.f32.mrf.mxu0
      %v4406 = vpop.f32.mrf.mxu0
      %v4407 = vadd.f32 0.0, %v4406
      %v4408 = vpop.f32.mrf.mxu0
      %4409 = vmatprep.mubr.bf16.mxu0 0
      %4410 = vmatmul.mubr.bf16.gmra.mxu0 %v4282
      %v4411 = vpop.f32.mrf.mxu0
      %v4412 = vadd.f32 0.0, %v4411
      %v4413 = vpop.f32.mrf.mxu0
      %v4414 = vpop.f32.mrf.mxu0
      %v4415 = vadd.f32 0.0, %v4414
      %v4416 = vpop.f32.mrf.mxu0
      %4417 = vmatprep.mubr.bf16.mxu0 0
      %4418 = vmatmul.mubr.bf16.gmra.mxu0 %v4285
      %v4419 = vpop.f32.mrf.mxu0
      %v4420 = vadd.f32 0.0, %v4419
      %v4421 = vpop.f32.mrf.mxu0
      %v4422 = vpop.f32.mrf.mxu0
      %v4423 = vadd.f32 0.0, %v4422
      %v4424 = vpop.f32.mrf.mxu0
      %4425 = vmatprep.mubr.bf16.mxu0 0
      %4426 = vmatmul.mubr.bf16.gmra.mxu0 %v4288
      %v4427 = vpop.f32.mrf.mxu0
      %v4428 = vadd.f32 0.0, %v4427
      %v4429 = vpop.f32.mrf.mxu0
      %v4430 = vpop.f32.mrf.mxu0
      %v4431 = vadd.f32 0.0, %v4430
      %v4432 = vpop.f32.mrf.mxu0
      %4433 = vmatprep.mubr.bf16.mxu0 0
      %4434 = vmatmul.mubr.bf16.gmra.mxu0 %v4291
      %v4435 = vpop.f32.mrf.mxu0
      %v4436 = vadd.f32 0.0, %v4435
      %v4437 = vpop.f32.mrf.mxu0
      %v4438 = vpop.f32.mrf.mxu0
      %v4439 = vadd.f32 0.0, %v4438
      %v4440 = vpop.f32.mrf.mxu0
      %4441 = vmatprep.mubr.bf16.mxu0 0
      %4442 = vmatmul.mubr.bf16.gmra.mxu0 %v4294
      %v4443 = vpop.f32.mrf.mxu0
      %v4444 = vadd.f32 0.0, %v4443
      %v4445 = vpop.f32.mrf.mxu0
      %v4446 = vpop.f32.mrf.mxu0
      %v4447 = vadd.f32 0.0, %v4446
      %v4448 = vpop.f32.mrf.mxu0
      %4449 = vmatprep.mubr.bf16.mxu0 0
      %4450 = vmatmul.mubr.bf16.gmra.mxu0 %v4297
      %v4451 = vpop.f32.mrf.mxu0
      %v4452 = vadd.f32 0.0, %v4451
      %v4453 = vpop.f32.mrf.mxu0
      %v4454 = vpop.f32.mrf.mxu0
      %v4455 = vadd.f32 0.0, %v4454
      %v4456 = vpop.f32.mrf.mxu0
      %4457 = vmatprep.mubr.bf16.mxu0 0
      %4458 = vmatmul.mubr.bf16.gmra.mxu0 %v4300
      %v4459 = vpop.f32.mrf.mxu0
      %v4460 = vadd.f32 0.0, %v4459
      %v4461 = vpop.f32.mrf.mxu0
      %v4462 = vpop.f32.mrf.mxu0
      %v4463 = vadd.f32 0.0, %v4462
      %v4464 = vpop.f32.mrf.mxu0
      %4465 = vdwg.mxu0
      %v4466 = vadd.f32 %v2666, %v4340
      %v4467 = vadd.f32 %v2667, %v4343
      %v4468 = vadd.f32 %v2668, %v4348
      %v4469 = vadd.f32 %v2669, %v4351
      %v4470 = vadd.f32 %v2670, %v4356
      %v4471 = vadd.f32 %v2671, %v4359
      %v4472 = vadd.f32 %v2672, %v4364
      %v4473 = vadd.f32 %v2673, %v4367
      %v4474 = vadd.f32 %v2674, %v4372
      %v4475 = vadd.f32 %v2675, %v4375
      %v4476 = vadd.f32 %v2676, %v4380
      %v4477 = vadd.f32 %v2677, %v4383
      %v4478 = vadd.f32 %v2678, %v4388
      %v4479 = vadd.f32 %v2679, %v4391
      %v4480 = vadd.f32 %v2680, %v4396
      %v4481 = vadd.f32 %v2681, %v4399
      %v4482 = vadd.f32 %v2682, %v4404
      %v4483 = vadd.f32 %v2683, %v4407
      %v4484 = vadd.f32 %v2684, %v4412
      %v4485 = vadd.f32 %v2685, %v4415
      %v4486 = vadd.f32 %v2686, %v4420
      %v4487 = vadd.f32 %v2687, %v4423
      %v4488 = vadd.f32 %v2688, %v4428
      %v4489 = vadd.f32 %v2689, %v4431
      %v4490 = vadd.f32 %v2690, %v4436
      %v4491 = vadd.f32 %v2691, %v4439
      %v4492 = vadd.f32 %v2692, %v4444
      %v4493 = vadd.f32 %v2693, %v4447
      %v4494 = vadd.f32 %v2694, %v4452
      %v4495 = vadd.f32 %v2695, %v4455
      %v4496 = vadd.f32 %v2696, %v4460
      %v4497 = vadd.f32 %v2697, %v4463
      %4498 = vst.msk [vmem:[%s199] sm:$0xff] %vm2075, %v4466
      %4499 = vst.msk [vmem:[%s199 + $0x8] sm:$0xff] %vm2075, %v4467
      %4500 = vst.msk [vmem:[%s199 + $0x10] sm:$0xff] %vm2075, %v4468
      %4501 = vst.msk [vmem:[%s199 + $0x18] sm:$0xff] %vm2075, %v4469
      %4502 = vst.msk [vmem:[%s199 + $0x20] sm:$0xff] %vm2075, %v4470
      %4503 = vst.msk [vmem:[%s199 + $0x28] sm:$0xff] %vm2075, %v4471
      %4504 = vst.msk [vmem:[%s199 + $0x30] sm:$0xff] %vm2075, %v4472
      %4505 = vst.msk [vmem:[%s199 + $0x38] sm:$0xff] %vm2075, %v4473
      %4506 = vst.msk [vmem:[%s199 + $0x40] sm:$0xff] %vm2075, %v4474
      %4507 = vst.msk [vmem:[%s199 + $0x48] sm:$0xff] %vm2075, %v4475
      %4508 = vst.msk [vmem:[%s199 + $0x50] sm:$0xff] %vm2075, %v4476
      %4509 = vst.msk [vmem:[%s199 + $0x58] sm:$0xff] %vm2075, %v4477
      %4510 = vst.msk [vmem:[%s199 + $0x60] sm:$0xff] %vm2075, %v4478
      %4511 = vst.msk [vmem:[%s199 + $0x68] sm:$0xff] %vm2075, %v4479
      %4512 = vst.msk [vmem:[%s199 + $0x70] sm:$0xff] %vm2075, %v4480
      %4513 = vst.msk [vmem:[%s199 + $0x78] sm:$0xff] %vm2075, %v4481
      %4514 = vst.msk [vmem:[%s199 + $0x80] sm:$0xff] %vm2075, %v4482
      %4515 = vst.msk [vmem:[%s199 + $0x88] sm:$0xff] %vm2075, %v4483
      %4516 = vst.msk [vmem:[%s199 + $0x90] sm:$0xff] %vm2075, %v4484
      %4517 = vst.msk [vmem:[%s199 + $0x98] sm:$0xff] %vm2075, %v4485
      %4518 = vst.msk [vmem:[%s199 + $0xa0] sm:$0xff] %vm2075, %v4486
      %4519 = vst.msk [vmem:[%s199 + $0xa8] sm:$0xff] %vm2075, %v4487
      %4520 = vst.msk [vmem:[%s199 + $0xb0] sm:$0xff] %vm2075, %v4488
      %4521 = vst.msk [vmem:[%s199 + $0xb8] sm:$0xff] %vm2075, %v4489
      %4522 = vst.msk [vmem:[%s199 + $0xc0] sm:$0xff] %vm2075, %v4490
      %4523 = vst.msk [vmem:[%s199 + $0xc8] sm:$0xff] %vm2075, %v4491
      %4524 = vst.msk [vmem:[%s199 + $0xd0] sm:$0xff] %vm2075, %v4492
      %4525 = vst.msk [vmem:[%s199 + $0xd8] sm:$0xff] %vm2075, %v4493
      %4526 = vst.msk [vmem:[%s199 + $0xe0] sm:$0xff] %vm2075, %v4494
      %4527 = vst.msk [vmem:[%s199 + $0xe8] sm:$0xff] %vm2075, %v4495
      %4528 = vst.msk [vmem:[%s199 + $0xf0] sm:$0xff] %vm2075, %v4496
      %4529 = vst.msk [vmem:[%s199 + $0xf8] sm:$0xff] %vm2075, %v4497
      %s4530 = smul.u32 32, %s15
      %p4531 = scmp.lt.s32.totalorder %s4530, 63
      %s4532 = scalar_select %p4531, %s4530, 63
      %s4533 = smul.addr %s4532, 8
      %s4534 = scalar_lea.vmem %s4, %s4533
      // Predicated region
      $region37: #{tpu_custom_call.1} parent=35 // pred_check
        %p4535 = pneg %p122
      $region38: #{tpu_custom_call.1} parent=35 // pred_check_branch
        %4537 = sbr.rel (%p4535) target = $region40
      $region39: #{tpu_custom_call.1} parent=35 // pred_region
        %s4538 = smul.u32 32, %s15
      $region40: #{tpu_custom_call.1} parent=35 // pred_fallthru
        _
    $region36: #{tpu_custom_call.1} parent=5 // pred_fallthru
      _
    %p4539 = scmp.le.s32.totalorder 2, %s10
    // Predicated region
    $region41: #{tpu_custom_call.1} parent=5 // pred_check
      %p4540 = pneg %p4539
    $region42: #{tpu_custom_call.1} parent=5 // pred_check_branch
      %4542 = sbr.rel (%p4540) target = $region44
    $region43: #{tpu_custom_call.1} parent=5 // pred_region
      %s4543 = ssub.s32 %s10, 2
      // Predicated region
      $region45: #{tpu_custom_call.1} parent=43 // pred_check
        %p4544 = pneg %p128
      $region46: #{tpu_custom_call.1} parent=43 // pred_check_branch
        %4546 = sbr.rel (%p4544) target = $region48
      $region47: #{tpu_custom_call.1} parent=43 // pred_region
        %s4547 = smul.u32 32, %s16
        %p4548 = scmp.lt.s32.totalorder %s4547, 63
        %s4549 = scalar_select %p4548, %s4547, 63
        %s4550 = smul.addr %s4549, 8
        %s4551 = scalar_lea.vmem %s4, %s4550
      $region48: #{tpu_custom_call.1} parent=43 // pred_fallthru
        _
    $region44: #{tpu_custom_call.1} parent=5 // pred_fallthru
      _
  $region6: #{tpu_custom_call.1} parent=0 // loop_footer
    %s14 = sadd.s32 1, %s10
  $region7: #{tpu_custom_call.1} parent=0 // loop_footer_branch
    %9 = sbr.rel target = $region3
  $region8: #{tpu_custom_call.1} parent=0 // loop_exit
    _

</llo_original>
